<compile_context>
chip_gen: v5e
topology: v5e:2x2
jax: 0.10.0
libtpu: 0.0.40
codegen_flags: <defaults>
</compile_context>

<pallas_src>
import jax
import jax.numpy as jnp
from jax.experimental import pallas as pl
from jax.experimental.pallas import tpu as pltpu

# ----------------------------- configuration --------------------------------
EPSILON   = 1e-4          # PPL epsilon
SPACE     = "w"           # 'z' path in the reference code is unreachable/broken
SAMPLING  = "full"        # 'full' -> t ~ U[0,1), 'end' -> t = 0
CROP      = False
Z_DIM     = 128
W_DIM     = 128
NUM_WS    = 4             # synthetic "num layers" of the mapping output
IMG_C     = 3
IMG_H     = 32
IMG_W     = 32
POOL      = 4             # factor = 1024 // 256
LPIPS_DIM = 128
BATCH     = 4             # cat([wt0, wt1]) -> 2 + 2 rows

LD     = NUM_WS * W_DIM                               # 512
NPX    = IMG_C * IMG_H * IMG_W                        # 3072 (flattened NCHW)
POOLED = IMG_C * (IMG_H // POOL) * (IMG_W // POOL)    # 192


def _full_spec(shape):
    return pl.BlockSpec(shape, lambda *args: (0,) * len(shape))


# --------------------------- fused forward kernel ----------------------------
def _ppl_fused_kernel(t_ref, z_ref, w_map_ref, b_map_ref,
                      w_dec_ref, b_dec_ref, w_fold_ref, b_fold_ref,
                      dist_ref):
    # ---- G.mapping_f on both endpoints at once: (2,Z)@(Z,L*D) + b, lrelu ----
    w = jnp.dot(z_ref[...], w_map_ref[...], preferred_element_type=jnp.float32)
    w = w + b_map_ref[...]
    w = jnp.where(w > 0.0, w, 0.2 * w)                 # (2, LD)

    # ---- wt0 = w0.lerp(w1, t); wt1 = w0.lerp(w1, t + eps) ----
    # rows of w_cat: [t0, t1, t0+eps, t1+eps]  (matches torch.cat([wt0, wt1]))
    w0 = w[0:1, :]                                     # (1, LD)
    dw = w[1:2, :] - w0                                # (1, LD)
    t0 = t_ref[0]
    t1 = t_ref[1]
    row = jax.lax.broadcasted_iota(jnp.int32, (BATCH, 1), 0)
    tt = jnp.where((row & 1) == 0, t0, t1) + jnp.where(row >= 2, EPSILON, 0.0)
    w_cat = w0 + dw * tt                               # (4, LD)

    # ---- G.decoder: bf16 MXU matmul, f32 accumulate, tanh ----
    img = jnp.dot(w_cat.astype(jnp.bfloat16), w_dec_ref[...],
                  preferred_element_type=jnp.float32) + b_dec_ref[...]
    img = jnp.tanh(img)                                # (4, NPX) flattened NCHW

    # ---- folded [4x4 mean-pool -> (img+1)*255/2 -> vgg linear] ----
    feats = jnp.dot(img, w_fold_ref[...],
                    preferred_element_type=jnp.float32) + b_fold_ref[...]

    # ---- LPIPS unit-normalization (rsqrt -> EUP slot) ----
    inv = jax.lax.rsqrt(jnp.sum(feats * feats, axis=1, keepdims=True) + 1e-8)
    feats = feats * inv                                # (4, LPIPS_DIM)

    # ---- dist = (lpips_t0 - lpips_t1).square().sum(1) / eps^2 ----
    d = feats[0:2, :] - feats[2:4, :]
    dist_ref[...] = jnp.sum(d * d, axis=1, keepdims=True) * (1.0 / (EPSILON * EPSILON))


def ppl_fused_call(t, z, params):
    out = pl.pallas_call(
        _ppl_fused_kernel,
        out_shape=jax.ShapeDtypeStruct((2, 1), jnp.float32),
        in_specs=[
            pl.BlockSpec(memory_space=pltpu.MemorySpace.SMEM),  # t (2,) scalars
            _full_spec((2, Z_DIM)),                             # z
            _full_spec((Z_DIM, LD)),                            # w_map
            _full_spec((1, LD)),                                # b_map
            _full_spec((LD, NPX)),                              # w_dec (bf16)
            _full_spec((1, NPX)),                               # b_dec
            _full_spec((NPX, LPIPS_DIM)),                       # w_fold
            _full_spec((1, LPIPS_DIM)),                         # b_fold
        ],
        out_specs=_full_spec((2, 1)),
        compiler_params=pltpu.CompilerParams(
            vmem_limit_bytes=32 * 1024 * 1024),
    )(t, z, params["w_map"], params["b_map"],
      params["w_dec"], params["b_dec"], params["w_fold"], params["b_fold"])
    return out[:, 0]


# -------------------------------- parameters ---------------------------------
def _make_pool_matrix():
    # Linear map flattened-NCHW (C*H*W,) -> flattened pooled (C*Hp*Wp,) doing
    # the 4x4 mean over non-overlapping blocks.  Compile-time constant.
    hp, wp = IMG_H // POOL, IMG_W // POOL
    in_idx = jnp.arange(NPX)
    c_in = in_idx // (IMG_H * IMG_W)
    rem = in_idx % (IMG_H * IMG_W)
    h_in = rem // IMG_W
    w_in = rem % IMG_W
    out_idx = jnp.arange(POOLED)
    c_out = out_idx // (hp * wp)
    rem_o = out_idx % (hp * wp)
    h_out = rem_o // wp
    w_out = rem_o % wp
    match = ((c_in[:, None] == c_out[None, :]) &
             ((h_in // POOL)[:, None] == h_out[None, :]) &
             ((w_in // POOL)[:, None] == w_out[None, :]))
    return jnp.where(match, 1.0 / (POOL * POOL), 0.0).astype(jnp.float32)


def init_params(key):
    assert not CROP  # the pool/scale/vgg fold below assumes the no-crop path
    ks = jax.random.split(key, 3)
    p = {}
    p["w_map"] = (jax.random.normal(ks[0], (Z_DIM, LD), jnp.float32)
                  / jnp.sqrt(Z_DIM))
    p["b_map"] = jnp.zeros((1, LD), jnp.float32)

    w_dec = (jax.random.normal(ks[1], (LD, NPX), jnp.float32)
             / jnp.sqrt(LD))
    p["w_dec"] = w_dec.astype(jnp.bfloat16)   # bf16 storage: halves HBM traffic
    p["b_dec"] = jnp.zeros((1, NPX), jnp.float32)

    w_vgg = (jax.random.normal(ks[2], (POOLED, LPIPS_DIM), jnp.float32)
             / jnp.sqrt(POOLED))
    b_vgg = jnp.zeros((1, LPIPS_DIM), jnp.float32)
    w_pool = _make_pool_matrix()               # (NPX, POOLED)

    # feats = ((img @ W_pool) + 1) * 127.5 @ w_vgg + b_vgg
    #       = img @ (127.5 * W_pool @ w_vgg) + (b_vgg + 127.5 * ones @ w_vgg)
    p["w_fold"] = 127.5 * (w_pool @ w_vgg)                           # (NPX, LPIPS_DIM)
    p["b_fold"] = b_vgg + 127.5 * jnp.sum(w_vgg, axis=0, keepdims=True)
    return p


# -------------------------------- PPLSampler ---------------------------------
def ppl_sampler_forward(params, key):
    k_t, k_z = jax.random.split(key, 2)
    # t = rand([2]) * (1 if sampling=='full' else 0)
    t = jax.random.uniform(k_t, (2,), jnp.float32) * (1.0 if SAMPLING == "full" else 0.0)
    # z0, z1 = randn([2, Z_DIM])  (single endpoint pair, as in the reference)
    z = jax.random.normal(k_z, (2, Z_DIM), jnp.float32)

    # TODO(synk): G '.noise_const' buffer re-randomization has no equivalent in
    # this synthetic linear decoder.

    # Entire mapping -> lerp -> decoder -> pool/scale -> vgg-lpips -> distance
    # pipeline runs inside one fused Pallas kernel (space == 'w' path).
    return ppl_fused_call(t, z, params)


if __name__ == "__main__":
    root = jax.random.PRNGKey(0)
    k_params, k_fwd = jax.random.split(root)
    params = init_params(k_params)
    dist = jax.jit(ppl_sampler_forward)(params, k_fwd)
    dist = jax.block_until_ready(dist)
    assert dist.shape == (2,) and dist.dtype == jnp.float32
    assert bool(jnp.all(jnp.isfinite(dist)))
    assert bool(jnp.all(dist >= 0.0))
    print("KERNEL_OK")
</pallas_src>

<mosaic_0001>
module attributes {stable_mosaic.version = 11 : i64} {
  func.func @_ppl_fused_kernel(%arg0: memref<2xf32, #tpu.memory_space<smem>>, %arg1: memref<2x128xf32, #tpu.memory_space<vmem>>, %arg2: memref<128x512xf32, #tpu.memory_space<vmem>>, %arg3: memref<1x512xf32, #tpu.memory_space<vmem>>, %arg4: memref<512x3072xbf16, #tpu.memory_space<vmem>>, %arg5: memref<1x3072xf32, #tpu.memory_space<vmem>>, %arg6: memref<3072x128xf32, #tpu.memory_space<vmem>>, %arg7: memref<1x128xf32, #tpu.memory_space<vmem>>, %arg8: memref<2x1xf32, #tpu.memory_space<vmem>>) attributes {dimension_semantics = [], scalar_prefetch = 0 : i64, scratch_operands = 0 : i64, tpu.core_type = #tpu.core_type<tc>} {
    %c0 = arith.constant 0 : index
    %c0_0 = arith.constant 0 : index
    %0 = vector.load %arg1[%c0, %c0_0] : memref<2x128xf32, #tpu.memory_space<vmem>>, vector<2x128xf32>
    %c0_1 = arith.constant 0 : index
    %c0_2 = arith.constant 0 : index
    %1 = vector.load %arg2[%c0_1, %c0_2] : memref<128x512xf32, #tpu.memory_space<vmem>>, vector<128x512xf32>
    %cst = arith.constant dense<0.000000e+00> : vector<2x512xf32>
    %2 = tpu.matmul %0, %1, %cst {dimension_numbers = #tpu.dot_dimension_numbers<[1], [0], [0], [1], [0, 0, 1, 1], [], []>} : vector<2x128xf32>, vector<128x512xf32>, vector<2x512xf32> -> vector<2x512xf32>
    %c0_3 = arith.constant 0 : index
    %c0_4 = arith.constant 0 : index
    %3 = vector.load %arg3[%c0_3, %c0_4] : memref<1x512xf32, #tpu.memory_space<vmem>>, vector<1x512xf32>
    %4 = vector.broadcast %3 : vector<1x512xf32> to vector<2x512xf32>
    %5 = arith.addf %2, %4 : vector<2x512xf32>
    %cst_5 = arith.constant 0.000000e+00 : f32
    %6 = vector.broadcast %cst_5 : f32 to vector<2x512xf32>
    %7 = arith.cmpf ogt, %5, %6 : vector<2x512xf32>
    %cst_6 = arith.constant 2.000000e-01 : f32
    %8 = vector.broadcast %cst_6 : f32 to vector<2x512xf32>
    %9 = arith.mulf %8, %5 : vector<2x512xf32>
    %10 = arith.select %7, %5, %9 : vector<2x512xi1>, vector<2x512xf32>
    %11 = vector.extract_strided_slice %10 {offsets = [0, 0], sizes = [1, 512], strides = [1, 1]} : vector<2x512xf32> to vector<1x512xf32>
    %12 = vector.extract_strided_slice %10 {offsets = [1, 0], sizes = [1, 512], strides = [1, 1]} : vector<2x512xf32> to vector<1x512xf32>
    %13 = arith.subf %12, %11 : vector<1x512xf32>
    %c0_7 = arith.constant 0 : index
    %14 = memref.load %arg0[%c0_7] : memref<2xf32, #tpu.memory_space<smem>>
    %c1 = arith.constant 1 : index
    %15 = memref.load %arg0[%c1] : memref<2xf32, #tpu.memory_space<smem>>
    %16 = tpu.iota {dimensions = array<i32: 0>} : vector<4x1xi32>
    %c1_i32 = arith.constant 1 : i32
    %17 = vector.broadcast %c1_i32 : i32 to vector<4x1xi32>
    %18 = arith.andi %16, %17 : vector<4x1xi32>
    %c0_i32 = arith.constant 0 : i32
    %19 = vector.broadcast %c0_i32 : i32 to vector<4x1xi32>
    %20 = arith.cmpi eq, %18, %19 : vector<4x1xi32>
    %21 = vector.broadcast %14 : f32 to vector<4x1xf32>
    %22 = vector.broadcast %15 : f32 to vector<4x1xf32>
    %23 = arith.select %20, %21, %22 : vector<4x1xi1>, vector<4x1xf32>
    %c2_i32 = arith.constant 2 : i32
    %24 = vector.broadcast %c2_i32 : i32 to vector<4x1xi32>
    %25 = arith.cmpi sge, %16, %24 : vector<4x1xi32>
    %cst_8 = arith.constant 9.99999974E-5 : f32
    %cst_9 = arith.constant 0.000000e+00 : f32
    %26 = vector.broadcast %cst_8 : f32 to vector<4x1xf32>
    %27 = vector.broadcast %cst_9 : f32 to vector<4x1xf32>
    %28 = arith.select %25, %26, %27 : vector<4x1xi1>, vector<4x1xf32>
    %29 = arith.addf %23, %28 : vector<4x1xf32>
    %30 = vector.broadcast %13 : vector<1x512xf32> to vector<4x512xf32>
    %31 = vector.broadcast %29 : vector<4x1xf32> to vector<4x512xf32>
    %32 = arith.mulf %30, %31 : vector<4x512xf32>
    %33 = vector.broadcast %11 : vector<1x512xf32> to vector<4x512xf32>
    %34 = arith.addf %33, %32 : vector<4x512xf32>
    %35 = arith.truncf %34 : vector<4x512xf32> to vector<4x512xbf16>
    %c0_10 = arith.constant 0 : index
    %c0_11 = arith.constant 0 : index
    %36 = vector.load %arg4[%c0_10, %c0_11] : memref<512x3072xbf16, #tpu.memory_space<vmem>>, vector<512x3072xbf16>
    %cst_12 = arith.constant dense<0.000000e+00> : vector<4x3072xf32>
    %37 = tpu.matmul %35, %36, %cst_12 {dimension_numbers = #tpu.dot_dimension_numbers<[1], [0], [0], [1], [0, 0, 1, 1], [], []>} : vector<4x512xbf16>, vector<512x3072xbf16>, vector<4x3072xf32> -> vector<4x3072xf32>
    %c0_13 = arith.constant 0 : index
    %c0_14 = arith.constant 0 : index
    %38 = vector.load %arg5[%c0_13, %c0_14] : memref<1x3072xf32, #tpu.memory_space<vmem>>, vector<1x3072xf32>
    %39 = vector.broadcast %38 : vector<1x3072xf32> to vector<4x3072xf32>
    %40 = arith.addf %37, %39 : vector<4x3072xf32>
    %41 = math.tanh %40 : vector<4x3072xf32>
    %c0_15 = arith.constant 0 : index
    %c0_16 = arith.constant 0 : index
    %42 = vector.load %arg6[%c0_15, %c0_16] : memref<3072x128xf32, #tpu.memory_space<vmem>>, vector<3072x128xf32>
    %cst_17 = arith.constant dense<0.000000e+00> : vector<4x128xf32>
    %43 = tpu.matmul %41, %42, %cst_17 {dimension_numbers = #tpu.dot_dimension_numbers<[1], [0], [0], [1], [0, 0, 1, 1], [], []>} : vector<4x3072xf32>, vector<3072x128xf32>, vector<4x128xf32> -> vector<4x128xf32>
    %c0_18 = arith.constant 0 : index
    %c0_19 = arith.constant 0 : index
    %44 = vector.load %arg7[%c0_18, %c0_19] : memref<1x128xf32, #tpu.memory_space<vmem>>, vector<1x128xf32>
    %45 = vector.broadcast %44 : vector<1x128xf32> to vector<4x128xf32>
    %46 = arith.addf %43, %45 : vector<4x128xf32>
    %47 = arith.mulf %46, %46 : vector<4x128xf32>
    %cst_20 = arith.constant dense<0.000000e+00> : vector<4xf32>
    %48 = vector.multi_reduction <add>, %47, %cst_20 [1] : vector<4x128xf32> to vector<4xf32>
    %49 = vector.shape_cast %48 : vector<4xf32> to vector<4x1xf32>
    %cst_21 = arith.constant 9.99999993E-9 : f32
    %50 = vector.broadcast %cst_21 : f32 to vector<4x1xf32>
    %51 = arith.addf %49, %50 : vector<4x1xf32>
    %52 = math.rsqrt %51 : vector<4x1xf32>
    %53 = vector.broadcast %52 : vector<4x1xf32> to vector<4x128xf32>
    %54 = arith.mulf %46, %53 : vector<4x128xf32>
    %55 = vector.extract_strided_slice %54 {offsets = [0, 0], sizes = [2, 128], strides = [1, 1]} : vector<4x128xf32> to vector<2x128xf32>
    %56 = vector.extract_strided_slice %54 {offsets = [2, 0], sizes = [2, 128], strides = [1, 1]} : vector<4x128xf32> to vector<2x128xf32>
    %57 = arith.subf %55, %56 : vector<2x128xf32>
    %58 = arith.mulf %57, %57 : vector<2x128xf32>
    %cst_22 = arith.constant dense<0.000000e+00> : vector<2xf32>
    %59 = vector.multi_reduction <add>, %58, %cst_22 [1] : vector<2x128xf32> to vector<2xf32>
    %60 = vector.shape_cast %59 : vector<2xf32> to vector<2x1xf32>
    %cst_23 = arith.constant 1.000000e+08 : f32
    %61 = vector.broadcast %cst_23 : f32 to vector<2x1xf32>
    %62 = arith.mulf %60, %61 : vector<2x1xf32>
    %c0_24 = arith.constant 0 : index
    %c0_25 = arith.constant 0 : index
    %63 = vector.load %arg8[%c0_24, %c0_25] : memref<2x1xf32, #tpu.memory_space<vmem>>, vector<2x1xf32>
    tpu.vector_store %arg8[%c0_24, %c0_25], %62 {strides = array<i32>} : memref<2x1xf32, #tpu.memory_space<vmem>>, vector<2x1xf32>,
    return
  }
}

</mosaic_0001>

<llo_original>
// kernel: ppl_sampler_forward.11
$region0: #{ppl_sampler_forward.11}
  #allocation0 [shape = 'u32[]', space=smem, size = 0x4, offset = 0x4, fixed_abs, tag = 'smem constant byte address 0x4 - core index']
  #allocation1 [shape = 'u32[72,128]{1,0:T(1,128)}', space=vmem, size = 0x9000, scoped, tag = 'internal scratch']
  %s0 = inlined_call_operand.vmem [shape: f32[2], index: 0, kind: input, shape index: {}]
  %s1 = inlined_call_operand.vmem [shape: f32[2,128], index: 1, kind: input, shape index: {}]
  %s2 = inlined_call_operand.hbm [shape: f32[128,512], index: 2, kind: input, shape index: {}]
  %s3 = inlined_call_operand.hbm [shape: f32[1,512], index: 3, kind: input, shape index: {}]
  %s4 = inlined_call_operand.hbm [shape: bf16[512,3072], index: 4, kind: input, shape index: {}]
  %s5 = inlined_call_operand.hbm [shape: f32[1,3072], index: 5, kind: input, shape index: {}]
  %s6 = inlined_call_operand.hbm [shape: f32[3072,128], index: 6, kind: input, shape index: {}]
  %s7 = inlined_call_operand.hbm [shape: f32[1,128], index: 7, kind: input, shape index: {}]
  %s8 = inlined_call_operand.vmem [shape: f32[2,1], index: 8, kind: output, shape index: {}]
  %s9 = sld [smem:[#allocation0]]
  $region70: #{ppl_sampler_forward.11} parent=0
    _
  %s11 = ssub.s32 1, %s9
  %s12 = scalar_select 0, %s11, %s9
  $region1: #{ppl_sampler_forward.11} parent=0
    #allocation2 [shape = 'u8[512]{0}', space=smem, size = 0x200, scoped, tag = 'input window, operand 0, single buffered']
    #allocation3 [shape = 's32[1]{0}', space=sflag, size = 0x4, scoped, tag = 'scoped memory for ppl_sampler_forward.11']
    #allocation4 [shape = 's32[1]{0}', space=sflag, size = 0x4, scoped, tag = 'scoped memory for ppl_sampler_forward.11']
    #allocation5 [shape = 'u8[262144]{0}', space=vmem, size = 0x40000, scoped, tag = 'input window, operand 2, single buffered']
    #allocation6 [shape = 'u8[2048]{0}', space=vmem, size = 0x800, scoped, tag = 'input window, operand 3, single buffered']
    #allocation7 [shape = 's32[1]{0}', space=sflag, size = 0x4, scoped, tag = 'scoped memory for ppl_sampler_forward.11']
    #allocation8 [shape = 'u8[3145728]{0}', space=vmem, size = 0x300000, scoped, tag = 'input window, operand 4, single buffered']
    #allocation9 [shape = 'u8[12288]{0}', space=vmem, size = 0x3000, scoped, tag = 'input window, operand 5, single buffered']
    #allocation10 [shape = 's32[1]{0}', space=sflag, size = 0x4, scoped, tag = 'scoped memory for ppl_sampler_forward.11']
    #allocation11 [shape = 'u8[1572864]{0}', space=vmem, size = 0x180000, scoped, tag = 'input window, operand 6, single buffered']
    #allocation12 [shape = 'u8[512]{0}', space=vmem, size = 0x400, scoped, tag = 'input window, operand 7, single buffered']
    #allocation13 [shape = 's32[1]{0}', space=sflag, size = 0x4, scoped, tag = 'scoped memory for ppl_sampler_forward.11']
    %13 = vsyncpa [#allocation4], 0
    %14 = vsyncpa [#allocation3], 0
    %15 = vsyncpa [#allocation7], 0
    %16 = vsyncpa [#allocation10], 0
    %17 = vsyncpa [#allocation13], 0
    // Predicated region
    $region2: #{ppl_sampler_forward.11} parent=1 // pred_check
      _
    $region3: #{ppl_sampler_forward.11} parent=1 // pred_check_branch
      %19 = sbr.rel (0) target = $region5
    $region4: #{ppl_sampler_forward.11} parent=1 // pred_region
      %21 = vsyncadd [#allocation4], 0
      %s23 = sshll.u32 %s0, 4
      %s24 = int_to_ptr.vmem [resolvable:$true] %s23
      %26 = dma.vmem_to_smem %s24, 16, [#allocation2], [#allocation4]
    $region5: #{ppl_sampler_forward.11} parent=1 // pred_fallthru
      _
    // Predicated region
    $region6: #{ppl_sampler_forward.11} parent=1 // pred_check
      _
    $region7: #{ppl_sampler_forward.11} parent=1 // pred_check_branch
      %28 = sbr.rel (0) target = $region9
    $region8: #{ppl_sampler_forward.11} parent=1 // pred_region
      _
    $region9: #{ppl_sampler_forward.11} parent=1 // pred_fallthru
      _
    // Predicated region
    $region10: #{ppl_sampler_forward.11} parent=1 // pred_check
      _
    $region11: #{ppl_sampler_forward.11} parent=1 // pred_check_branch
      %30 = sbr.rel (0) target = $region13
    $region12: #{ppl_sampler_forward.11} parent=1 // pred_region
      %32 = vsyncadd [#allocation3], 0
      %s33 = sshll.u32 %s2, 4
      %s34 = int_to_ptr.hbm [resolvable:$true] %s33
      %s35 = sshll.u32 [#allocation5], 4
      %s36 = int_to_ptr.vmem [resolvable:$true] %s35
      %41 = dma.hbm_to_vmem [thread:$0]  %s34, 8192, %s36, [#allocation3], 512, 512, 32
    $region13: #{ppl_sampler_forward.11} parent=1 // pred_fallthru
      _
    // Predicated region
    $region14: #{ppl_sampler_forward.11} parent=1 // pred_check
      _
    $region15: #{ppl_sampler_forward.11} parent=1 // pred_check_branch
      %43 = sbr.rel (0) target = $region17
    $region16: #{ppl_sampler_forward.11} parent=1 // pred_region
      %45 = vsyncadd [#allocation7], 0
      %s47 = sshll.u32 %s3, 4
      %s48 = int_to_ptr.hbm [resolvable:$true] %s47
      %s49 = sshll.u32 [#allocation6], 4
      %s50 = int_to_ptr.vmem [resolvable:$true] %s49
      %52 = dma.hbm_to_vmem [thread:$0]  %s48, 64, %s50, [#allocation7]
    $region17: #{ppl_sampler_forward.11} parent=1 // pred_fallthru
      _
    // Predicated region
    $region18: #{ppl_sampler_forward.11} parent=1 // pred_check
      _
    $region19: #{ppl_sampler_forward.11} parent=1 // pred_check_branch
      %54 = sbr.rel (0) target = $region21
    $region20: #{ppl_sampler_forward.11} parent=1 // pred_region
      %56 = vsyncadd [#allocation7], 0
      %s57 = sshll.u32 %s4, 4
      %s58 = int_to_ptr.hbm [resolvable:$true] %s57
      %s59 = sshll.u32 [#allocation8], 4
      %s60 = int_to_ptr.vmem [resolvable:$true] %s59
      %65 = dma.hbm_to_vmem [thread:$0]  %s58, 98304, %s60, [#allocation7], 1536, 1536, 96
    $region21: #{ppl_sampler_forward.11} parent=1 // pred_fallthru
      _
    // Predicated region
    $region22: #{ppl_sampler_forward.11} parent=1 // pred_check
      _
    $region23: #{ppl_sampler_forward.11} parent=1 // pred_check_branch
      %67 = sbr.rel (0) target = $region25
    $region24: #{ppl_sampler_forward.11} parent=1 // pred_region
      %69 = vsyncadd [#allocation10], 0
      %s71 = sshll.u32 %s5, 4
      %s72 = int_to_ptr.hbm [resolvable:$true] %s71
      %s73 = sshll.u32 [#allocation9], 4
      %s74 = int_to_ptr.vmem [resolvable:$true] %s73
      %76 = dma.hbm_to_vmem [thread:$0]  %s72, 384, %s74, [#allocation10]
    $region25: #{ppl_sampler_forward.11} parent=1 // pred_fallthru
      _
    // Predicated region
    $region26: #{ppl_sampler_forward.11} parent=1 // pred_check
      _
    $region27: #{ppl_sampler_forward.11} parent=1 // pred_check_branch
      %78 = sbr.rel (0) target = $region29
    $region28: #{ppl_sampler_forward.11} parent=1 // pred_region
      %80 = vsyncadd [#allocation10], 0
      %s81 = sshll.u32 %s6, 4
      %s82 = int_to_ptr.hbm [resolvable:$true] %s81
      %s83 = sshll.u32 [#allocation11], 4
      %s84 = int_to_ptr.vmem [resolvable:$true] %s83
      %89 = dma.hbm_to_vmem [thread:$0]  %s82, 49152, %s84, [#allocation10], 128, 128, 8
    $region29: #{ppl_sampler_forward.11} parent=1 // pred_fallthru
      _
    // Predicated region
    $region30: #{ppl_sampler_forward.11} parent=1 // pred_check
      _
    $region31: #{ppl_sampler_forward.11} parent=1 // pred_check_branch
      %91 = sbr.rel (0) target = $region33
    $region32: #{ppl_sampler_forward.11} parent=1 // pred_region
      %93 = vsyncadd [#allocation13], 0
      %s95 = sshll.u32 %s7, 4
      %s96 = int_to_ptr.hbm [resolvable:$true] %s95
      %s97 = sshll.u32 [#allocation12], 4
      %s98 = int_to_ptr.vmem [resolvable:$true] %s97
      %100 = dma.hbm_to_vmem [thread:$0]  %s96, 16, %s98, [#allocation13]
    $region33: #{ppl_sampler_forward.11} parent=1 // pred_fallthru
      _
    // Predicated region
    $region34: #{ppl_sampler_forward.11} parent=1 // pred_check
      _
    $region35: #{ppl_sampler_forward.11} parent=1 // pred_check_branch
      %102 = sbr.rel (0) target = $region37
    $region36: #{ppl_sampler_forward.11} parent=1 // pred_region
      %104 = dma.done [#allocation4], 16
    $region37: #{ppl_sampler_forward.11} parent=1 // pred_fallthru
      _
    // Predicated region
    $region38: #{ppl_sampler_forward.11} parent=1 // pred_check
      _
    $region39: #{ppl_sampler_forward.11} parent=1 // pred_check_branch
      %106 = sbr.rel (0) target = $region41
    $region40: #{ppl_sampler_forward.11} parent=1 // pred_region
      %108 = dma.done [#allocation3], 8192
    $region41: #{ppl_sampler_forward.11} parent=1 // pred_fallthru
      _
    // Predicated region
    $region42: #{ppl_sampler_forward.11} parent=1 // pred_check
      _
    $region43: #{ppl_sampler_forward.11} parent=1 // pred_check_branch
      %110 = sbr.rel (0) target = $region45
    $region44: #{ppl_sampler_forward.11} parent=1 // pred_region
      %112 = dma.done [#allocation7], 64
    $region45: #{ppl_sampler_forward.11} parent=1 // pred_fallthru
      _
    // Predicated region
    $region46: #{ppl_sampler_forward.11} parent=1 // pred_check
      _
    $region47: #{ppl_sampler_forward.11} parent=1 // pred_check_branch
      %114 = sbr.rel (0) target = $region49
    $region48: #{ppl_sampler_forward.11} parent=1 // pred_region
      %116 = dma.done [#allocation7], 98304
    $region49: #{ppl_sampler_forward.11} parent=1 // pred_fallthru
      _
    // Predicated region
    $region50: #{ppl_sampler_forward.11} parent=1 // pred_check
      _
    $region51: #{ppl_sampler_forward.11} parent=1 // pred_check_branch
      %118 = sbr.rel (0) target = $region53
    $region52: #{ppl_sampler_forward.11} parent=1 // pred_region
      %120 = dma.done [#allocation10], 384
    $region53: #{ppl_sampler_forward.11} parent=1 // pred_fallthru
      _
    // Predicated region
    $region54: #{ppl_sampler_forward.11} parent=1 // pred_check
      _
    $region55: #{ppl_sampler_forward.11} parent=1 // pred_check_branch
      %122 = sbr.rel (0) target = $region57
    $region56: #{ppl_sampler_forward.11} parent=1 // pred_region
      %124 = dma.done [#allocation10], 49152
    $region57: #{ppl_sampler_forward.11} parent=1 // pred_fallthru
      _
    // Predicated region
    $region58: #{ppl_sampler_forward.11} parent=1 // pred_check
      _
    $region59: #{ppl_sampler_forward.11} parent=1 // pred_check_branch
      %126 = sbr.rel (0) target = $region61
    $region60: #{ppl_sampler_forward.11} parent=1 // pred_region
      %128 = dma.done [#allocation13], 16
    $region61: #{ppl_sampler_forward.11} parent=1 // pred_fallthru
      _
    %129 = sfence
    %v130 = vld [vmem:[%s1] sm:$0x3]
    %v131 = vld [vmem:[#allocation5] sm:$0xff]
    %v132 = vld [vmem:[#allocation5 + $0x8] sm:$0xff]
    %v133 = vld [vmem:[#allocation5 + $0x10] sm:$0xff]
    %v134 = vld [vmem:[#allocation5 + $0x18] sm:$0xff]
    %v135 = vld [vmem:[#allocation5 + $0x20] sm:$0xff]
    %v136 = vld [vmem:[#allocation5 + $0x28] sm:$0xff]
    %v137 = vld [vmem:[#allocation5 + $0x30] sm:$0xff]
    %v138 = vld [vmem:[#allocation5 + $0x38] sm:$0xff]
    %v139 = vld [vmem:[#allocation5 + $0x40] sm:$0xff]
    %v140 = vld [vmem:[#allocation5 + $0x48] sm:$0xff]
    %v141 = vld [vmem:[#allocation5 + $0x50] sm:$0xff]
    %v142 = vld [vmem:[#allocation5 + $0x58] sm:$0xff]
    %v143 = vld [vmem:[#allocation5 + $0x60] sm:$0xff]
    %v144 = vld [vmem:[#allocation5 + $0x68] sm:$0xff]
    %v145 = vld [vmem:[#allocation5 + $0x70] sm:$0xff]
    %v146 = vld [vmem:[#allocation5 + $0x78] sm:$0xff]
    %v147 = vld [vmem:[#allocation5 + $0x80] sm:$0xff]
    %v148 = vld [vmem:[#allocation5 + $0x88] sm:$0xff]
    %v149 = vld [vmem:[#allocation5 + $0x90] sm:$0xff]
    %v150 = vld [vmem:[#allocation5 + $0x98] sm:$0xff]
    %v151 = vld [vmem:[#allocation5 + $0xa0] sm:$0xff]
    %v152 = vld [vmem:[#allocation5 + $0xa8] sm:$0xff]
    %v153 = vld [vmem:[#allocation5 + $0xb0] sm:$0xff]
    %v154 = vld [vmem:[#allocation5 + $0xb8] sm:$0xff]
    %v155 = vld [vmem:[#allocation5 + $0xc0] sm:$0xff]
    %v156 = vld [vmem:[#allocation5 + $0xc8] sm:$0xff]
    %v157 = vld [vmem:[#allocation5 + $0xd0] sm:$0xff]
    %v158 = vld [vmem:[#allocation5 + $0xd8] sm:$0xff]
    %v159 = vld [vmem:[#allocation5 + $0xe0] sm:$0xff]
    %v160 = vld [vmem:[#allocation5 + $0xe8] sm:$0xff]
    %v161 = vld [vmem:[#allocation5 + $0xf0] sm:$0xff]
    %v162 = vld [vmem:[#allocation5 + $0xf8] sm:$0xff]
    %v163 = vld [vmem:[#allocation5 + $0x100] sm:$0xff]
    %v164 = vld [vmem:[#allocation5 + $0x108] sm:$0xff]
    %v165 = vld [vmem:[#allocation5 + $0x110] sm:$0xff]
    %v166 = vld [vmem:[#allocation5 + $0x118] sm:$0xff]
    %v167 = vld [vmem:[#allocation5 + $0x120] sm:$0xff]
    %v168 = vld [vmem:[#allocation5 + $0x128] sm:$0xff]
    %v169 = vld [vmem:[#allocation5 + $0x130] sm:$0xff]
    %v170 = vld [vmem:[#allocation5 + $0x138] sm:$0xff]
    %v171 = vld [vmem:[#allocation5 + $0x140] sm:$0xff]
    %v172 = vld [vmem:[#allocation5 + $0x148] sm:$0xff]
    %v173 = vld [vmem:[#allocation5 + $0x150] sm:$0xff]
    %v174 = vld [vmem:[#allocation5 + $0x158] sm:$0xff]
    %v175 = vld [vmem:[#allocation5 + $0x160] sm:$0xff]
    %v176 = vld [vmem:[#allocation5 + $0x168] sm:$0xff]
    %v177 = vld [vmem:[#allocation5 + $0x170] sm:$0xff]
    %v178 = vld [vmem:[#allocation5 + $0x178] sm:$0xff]
    %v179 = vld [vmem:[#allocation5 + $0x180] sm:$0xff]
    %v180 = vld [vmem:[#allocation5 + $0x188] sm:$0xff]
    %v181 = vld [vmem:[#allocation5 + $0x190] sm:$0xff]
    %v182 = vld [vmem:[#allocation5 + $0x198] sm:$0xff]
    %v183 = vld [vmem:[#allocation5 + $0x1a0] sm:$0xff]
    %v184 = vld [vmem:[#allocation5 + $0x1a8] sm:$0xff]
    %v185 = vld [vmem:[#allocation5 + $0x1b0] sm:$0xff]
    %v186 = vld [vmem:[#allocation5 + $0x1b8] sm:$0xff]
    %v187 = vld [vmem:[#allocation5 + $0x1c0] sm:$0xff]
    %v188 = vld [vmem:[#allocation5 + $0x1c8] sm:$0xff]
    %v189 = vld [vmem:[#allocation5 + $0x1d0] sm:$0xff]
    %v190 = vld [vmem:[#allocation5 + $0x1d8] sm:$0xff]
    %v191 = vld [vmem:[#allocation5 + $0x1e0] sm:$0xff]
    %v192 = vld [vmem:[#allocation5 + $0x1e8] sm:$0xff]
    %v193 = vld [vmem:[#allocation5 + $0x1f0] sm:$0xff]
    %v194 = vld [vmem:[#allocation5 + $0x1f8] sm:$0xff]
    %v195 = vld [vmem:[#allocation6] sm:$0xf]
    %v197 = vperm.slane %v195, 0
    %v198 = vperm.slane %v195, 1
    %v199 = vperm.slane %v195, 2
    %v200 = vperm.slane %v195, 3
    %205 = vmatpush.msra.mxu0 %v191
    %206 = vmatpush.msra.mxu0 %v187
    %207 = vmatpush.msra.mxu0 %v183
    %208 = vmatpush.msra.mxu0 %v179
    %209 = vmatpush.msra.mxu0 %v175
    %210 = vmatpush.msra.mxu0 %v171
    %211 = vmatpush.msra.mxu0 %v167
    %212 = vmatpush.msra.mxu0 %v163
    %213 = vmatpush.msra.mxu0 %v159
    %214 = vmatpush.msra.mxu0 %v155
    %215 = vmatpush.msra.mxu0 %v151
    %216 = vmatpush.msra.mxu0 %v147
    %217 = vmatpush.msra.mxu0 %v143
    %218 = vmatpush.msra.mxu0 %v139
    %219 = vmatpush.msra.mxu0 %v135
    %220 = vmatpush.msra.mxu0 %v131
    %221 = vmatmul.f32.gmra.mxu0 %v130
    %v222 = vpop.f32.mrf.mxu0
    %v223 = vadd.f32 %v197, %v222
    %224 = vdwg.mxu0
    %225 = vmatpush.msra.mxu0 %v192
    %226 = vmatpush.msra.mxu0 %v188
    %227 = vmatpush.msra.mxu0 %v184
    %228 = vmatpush.msra.mxu0 %v180
    %229 = vmatpush.msra.mxu0 %v176
    %230 = vmatpush.msra.mxu0 %v172
    %231 = vmatpush.msra.mxu0 %v168
    %232 = vmatpush.msra.mxu0 %v164
    %233 = vmatpush.msra.mxu0 %v160
    %234 = vmatpush.msra.mxu0 %v156
    %235 = vmatpush.msra.mxu0 %v152
    %236 = vmatpush.msra.mxu0 %v148
    %237 = vmatpush.msra.mxu0 %v144
    %238 = vmatpush.msra.mxu0 %v140
    %239 = vmatpush.msra.mxu0 %v136
    %240 = vmatpush.msra.mxu0 %v132
    %241 = vmatmul.f32.gmra.mxu0 %v130
    %v242 = vpop.f32.mrf.mxu0
    %v243 = vadd.f32 %v198, %v242
    %244 = vdwg.mxu0
    %245 = vmatpush.msra.mxu0 %v193
    %246 = vmatpush.msra.mxu0 %v189
    %247 = vmatpush.msra.mxu0 %v185
    %248 = vmatpush.msra.mxu0 %v181
    %249 = vmatpush.msra.mxu0 %v177
    %250 = vmatpush.msra.mxu0 %v173
    %251 = vmatpush.msra.mxu0 %v169
    %252 = vmatpush.msra.mxu0 %v165
    %253 = vmatpush.msra.mxu0 %v161
    %254 = vmatpush.msra.mxu0 %v157
    %255 = vmatpush.msra.mxu0 %v153
    %256 = vmatpush.msra.mxu0 %v149
    %257 = vmatpush.msra.mxu0 %v145
    %258 = vmatpush.msra.mxu0 %v141
    %259 = vmatpush.msra.mxu0 %v137
    %260 = vmatpush.msra.mxu0 %v133
    %261 = vmatmul.f32.gmra.mxu0 %v130
    %v262 = vpop.f32.mrf.mxu0
    %v263 = vadd.f32 %v199, %v262
    %264 = vdwg.mxu0
    %265 = vmatpush.msra.mxu0 %v194
    %266 = vmatpush.msra.mxu0 %v190
    %267 = vmatpush.msra.mxu0 %v186
    %268 = vmatpush.msra.mxu0 %v182
    %269 = vmatpush.msra.mxu0 %v178
    %270 = vmatpush.msra.mxu0 %v174
    %271 = vmatpush.msra.mxu0 %v170
    %272 = vmatpush.msra.mxu0 %v166
    %273 = vmatpush.msra.mxu0 %v162
    %274 = vmatpush.msra.mxu0 %v158
    %275 = vmatpush.msra.mxu0 %v154
    %276 = vmatpush.msra.mxu0 %v150
    %277 = vmatpush.msra.mxu0 %v146
    %278 = vmatpush.msra.mxu0 %v142
    %279 = vmatpush.msra.mxu0 %v138
    %280 = vmatpush.msra.mxu0 %v134
    %281 = vmatmul.f32.gmra.mxu0 %v130
    %v282 = vpop.f32.mrf.mxu0
    %v283 = vadd.f32 %v200, %v282
    %284 = vdwg.mxu0
    %vm285 = vcmp.gt.f32.partialorder %v223, 0.0
    %vm286 = vcmp.gt.f32.partialorder %v243, 0.0
    %vm287 = vcmp.gt.f32.partialorder %v263, 0.0
    %vm288 = vcmp.gt.f32.partialorder %v283, 0.0
    %v289 = vmul.f32 %v223, 0.2
    %v290 = vmul.f32 %v243, 0.2
    %v291 = vmul.f32 %v263, 0.2
    %v292 = vmul.f32 %v283, 0.2
    %v293 = vsel %vm285, %v223, %v289
    %v294 = vsel %vm286, %v243, %v290
    %v295 = vsel %vm287, %v263, %v291
    %v296 = vsel %vm288, %v283, %v292
    %v301 = vrot.slane %v293, 7
    %v302 = vrot.slane %v294, 7
    %v303 = vrot.slane %v295, 7
    %v304 = vrot.slane %v296, 7
    %v309 = vsub.f32 %v293, %v301
    %v310 = vsub.f32 %v294, %v302
    %v311 = vsub.f32 %v295, %v303
    %v312 = vsub.f32 %v296, %v304
    %s313 = sld [smem:[#allocation2]]
    %s314 = sld [smem:[#allocation2 + $0x1]]
    %v315 = vlaneseq
    %v316 = vshrl.u32 %v315, 7
    %v317 = vand.u32 %v316, 1
    %vm318 = vcmp.eq.s32.totalorder %v317, 0
    %v319 = vstv %s313
    %v320 = vstv %s314
    %v321 = vsel %vm318, %v319, %v320
    %vm322 = vcmp.ge.s32.totalorder %v316, 2
    %v323 = vsel %vm322, 0.0001, 0.0
    %v324 = vadd.f32 %v321, %v323
    %v325 = vperm.slane %v309, 1
    %v326 = vperm.slane %v310, 1
    %v327 = vperm.slane %v311, 1
    %v328 = vperm.slane %v312, 1
    %v329 = vmul.f32 %v325, %v324
    %v330 = vmul.f32 %v326, %v324
    %v331 = vmul.f32 %v327, %v324
    %v332 = vmul.f32 %v328, %v324
    %v333 = vperm.slane %v293, 0
    %v334 = vperm.slane %v294, 0
    %v335 = vperm.slane %v295, 0
    %v336 = vperm.slane %v296, 0
    %v337 = vadd.f32 %v333, %v329
    %v338 = vadd.f32 %v334, %v330
    %v339 = vadd.f32 %v335, %v331
    %v340 = vadd.f32 %v336, %v332
    %v341 = vpack.c.bf16 %v337, %v337
    %v342 = vpack.c.bf16 %v338, %v338
    %v343 = vpack.c.bf16 %v339, %v339
    %v344 = vpack.c.bf16 %v340, %v340
    %v345 = vld [vmem:[#allocation8] sm:$0xff]
    %v346 = vld [vmem:[#allocation8 + $0x8] sm:$0xff]
    %v347 = vld [vmem:[#allocation8 + $0x10] sm:$0xff]
    %v348 = vld [vmem:[#allocation8 + $0x18] sm:$0xff]
    %v349 = vld [vmem:[#allocation8 + $0x20] sm:$0xff]
    %v350 = vld [vmem:[#allocation8 + $0x28] sm:$0xff]
    %v351 = vld [vmem:[#allocation8 + $0x30] sm:$0xff]
    %v352 = vld [vmem:[#allocation8 + $0x38] sm:$0xff]
    %v353 = vld [vmem:[#allocation8 + $0x40] sm:$0xff]
    %v354 = vld [vmem:[#allocation8 + $0x48] sm:$0xff]
    %v355 = vld [vmem:[#allocation8 + $0x50] sm:$0xff]
    %v356 = vld [vmem:[#allocation8 + $0x58] sm:$0xff]
    %v357 = vld [vmem:[#allocation8 + $0x60] sm:$0xff]
    %v358 = vld [vmem:[#allocation8 + $0x68] sm:$0xff]
    %v359 = vld [vmem:[#allocation8 + $0x70] sm:$0xff]
    %v360 = vld [vmem:[#allocation8 + $0x78] sm:$0xff]
    %v361 = vld [vmem:[#allocation8 + $0x80] sm:$0xff]
    %v362 = vld [vmem:[#allocation8 + $0x88] sm:$0xff]
    %v363 = vld [vmem:[#allocation8 + $0x90] sm:$0xff]
    %v364 = vld [vmem:[#allocation8 + $0x98] sm:$0xff]
    %v365 = vld [vmem:[#allocation8 + $0xa0] sm:$0xff]
    %v366 = vld [vmem:[#allocation8 + $0xa8] sm:$0xff]
    %v367 = vld [vmem:[#allocation8 + $0xb0] sm:$0xff]
    %v368 = vld [vmem:[#allocation8 + $0xb8] sm:$0xff]
    %v369 = vld [vmem:[#allocation8 + $0xc0] sm:$0xff]
    %v370 = vld [vmem:[#allocation8 + $0xc8] sm:$0xff]
    %v371 = vld [vmem:[#allocation8 + $0xd0] sm:$0xff]
    %v372 = vld [vmem:[#allocation8 + $0xd8] sm:$0xff]
    %v373 = vld [vmem:[#allocation8 + $0xe0] sm:$0xff]
    %v374 = vld [vmem:[#allocation8 + $0xe8] sm:$0xff]
    %v375 = vld [vmem:[#allocation8 + $0xf0] sm:$0xff]
    %v376 = vld [vmem:[#allocation8 + $0xf8] sm:$0xff]
    %v377 = vld [vmem:[#allocation8 + $0x100] sm:$0xff]
    %v378 = vld [vmem:[#allocation8 + $0x108] sm:$0xff]
    %v379 = vld [vmem:[#allocation8 + $0x110] sm:$0xff]
    %v380 = vld [vmem:[#allocation8 + $0x118] sm:$0xff]
    %v381 = vld [vmem:[#allocation8 + $0x120] sm:$0xff]
    %v382 = vld [vmem:[#allocation8 + $0x128] sm:$0xff]
    %v383 = vld [vmem:[#allocation8 + $0x130] sm:$0xff]
    %v384 = vld [vmem:[#allocation8 + $0x138] sm:$0xff]
    %v385 = vld [vmem:[#allocation8 + $0x140] sm:$0xff]
    %v386 = vld [vmem:[#allocation8 + $0x148] sm:$0xff]
    %v387 = vld [vmem:[#allocation8 + $0x150] sm:$0xff]
    %v388 = vld [vmem:[#allocation8 + $0x158] sm:$0xff]
    %v389 = vld [vmem:[#allocation8 + $0x160] sm:$0xff]
    %v390 = vld [vmem:[#allocation8 + $0x168] sm:$0xff]
    %v391 = vld [vmem:[#allocation8 + $0x170] sm:$0xff]
    %v392 = vld [vmem:[#allocation8 + $0x178] sm:$0xff]
    %v393 = vld [vmem:[#allocation8 + $0x180] sm:$0xff]
    %v394 = vld [vmem:[#allocation8 + $0x188] sm:$0xff]
    %v395 = vld [vmem:[#allocation8 + $0x190] sm:$0xff]
    %v396 = vld [vmem:[#allocation8 + $0x198] sm:$0xff]
    %v397 = vld [vmem:[#allocation8 + $0x1a0] sm:$0xff]
    %v398 = vld [vmem:[#allocation8 + $0x1a8] sm:$0xff]
    %v399 = vld [vmem:[#allocation8 + $0x1b0] sm:$0xff]
    %v400 = vld [vmem:[#allocation8 + $0x1b8] sm:$0xff]
    %v401 = vld [vmem:[#allocation8 + $0x1c0] sm:$0xff]
    %v402 = vld [vmem:[#allocation8 + $0x1c8] sm:$0xff]
    %v403 = vld [vmem:[#allocation8 + $0x1d0] sm:$0xff]
    %v404 = vld [vmem:[#allocation8 + $0x1d8] sm:$0xff]
    %v405 = vld [vmem:[#allocation8 + $0x1e0] sm:$0xff]
    %v406 = vld [vmem:[#allocation8 + $0x1e8] sm:$0xff]
    %v407 = vld [vmem:[#allocation8 + $0x1f0] sm:$0xff]
    %v408 = vld [vmem:[#allocation8 + $0x1f8] sm:$0xff]
    %v409 = vld [vmem:[#allocation8 + $0x200] sm:$0xff]
    %v410 = vld [vmem:[#allocation8 + $0x208] sm:$0xff]
    %v411 = vld [vmem:[#allocation8 + $0x210] sm:$0xff]
    %v412 = vld [vmem:[#allocation8 + $0x218] sm:$0xff]
    %v413 = vld [vmem:[#allocation8 + $0x220] sm:$0xff]
    %v414 = vld [vmem:[#allocation8 + $0x228] sm:$0xff]
    %v415 = vld [vmem:[#allocation8 + $0x230] sm:$0xff]
    %v416 = vld [vmem:[#allocation8 + $0x238] sm:$0xff]
    %v417 = vld [vmem:[#allocation8 + $0x240] sm:$0xff]
    %v418 = vld [vmem:[#allocation8 + $0x248] sm:$0xff]
    %v419 = vld [vmem:[#allocation8 + $0x250] sm:$0xff]
    %v420 = vld [vmem:[#allocation8 + $0x258] sm:$0xff]
    %v421 = vld [vmem:[#allocation8 + $0x260] sm:$0xff]
    %v422 = vld [vmem:[#allocation8 + $0x268] sm:$0xff]
    %v423 = vld [vmem:[#allocation8 + $0x270] sm:$0xff]
    %v424 = vld [vmem:[#allocation8 + $0x278] sm:$0xff]
    %v425 = vld [vmem:[#allocation8 + $0x280] sm:$0xff]
    %v426 = vld [vmem:[#allocation8 + $0x288] sm:$0xff]
    %v427 = vld [vmem:[#allocation8 + $0x290] sm:$0xff]
    %v428 = vld [vmem:[#allocation8 + $0x298] sm:$0xff]
    %v429 = vld [vmem:[#allocation8 + $0x2a0] sm:$0xff]
    %v430 = vld [vmem:[#allocation8 + $0x2a8] sm:$0xff]
    %v431 = vld [vmem:[#allocation8 + $0x2b0] sm:$0xff]
    %v432 = vld [vmem:[#allocation8 + $0x2b8] sm:$0xff]
    %v433 = vld [vmem:[#allocation8 + $0x2c0] sm:$0xff]
    %v434 = vld [vmem:[#allocation8 + $0x2c8] sm:$0xff]
    %v435 = vld [vmem:[#allocation8 + $0x2d0] sm:$0xff]
    %v436 = vld [vmem:[#allocation8 + $0x2d8] sm:$0xff]
    %v437 = vld [vmem:[#allocation8 + $0x2e0] sm:$0xff]
    %v438 = vld [vmem:[#allocation8 + $0x2e8] sm:$0xff]
    %v439 = vld [vmem:[#allocation8 + $0x2f0] sm:$0xff]
    %v440 = vld [vmem:[#allocation8 + $0x2f8] sm:$0xff]
    %v441 = vld [vmem:[#allocation8 + $0x300] sm:$0xff]
    %v442 = vld [vmem:[#allocation8 + $0x308] sm:$0xff]
    %v443 = vld [vmem:[#allocation8 + $0x310] sm:$0xff]
    %v444 = vld [vmem:[#allocation8 + $0x318] sm:$0xff]
    %v445 = vld [vmem:[#allocation8 + $0x320] sm:$0xff]
    %v446 = vld [vmem:[#allocation8 + $0x328] sm:$0xff]
    %v447 = vld [vmem:[#allocation8 + $0x330] sm:$0xff]
    %v448 = vld [vmem:[#allocation8 + $0x338] sm:$0xff]
    %v449 = vld [vmem:[#allocation8 + $0x340] sm:$0xff]
    %v450 = vld [vmem:[#allocation8 + $0x348] sm:$0xff]
    %v451 = vld [vmem:[#allocation8 + $0x350] sm:$0xff]
    %v452 = vld [vmem:[#allocation8 + $0x358] sm:$0xff]
    %v453 = vld [vmem:[#allocation8 + $0x360] sm:$0xff]
    %v454 = vld [vmem:[#allocation8 + $0x368] sm:$0xff]
    %v455 = vld [vmem:[#allocation8 + $0x370] sm:$0xff]
    %v456 = vld [vmem:[#allocation8 + $0x378] sm:$0xff]
    %v457 = vld [vmem:[#allocation8 + $0x380] sm:$0xff]
    %v458 = vld [vmem:[#allocation8 + $0x388] sm:$0xff]
    %v459 = vld [vmem:[#allocation8 + $0x390] sm:$0xff]
    %v460 = vld [vmem:[#allocation8 + $0x398] sm:$0xff]
    %v461 = vld [vmem:[#allocation8 + $0x3a0] sm:$0xff]
    %v462 = vld [vmem:[#allocation8 + $0x3a8] sm:$0xff]
    %v463 = vld [vmem:[#allocation8 + $0x3b0] sm:$0xff]
    %v464 = vld [vmem:[#allocation8 + $0x3b8] sm:$0xff]
    %v465 = vld [vmem:[#allocation8 + $0x3c0] sm:$0xff]
    %v466 = vld [vmem:[#allocation8 + $0x3c8] sm:$0xff]
    %v467 = vld [vmem:[#allocation8 + $0x3d0] sm:$0xff]
    %v468 = vld [vmem:[#allocation8 + $0x3d8] sm:$0xff]
    %v469 = vld [vmem:[#allocation8 + $0x3e0] sm:$0xff]
    %v470 = vld [vmem:[#allocation8 + $0x3e8] sm:$0xff]
    %v471 = vld [vmem:[#allocation8 + $0x3f0] sm:$0xff]
    %v472 = vld [vmem:[#allocation8 + $0x3f8] sm:$0xff]
    %v473 = vld [vmem:[#allocation8 + $0x400] sm:$0xff]
    %v474 = vld [vmem:[#allocation8 + $0x408] sm:$0xff]
    %v475 = vld [vmem:[#allocation8 + $0x410] sm:$0xff]
    %v476 = vld [vmem:[#allocation8 + $0x418] sm:$0xff]
    %v477 = vld [vmem:[#allocation8 + $0x420] sm:$0xff]
    %v478 = vld [vmem:[#allocation8 + $0x428] sm:$0xff]
    %v479 = vld [vmem:[#allocation8 + $0x430] sm:$0xff]
    %v480 = vld [vmem:[#allocation8 + $0x438] sm:$0xff]
    %v481 = vld [vmem:[#allocation8 + $0x440] sm:$0xff]
    %v482 = vld [vmem:[#allocation8 + $0x448] sm:$0xff]
    %v483 = vld [vmem:[#allocation8 + $0x450] sm:$0xff]
    %v484 = vld [vmem:[#allocation8 + $0x458] sm:$0xff]
    %v485 = vld [vmem:[#allocation8 + $0x460] sm:$0xff]
    %v486 = vld [vmem:[#allocation8 + $0x468] sm:$0xff]
    %v487 = vld [vmem:[#allocation8 + $0x470] sm:$0xff]
    %v488 = vld [vmem:[#allocation8 + $0x478] sm:$0xff]
    %v489 = vld [vmem:[#allocation8 + $0x480] sm:$0xff]
    %v490 = vld [vmem:[#allocation8 + $0x488] sm:$0xff]
    %v491 = vld [vmem:[#allocation8 + $0x490] sm:$0xff]
    %v492 = vld [vmem:[#allocation8 + $0x498] sm:$0xff]
    %v493 = vld [vmem:[#allocation8 + $0x4a0] sm:$0xff]
    %v494 = vld [vmem:[#allocation8 + $0x4a8] sm:$0xff]
    %v495 = vld [vmem:[#allocation8 + $0x4b0] sm:$0xff]
    %v496 = vld [vmem:[#allocation8 + $0x4b8] sm:$0xff]
    %v497 = vld [vmem:[#allocation8 + $0x4c0] sm:$0xff]
    %v498 = vld [vmem:[#allocation8 + $0x4c8] sm:$0xff]
    %v499 = vld [vmem:[#allocation8 + $0x4d0] sm:$0xff]
    %v500 = vld [vmem:[#allocation8 + $0x4d8] sm:$0xff]
    %v501 = vld [vmem:[#allocation8 + $0x4e0] sm:$0xff]
    %v502 = vld [vmem:[#allocation8 + $0x4e8] sm:$0xff]
    %v503 = vld [vmem:[#allocation8 + $0x4f0] sm:$0xff]
    %v504 = vld [vmem:[#allocation8 + $0x4f8] sm:$0xff]
    %v505 = vld [vmem:[#allocation8 + $0x500] sm:$0xff]
    %v506 = vld [vmem:[#allocation8 + $0x508] sm:$0xff]
    %v507 = vld [vmem:[#allocation8 + $0x510] sm:$0xff]
    %v508 = vld [vmem:[#allocation8 + $0x518] sm:$0xff]
    %v509 = vld [vmem:[#allocation8 + $0x520] sm:$0xff]
    %v510 = vld [vmem:[#allocation8 + $0x528] sm:$0xff]
    %v511 = vld [vmem:[#allocation8 + $0x530] sm:$0xff]
    %v512 = vld [vmem:[#allocation8 + $0x538] sm:$0xff]
    %v513 = vld [vmem:[#allocation8 + $0x540] sm:$0xff]
    %v514 = vld [vmem:[#allocation8 + $0x548] sm:$0xff]
    %v515 = vld [vmem:[#allocation8 + $0x550] sm:$0xff]
    %v516 = vld [vmem:[#allocation8 + $0x558] sm:$0xff]
    %v517 = vld [vmem:[#allocation8 + $0x560] sm:$0xff]
    %v518 = vld [vmem:[#allocation8 + $0x568] sm:$0xff]
    %v519 = vld [vmem:[#allocation8 + $0x570] sm:$0xff]
    %v520 = vld [vmem:[#allocation8 + $0x578] sm:$0xff]
    %v521 = vld [vmem:[#allocation8 + $0x580] sm:$0xff]
    %v522 = vld [vmem:[#allocation8 + $0x588] sm:$0xff]
    %v523 = vld [vmem:[#allocation8 + $0x590] sm:$0xff]
    %v524 = vld [vmem:[#allocation8 + $0x598] sm:$0xff]
    %v525 = vld [vmem:[#allocation8 + $0x5a0] sm:$0xff]
    %v526 = vld [vmem:[#allocation8 + $0x5a8] sm:$0xff]
    %v527 = vld [vmem:[#allocation8 + $0x5b0] sm:$0xff]
    %v528 = vld [vmem:[#allocation8 + $0x5b8] sm:$0xff]
    %v529 = vld [vmem:[#allocation8 + $0x5c0] sm:$0xff]
    %v530 = vld [vmem:[#allocation8 + $0x5c8] sm:$0xff]
    %v531 = vld [vmem:[#allocation8 + $0x5d0] sm:$0xff]
    %v532 = vld [vmem:[#allocation8 + $0x5d8] sm:$0xff]
    %v533 = vld [vmem:[#allocation8 + $0x5e0] sm:$0xff]
    %v534 = vld [vmem:[#allocation8 + $0x5e8] sm:$0xff]
    %v535 = vld [vmem:[#allocation8 + $0x5f0] sm:$0xff]
    %v536 = vld [vmem:[#allocation8 + $0x5f8] sm:$0xff]
    %v537 = vld [vmem:[#allocation8 + $0x600] sm:$0xff]
    %v538 = vld [vmem:[#allocation8 + $0x608] sm:$0xff]
    %v539 = vld [vmem:[#allocation8 + $0x610] sm:$0xff]
    %v540 = vld [vmem:[#allocation8 + $0x618] sm:$0xff]
    %v541 = vld [vmem:[#allocation8 + $0x620] sm:$0xff]
    %v542 = vld [vmem:[#allocation8 + $0x628] sm:$0xff]
    %v543 = vld [vmem:[#allocation8 + $0x630] sm:$0xff]
    %v544 = vld [vmem:[#allocation8 + $0x638] sm:$0xff]
    %v545 = vld [vmem:[#allocation8 + $0x640] sm:$0xff]
    %v546 = vld [vmem:[#allocation8 + $0x648] sm:$0xff]
    %v547 = vld [vmem:[#allocation8 + $0x650] sm:$0xff]
    %v548 = vld [vmem:[#allocation8 + $0x658] sm:$0xff]
    %v549 = vld [vmem:[#allocation8 + $0x660] sm:$0xff]
    %v550 = vld [vmem:[#allocation8 + $0x668] sm:$0xff]
    %v551 = vld [vmem:[#allocation8 + $0x670] sm:$0xff]
    %v552 = vld [vmem:[#allocation8 + $0x678] sm:$0xff]
    %v553 = vld [vmem:[#allocation8 + $0x680] sm:$0xff]
    %v554 = vld [vmem:[#allocation8 + $0x688] sm:$0xff]
    %v555 = vld [vmem:[#allocation8 + $0x690] sm:$0xff]
    %v556 = vld [vmem:[#allocation8 + $0x698] sm:$0xff]
    %v557 = vld [vmem:[#allocation8 + $0x6a0] sm:$0xff]
    %v558 = vld [vmem:[#allocation8 + $0x6a8] sm:$0xff]
    %v559 = vld [vmem:[#allocation8 + $0x6b0] sm:$0xff]
    %v560 = vld [vmem:[#allocation8 + $0x6b8] sm:$0xff]
    %v561 = vld [vmem:[#allocation8 + $0x6c0] sm:$0xff]
    %v562 = vld [vmem:[#allocation8 + $0x6c8] sm:$0xff]
    %v563 = vld [vmem:[#allocation8 + $0x6d0] sm:$0xff]
    %v564 = vld [vmem:[#allocation8 + $0x6d8] sm:$0xff]
    %v565 = vld [vmem:[#allocation8 + $0x6e0] sm:$0xff]
    %v566 = vld [vmem:[#allocation8 + $0x6e8] sm:$0xff]
    %v567 = vld [vmem:[#allocation8 + $0x6f0] sm:$0xff]
    %v568 = vld [vmem:[#allocation8 + $0x6f8] sm:$0xff]
    %v569 = vld [vmem:[#allocation8 + $0x700] sm:$0xff]
    %v570 = vld [vmem:[#allocation8 + $0x708] sm:$0xff]
    %v571 = vld [vmem:[#allocation8 + $0x710] sm:$0xff]
    %v572 = vld [vmem:[#allocation8 + $0x718] sm:$0xff]
    %v573 = vld [vmem:[#allocation8 + $0x720] sm:$0xff]
    %v574 = vld [vmem:[#allocation8 + $0x728] sm:$0xff]
    %v575 = vld [vmem:[#allocation8 + $0x730] sm:$0xff]
    %v576 = vld [vmem:[#allocation8 + $0x738] sm:$0xff]
    %v577 = vld [vmem:[#allocation8 + $0x740] sm:$0xff]
    %v578 = vld [vmem:[#allocation8 + $0x748] sm:$0xff]
    %v579 = vld [vmem:[#allocation8 + $0x750] sm:$0xff]
    %v580 = vld [vmem:[#allocation8 + $0x758] sm:$0xff]
    %v581 = vld [vmem:[#allocation8 + $0x760] sm:$0xff]
    %v582 = vld [vmem:[#allocation8 + $0x768] sm:$0xff]
    %v583 = vld [vmem:[#allocation8 + $0x770] sm:$0xff]
    %v584 = vld [vmem:[#allocation8 + $0x778] sm:$0xff]
    %v585 = vld [vmem:[#allocation8 + $0x780] sm:$0xff]
    %v586 = vld [vmem:[#allocation8 + $0x788] sm:$0xff]
    %v587 = vld [vmem:[#allocation8 + $0x790] sm:$0xff]
    %v588 = vld [vmem:[#allocation8 + $0x798] sm:$0xff]
    %v589 = vld [vmem:[#allocation8 + $0x7a0] sm:$0xff]
    %v590 = vld [vmem:[#allocation8 + $0x7a8] sm:$0xff]
    %v591 = vld [vmem:[#allocation8 + $0x7b0] sm:$0xff]
    %v592 = vld [vmem:[#allocation8 + $0x7b8] sm:$0xff]
    %v593 = vld [vmem:[#allocation8 + $0x7c0] sm:$0xff]
    %v594 = vld [vmem:[#allocation8 + $0x7c8] sm:$0xff]
    %v595 = vld [vmem:[#allocation8 + $0x7d0] sm:$0xff]
    %v596 = vld [vmem:[#allocation8 + $0x7d8] sm:$0xff]
    %v597 = vld [vmem:[#allocation8 + $0x7e0] sm:$0xff]
    %v598 = vld [vmem:[#allocation8 + $0x7e8] sm:$0xff]
    %v599 = vld [vmem:[#allocation8 + $0x7f0] sm:$0xff]
    %v600 = vld [vmem:[#allocation8 + $0x7f8] sm:$0xff]
    %v601 = vld [vmem:[#allocation8 + $0x800] sm:$0xff]
    %v602 = vld [vmem:[#allocation8 + $0x808] sm:$0xff]
    %v603 = vld [vmem:[#allocation8 + $0x810] sm:$0xff]
    %v604 = vld [vmem:[#allocation8 + $0x818] sm:$0xff]
    %v605 = vld [vmem:[#allocation8 + $0x820] sm:$0xff]
    %v606 = vld [vmem:[#allocation8 + $0x828] sm:$0xff]
    %v607 = vld [vmem:[#allocation8 + $0x830] sm:$0xff]
    %v608 = vld [vmem:[#allocation8 + $0x838] sm:$0xff]
    %v609 = vld [vmem:[#allocation8 + $0x840] sm:$0xff]
    %v610 = vld [vmem:[#allocation8 + $0x848] sm:$0xff]
    %v611 = vld [vmem:[#allocation8 + $0x850] sm:$0xff]
    %v612 = vld [vmem:[#allocation8 + $0x858] sm:$0xff]
    %v613 = vld [vmem:[#allocation8 + $0x860] sm:$0xff]
    %v614 = vld [vmem:[#allocation8 + $0x868] sm:$0xff]
    %v615 = vld [vmem:[#allocation8 + $0x870] sm:$0xff]
    %v616 = vld [vmem:[#allocation8 + $0x878] sm:$0xff]
    %v617 = vld [vmem:[#allocation8 + $0x880] sm:$0xff]
    %v618 = vld [vmem:[#allocation8 + $0x888] sm:$0xff]
    %v619 = vld [vmem:[#allocation8 + $0x890] sm:$0xff]
    %v620 = vld [vmem:[#allocation8 + $0x898] sm:$0xff]
    %v621 = vld [vmem:[#allocation8 + $0x8a0] sm:$0xff]
    %v622 = vld [vmem:[#allocation8 + $0x8a8] sm:$0xff]
    %v623 = vld [vmem:[#allocation8 + $0x8b0] sm:$0xff]
    %v624 = vld [vmem:[#allocation8 + $0x8b8] sm:$0xff]
    %v625 = vld [vmem:[#allocation8 + $0x8c0] sm:$0xff]
    %v626 = vld [vmem:[#allocation8 + $0x8c8] sm:$0xff]
    %v627 = vld [vmem:[#allocation8 + $0x8d0] sm:$0xff]
    %v628 = vld [vmem:[#allocation8 + $0x8d8] sm:$0xff]
    %v629 = vld [vmem:[#allocation8 + $0x8e0] sm:$0xff]
    %v630 = vld [vmem:[#allocation8 + $0x8e8] sm:$0xff]
    %v631 = vld [vmem:[#allocation8 + $0x8f0] sm:$0xff]
    %v632 = vld [vmem:[#allocation8 + $0x8f8] sm:$0xff]
    %v633 = vld [vmem:[#allocation8 + $0x900] sm:$0xff]
    %v634 = vld [vmem:[#allocation8 + $0x908] sm:$0xff]
    %v635 = vld [vmem:[#allocation8 + $0x910] sm:$0xff]
    %v636 = vld [vmem:[#allocation8 + $0x918] sm:$0xff]
    %v637 = vld [vmem:[#allocation8 + $0x920] sm:$0xff]
    %v638 = vld [vmem:[#allocation8 + $0x928] sm:$0xff]
    %v639 = vld [vmem:[#allocation8 + $0x930] sm:$0xff]
    %v640 = vld [vmem:[#allocation8 + $0x938] sm:$0xff]
    %v641 = vld [vmem:[#allocation8 + $0x940] sm:$0xff]
    %v642 = vld [vmem:[#allocation8 + $0x948] sm:$0xff]
    %v643 = vld [vmem:[#allocation8 + $0x950] sm:$0xff]
    %v644 = vld [vmem:[#allocation8 + $0x958] sm:$0xff]
    %v645 = vld [vmem:[#allocation8 + $0x960] sm:$0xff]
    %v646 = vld [vmem:[#allocation8 + $0x968] sm:$0xff]
    %v647 = vld [vmem:[#allocation8 + $0x970] sm:$0xff]
    %v648 = vld [vmem:[#allocation8 + $0x978] sm:$0xff]
    %v649 = vld [vmem:[#allocation8 + $0x980] sm:$0xff]
    %v650 = vld [vmem:[#allocation8 + $0x988] sm:$0xff]
    %v651 = vld [vmem:[#allocation8 + $0x990] sm:$0xff]
    %v652 = vld [vmem:[#allocation8 + $0x998] sm:$0xff]
    %v653 = vld [vmem:[#allocation8 + $0x9a0] sm:$0xff]
    %v654 = vld [vmem:[#allocation8 + $0x9a8] sm:$0xff]
    %v655 = vld [vmem:[#allocation8 + $0x9b0] sm:$0xff]
    %v656 = vld [vmem:[#allocation8 + $0x9b8] sm:$0xff]
    %v657 = vld [vmem:[#allocation8 + $0x9c0] sm:$0xff]
    %v658 = vld [vmem:[#allocation8 + $0x9c8] sm:$0xff]
    %v659 = vld [vmem:[#allocation8 + $0x9d0] sm:$0xff]
    %v660 = vld [vmem:[#allocation8 + $0x9d8] sm:$0xff]
    %v661 = vld [vmem:[#allocation8 + $0x9e0] sm:$0xff]
    %v662 = vld [vmem:[#allocation8 + $0x9e8] sm:$0xff]
    %v663 = vld [vmem:[#allocation8 + $0x9f0] sm:$0xff]
    %v664 = vld [vmem:[#allocation8 + $0x9f8] sm:$0xff]
    %v665 = vld [vmem:[#allocation8 + $0xa00] sm:$0xff]
    %v666 = vld [vmem:[#allocation8 + $0xa08] sm:$0xff]
    %v667 = vld [vmem:[#allocation8 + $0xa10] sm:$0xff]
    %v668 = vld [vmem:[#allocation8 + $0xa18] sm:$0xff]
    %v669 = vld [vmem:[#allocation8 + $0xa20] sm:$0xff]
    %v670 = vld [vmem:[#allocation8 + $0xa28] sm:$0xff]
    %v671 = vld [vmem:[#allocation8 + $0xa30] sm:$0xff]
    %v672 = vld [vmem:[#allocation8 + $0xa38] sm:$0xff]
    %v673 = vld [vmem:[#allocation8 + $0xa40] sm:$0xff]
    %v674 = vld [vmem:[#allocation8 + $0xa48] sm:$0xff]
    %v675 = vld [vmem:[#allocation8 + $0xa50] sm:$0xff]
    %v676 = vld [vmem:[#allocation8 + $0xa58] sm:$0xff]
    %v677 = vld [vmem:[#allocation8 + $0xa60] sm:$0xff]
    %v678 = vld [vmem:[#allocation8 + $0xa68] sm:$0xff]
    %v679 = vld [vmem:[#allocation8 + $0xa70] sm:$0xff]
    %v680 = vld [vmem:[#allocation8 + $0xa78] sm:$0xff]
    %v681 = vld [vmem:[#allocation8 + $0xa80] sm:$0xff]
    %v682 = vld [vmem:[#allocation8 + $0xa88] sm:$0xff]
    %v683 = vld [vmem:[#allocation8 + $0xa90] sm:$0xff]
    %v684 = vld [vmem:[#allocation8 + $0xa98] sm:$0xff]
    %v685 = vld [vmem:[#allocation8 + $0xaa0] sm:$0xff]
    %v686 = vld [vmem:[#allocation8 + $0xaa8] sm:$0xff]
    %v687 = vld [vmem:[#allocation8 + $0xab0] sm:$0xff]
    %v688 = vld [vmem:[#allocation8 + $0xab8] sm:$0xff]
    %v689 = vld [vmem:[#allocation8 + $0xac0] sm:$0xff]
    %v690 = vld [vmem:[#allocation8 + $0xac8] sm:$0xff]
    %v691 = vld [vmem:[#allocation8 + $0xad0] sm:$0xff]
    %v692 = vld [vmem:[#allocation8 + $0xad8] sm:$0xff]
    %v693 = vld [vmem:[#allocation8 + $0xae0] sm:$0xff]
    %v694 = vld [vmem:[#allocation8 + $0xae8] sm:$0xff]
    %v695 = vld [vmem:[#allocation8 + $0xaf0] sm:$0xff]
    %v696 = vld [vmem:[#allocation8 + $0xaf8] sm:$0xff]
    %v697 = vld [vmem:[#allocation8 + $0xb00] sm:$0xff]
    %v698 = vld [vmem:[#allocation8 + $0xb08] sm:$0xff]
    %v699 = vld [vmem:[#allocation8 + $0xb10] sm:$0xff]
    %v700 = vld [vmem:[#allocation8 + $0xb18] sm:$0xff]
    %v701 = vld [vmem:[#allocation8 + $0xb20] sm:$0xff]
    %v702 = vld [vmem:[#allocation8 + $0xb28] sm:$0xff]
    %v703 = vld [vmem:[#allocation8 + $0xb30] sm:$0xff]
    %v704 = vld [vmem:[#allocation8 + $0xb38] sm:$0xff]
    %v705 = vld [vmem:[#allocation8 + $0xb40] sm:$0xff]
    %v706 = vld [vmem:[#allocation8 + $0xb48] sm:$0xff]
    %v707 = vld [vmem:[#allocation8 + $0xb50] sm:$0xff]
    %v708 = vld [vmem:[#allocation8 + $0xb58] sm:$0xff]
    %v709 = vld [vmem:[#allocation8 + $0xb60] sm:$0xff]
    %v710 = vld [vmem:[#allocation8 + $0xb68] sm:$0xff]
    %v711 = vld [vmem:[#allocation8 + $0xb70] sm:$0xff]
    %v712 = vld [vmem:[#allocation8 + $0xb78] sm:$0xff]
    %v713 = vld [vmem:[#allocation8 + $0xb80] sm:$0xff]
    %v714 = vld [vmem:[#allocation8 + $0xb88] sm:$0xff]
    %v715 = vld [vmem:[#allocation8 + $0xb90] sm:$0xff]
    %v716 = vld [vmem:[#allocation8 + $0xb98] sm:$0xff]
    %v717 = vld [vmem:[#allocation8 + $0xba0] sm:$0xff]
    %v718 = vld [vmem:[#allocation8 + $0xba8] sm:$0xff]
    %v719 = vld [vmem:[#allocation8 + $0xbb0] sm:$0xff]
    %v720 = vld [vmem:[#allocation8 + $0xbb8] sm:$0xff]
    %v721 = vld [vmem:[#allocation8 + $0xbc0] sm:$0xff]
    %v722 = vld [vmem:[#allocation8 + $0xbc8] sm:$0xff]
    %v723 = vld [vmem:[#allocation8 + $0xbd0] sm:$0xff]
    %v724 = vld [vmem:[#allocation8 + $0xbd8] sm:$0xff]
    %v725 = vld [vmem:[#allocation8 + $0xbe0] sm:$0xff]
    %v726 = vld [vmem:[#allocation8 + $0xbe8] sm:$0xff]
    %v727 = vld [vmem:[#allocation8 + $0xbf0] sm:$0xff]
    %v728 = vld [vmem:[#allocation8 + $0xbf8] sm:$0xff]
    %v729 = vld [vmem:[#allocation8 + $0xc00] sm:$0xff]
    %v730 = vld [vmem:[#allocation8 + $0xc08] sm:$0xff]
    %v731 = vld [vmem:[#allocation8 + $0xc10] sm:$0xff]
    %v732 = vld [vmem:[#allocation8 + $0xc18] sm:$0xff]
    %v733 = vld [vmem:[#allocation8 + $0xc20] sm:$0xff]
    %v734 = vld [vmem:[#allocation8 + $0xc28] sm:$0xff]
    %v735 = vld [vmem:[#allocation8 + $0xc30] sm:$0xff]
    %v736 = vld [vmem:[#allocation8 + $0xc38] sm:$0xff]
    %v737 = vld [vmem:[#allocation8 + $0xc40] sm:$0xff]
    %v738 = vld [vmem:[#allocation8 + $0xc48] sm:$0xff]
    %v739 = vld [vmem:[#allocation8 + $0xc50] sm:$0xff]
    %v740 = vld [vmem:[#allocation8 + $0xc58] sm:$0xff]
    %v741 = vld [vmem:[#allocation8 + $0xc60] sm:$0xff]
    %v742 = vld [vmem:[#allocation8 + $0xc68] sm:$0xff]
    %v743 = vld [vmem:[#allocation8 + $0xc70] sm:$0xff]
    %v744 = vld [vmem:[#allocation8 + $0xc78] sm:$0xff]
    %v745 = vld [vmem:[#allocation8 + $0xc80] sm:$0xff]
    %v746 = vld [vmem:[#allocation8 + $0xc88] sm:$0xff]
    %v747 = vld [vmem:[#allocation8 + $0xc90] sm:$0xff]
    %v748 = vld [vmem:[#allocation8 + $0xc98] sm:$0xff]
    %v749 = vld [vmem:[#allocation8 + $0xca0] sm:$0xff]
    %v750 = vld [vmem:[#allocation8 + $0xca8] sm:$0xff]
    %v751 = vld [vmem:[#allocation8 + $0xcb0] sm:$0xff]
    %v752 = vld [vmem:[#allocation8 + $0xcb8] sm:$0xff]
    %v753 = vld [vmem:[#allocation8 + $0xcc0] sm:$0xff]
    %v754 = vld [vmem:[#allocation8 + $0xcc8] sm:$0xff]
    %v755 = vld [vmem:[#allocation8 + $0xcd0] sm:$0xff]
    %v756 = vld [vmem:[#allocation8 + $0xcd8] sm:$0xff]
    %v757 = vld [vmem:[#allocation8 + $0xce0] sm:$0xff]
    %v758 = vld [vmem:[#allocation8 + $0xce8] sm:$0xff]
    %v759 = vld [vmem:[#allocation8 + $0xcf0] sm:$0xff]
    %v760 = vld [vmem:[#allocation8 + $0xcf8] sm:$0xff]
    %v761 = vld [vmem:[#allocation8 + $0xd00] sm:$0xff]
    %v762 = vld [vmem:[#allocation8 + $0xd08] sm:$0xff]
    %v763 = vld [vmem:[#allocation8 + $0xd10] sm:$0xff]
    %v764 = vld [vmem:[#allocation8 + $0xd18] sm:$0xff]
    %v765 = vld [vmem:[#allocation8 + $0xd20] sm:$0xff]
    %v766 = vld [vmem:[#allocation8 + $0xd28] sm:$0xff]
    %v767 = vld [vmem:[#allocation8 + $0xd30] sm:$0xff]
    %v768 = vld [vmem:[#allocation8 + $0xd38] sm:$0xff]
    %v769 = vld [vmem:[#allocation8 + $0xd40] sm:$0xff]
    %v770 = vld [vmem:[#allocation8 + $0xd48] sm:$0xff]
    %v771 = vld [vmem:[#allocation8 + $0xd50] sm:$0xff]
    %v772 = vld [vmem:[#allocation8 + $0xd58] sm:$0xff]
    %v773 = vld [vmem:[#allocation8 + $0xd60] sm:$0xff]
    %v774 = vld [vmem:[#allocation8 + $0xd68] sm:$0xff]
    %v775 = vld [vmem:[#allocation8 + $0xd70] sm:$0xff]
    %v776 = vld [vmem:[#allocation8 + $0xd78] sm:$0xff]
    %v777 = vld [vmem:[#allocation8 + $0xd80] sm:$0xff]
    %v778 = vld [vmem:[#allocation8 + $0xd88] sm:$0xff]
    %v779 = vld [vmem:[#allocation8 + $0xd90] sm:$0xff]
    %v780 = vld [vmem:[#allocation8 + $0xd98] sm:$0xff]
    %v781 = vld [vmem:[#allocation8 + $0xda0] sm:$0xff]
    %v782 = vld [vmem:[#allocation8 + $0xda8] sm:$0xff]
    %v783 = vld [vmem:[#allocation8 + $0xdb0] sm:$0xff]
    %v784 = vld [vmem:[#allocation8 + $0xdb8] sm:$0xff]
    %v785 = vld [vmem:[#allocation8 + $0xdc0] sm:$0xff]
    %v786 = vld [vmem:[#allocation8 + $0xdc8] sm:$0xff]
    %v787 = vld [vmem:[#allocation8 + $0xdd0] sm:$0xff]
    %v788 = vld [vmem:[#allocation8 + $0xdd8] sm:$0xff]
    %v789 = vld [vmem:[#allocation8 + $0xde0] sm:$0xff]
    %v790 = vld [vmem:[#allocation8 + $0xde8] sm:$0xff]
    %v791 = vld [vmem:[#allocation8 + $0xdf0] sm:$0xff]
    %v792 = vld [vmem:[#allocation8 + $0xdf8] sm:$0xff]
    %v793 = vld [vmem:[#allocation8 + $0xe00] sm:$0xff]
    %v794 = vld [vmem:[#allocation8 + $0xe08] sm:$0xff]
    %v795 = vld [vmem:[#allocation8 + $0xe10] sm:$0xff]
    %v796 = vld [vmem:[#allocation8 + $0xe18] sm:$0xff]
    %v797 = vld [vmem:[#allocation8 + $0xe20] sm:$0xff]
    %v798 = vld [vmem:[#allocation8 + $0xe28] sm:$0xff]
    %v799 = vld [vmem:[#allocation8 + $0xe30] sm:$0xff]
    %v800 = vld [vmem:[#allocation8 + $0xe38] sm:$0xff]
    %v801 = vld [vmem:[#allocation8 + $0xe40] sm:$0xff]
    %v802 = vld [vmem:[#allocation8 + $0xe48] sm:$0xff]
    %v803 = vld [vmem:[#allocation8 + $0xe50] sm:$0xff]
    %v804 = vld [vmem:[#allocation8 + $0xe58] sm:$0xff]
    %v805 = vld [vmem:[#allocation8 + $0xe60] sm:$0xff]
    %v806 = vld [vmem:[#allocation8 + $0xe68] sm:$0xff]
    %v807 = vld [vmem:[#allocation8 + $0xe70] sm:$0xff]
    %v808 = vld [vmem:[#allocation8 + $0xe78] sm:$0xff]
    %v809 = vld [vmem:[#allocation8 + $0xe80] sm:$0xff]
    %v810 = vld [vmem:[#allocation8 + $0xe88] sm:$0xff]
    %v811 = vld [vmem:[#allocation8 + $0xe90] sm:$0xff]
    %v812 = vld [vmem:[#allocation8 + $0xe98] sm:$0xff]
    %v813 = vld [vmem:[#allocation8 + $0xea0] sm:$0xff]
    %v814 = vld [vmem:[#allocation8 + $0xea8] sm:$0xff]
    %v815 = vld [vmem:[#allocation8 + $0xeb0] sm:$0xff]
    %v816 = vld [vmem:[#allocation8 + $0xeb8] sm:$0xff]
    %v817 = vld [vmem:[#allocation8 + $0xec0] sm:$0xff]
    %v818 = vld [vmem:[#allocation8 + $0xec8] sm:$0xff]
    %v819 = vld [vmem:[#allocation8 + $0xed0] sm:$0xff]
    %v820 = vld [vmem:[#allocation8 + $0xed8] sm:$0xff]
    %v821 = vld [vmem:[#allocation8 + $0xee0] sm:$0xff]
    %v822 = vld [vmem:[#allocation8 + $0xee8] sm:$0xff]
    %v823 = vld [vmem:[#allocation8 + $0xef0] sm:$0xff]
    %v824 = vld [vmem:[#allocation8 + $0xef8] sm:$0xff]
    %v825 = vld [vmem:[#allocation8 + $0xf00] sm:$0xff]
    %v826 = vld [vmem:[#allocation8 + $0xf08] sm:$0xff]
    %v827 = vld [vmem:[#allocation8 + $0xf10] sm:$0xff]
    %v828 = vld [vmem:[#allocation8 + $0xf18] sm:$0xff]
    %v829 = vld [vmem:[#allocation8 + $0xf20] sm:$0xff]
    %v830 = vld [vmem:[#allocation8 + $0xf28] sm:$0xff]
    %v831 = vld [vmem:[#allocation8 + $0xf30] sm:$0xff]
    %v832 = vld [vmem:[#allocation8 + $0xf38] sm:$0xff]
    %v833 = vld [vmem:[#allocation8 + $0xf40] sm:$0xff]
    %v834 = vld [vmem:[#allocation8 + $0xf48] sm:$0xff]
    %v835 = vld [vmem:[#allocation8 + $0xf50] sm:$0xff]
    %v836 = vld [vmem:[#allocation8 + $0xf58] sm:$0xff]
    %v837 = vld [vmem:[#allocation8 + $0xf60] sm:$0xff]
    %v838 = vld [vmem:[#allocation8 + $0xf68] sm:$0xff]
    %v839 = vld [vmem:[#allocation8 + $0xf70] sm:$0xff]
    %v840 = vld [vmem:[#allocation8 + $0xf78] sm:$0xff]
    %v841 = vld [vmem:[#allocation8 + $0xf80] sm:$0xff]
    %v842 = vld [vmem:[#allocation8 + $0xf88] sm:$0xff]
    %v843 = vld [vmem:[#allocation8 + $0xf90] sm:$0xff]
    %v844 = vld [vmem:[#allocation8 + $0xf98] sm:$0xff]
    %v845 = vld [vmem:[#allocation8 + $0xfa0] sm:$0xff]
    %v846 = vld [vmem:[#allocation8 + $0xfa8] sm:$0xff]
    %v847 = vld [vmem:[#allocation8 + $0xfb0] sm:$0xff]
    %v848 = vld [vmem:[#allocation8 + $0xfb8] sm:$0xff]
    %v849 = vld [vmem:[#allocation8 + $0xfc0] sm:$0xff]
    %v850 = vld [vmem:[#allocation8 + $0xfc8] sm:$0xff]
    %v851 = vld [vmem:[#allocation8 + $0xfd0] sm:$0xff]
    %v852 = vld [vmem:[#allocation8 + $0xfd8] sm:$0xff]
    %v853 = vld [vmem:[#allocation8 + $0xfe0] sm:$0xff]
    %v854 = vld [vmem:[#allocation8 + $0xfe8] sm:$0xff]
    %v855 = vld [vmem:[#allocation8 + $0xff0] sm:$0xff]
    %v856 = vld [vmem:[#allocation8 + $0xff8] sm:$0xff]
    %v857 = vld [vmem:[#allocation8 + $0x1000] sm:$0xff]
    %v858 = vld [vmem:[#allocation8 + $0x1008] sm:$0xff]
    %v859 = vld [vmem:[#allocation8 + $0x1010] sm:$0xff]
    %v860 = vld [vmem:[#allocation8 + $0x1018] sm:$0xff]
    %v861 = vld [vmem:[#allocation8 + $0x1020] sm:$0xff]
    %v862 = vld [vmem:[#allocation8 + $0x1028] sm:$0xff]
    %v863 = vld [vmem:[#allocation8 + $0x1030] sm:$0xff]
    %v864 = vld [vmem:[#allocation8 + $0x1038] sm:$0xff]
    %v865 = vld [vmem:[#allocation8 + $0x1040] sm:$0xff]
    %v866 = vld [vmem:[#allocation8 + $0x1048] sm:$0xff]
    %v867 = vld [vmem:[#allocation8 + $0x1050] sm:$0xff]
    %v868 = vld [vmem:[#allocation8 + $0x1058] sm:$0xff]
    %v869 = vld [vmem:[#allocation8 + $0x1060] sm:$0xff]
    %v870 = vld [vmem:[#allocation8 + $0x1068] sm:$0xff]
    %v871 = vld [vmem:[#allocation8 + $0x1070] sm:$0xff]
    %v872 = vld [vmem:[#allocation8 + $0x1078] sm:$0xff]
    %v873 = vld [vmem:[#allocation8 + $0x1080] sm:$0xff]
    %v874 = vld [vmem:[#allocation8 + $0x1088] sm:$0xff]
    %v875 = vld [vmem:[#allocation8 + $0x1090] sm:$0xff]
    %v876 = vld [vmem:[#allocation8 + $0x1098] sm:$0xff]
    %v877 = vld [vmem:[#allocation8 + $0x10a0] sm:$0xff]
    %v878 = vld [vmem:[#allocation8 + $0x10a8] sm:$0xff]
    %v879 = vld [vmem:[#allocation8 + $0x10b0] sm:$0xff]
    %v880 = vld [vmem:[#allocation8 + $0x10b8] sm:$0xff]
    %v881 = vld [vmem:[#allocation8 + $0x10c0] sm:$0xff]
    %v882 = vld [vmem:[#allocation8 + $0x10c8] sm:$0xff]
    %v883 = vld [vmem:[#allocation8 + $0x10d0] sm:$0xff]
    %v884 = vld [vmem:[#allocation8 + $0x10d8] sm:$0xff]
    %v885 = vld [vmem:[#allocation8 + $0x10e0] sm:$0xff]
    %v886 = vld [vmem:[#allocation8 + $0x10e8] sm:$0xff]
    %v887 = vld [vmem:[#allocation8 + $0x10f0] sm:$0xff]
    %v888 = vld [vmem:[#allocation8 + $0x10f8] sm:$0xff]
    %v889 = vld [vmem:[#allocation8 + $0x1100] sm:$0xff]
    %v890 = vld [vmem:[#allocation8 + $0x1108] sm:$0xff]
    %v891 = vld [vmem:[#allocation8 + $0x1110] sm:$0xff]
    %v892 = vld [vmem:[#allocation8 + $0x1118] sm:$0xff]
    %v893 = vld [vmem:[#allocation8 + $0x1120] sm:$0xff]
    %v894 = vld [vmem:[#allocation8 + $0x1128] sm:$0xff]
    %v895 = vld [vmem:[#allocation8 + $0x1130] sm:$0xff]
    %v896 = vld [vmem:[#allocation8 + $0x1138] sm:$0xff]
    %v897 = vld [vmem:[#allocation8 + $0x1140] sm:$0xff]
    %v898 = vld [vmem:[#allocation8 + $0x1148] sm:$0xff]
    %v899 = vld [vmem:[#allocation8 + $0x1150] sm:$0xff]
    %v900 = vld [vmem:[#allocation8 + $0x1158] sm:$0xff]
    %v901 = vld [vmem:[#allocation8 + $0x1160] sm:$0xff]
    %v902 = vld [vmem:[#allocation8 + $0x1168] sm:$0xff]
    %v903 = vld [vmem:[#allocation8 + $0x1170] sm:$0xff]
    %v904 = vld [vmem:[#allocation8 + $0x1178] sm:$0xff]
    %v905 = vld [vmem:[#allocation8 + $0x1180] sm:$0xff]
    %v906 = vld [vmem:[#allocation8 + $0x1188] sm:$0xff]
    %v907 = vld [vmem:[#allocation8 + $0x1190] sm:$0xff]
    %v908 = vld [vmem:[#allocation8 + $0x1198] sm:$0xff]
    %v909 = vld [vmem:[#allocation8 + $0x11a0] sm:$0xff]
    %v910 = vld [vmem:[#allocation8 + $0x11a8] sm:$0xff]
    %v911 = vld [vmem:[#allocation8 + $0x11b0] sm:$0xff]
    %v912 = vld [vmem:[#allocation8 + $0x11b8] sm:$0xff]
    %v913 = vld [vmem:[#allocation8 + $0x11c0] sm:$0xff]
    %v914 = vld [vmem:[#allocation8 + $0x11c8] sm:$0xff]
    %v915 = vld [vmem:[#allocation8 + $0x11d0] sm:$0xff]
    %v916 = vld [vmem:[#allocation8 + $0x11d8] sm:$0xff]
    %v917 = vld [vmem:[#allocation8 + $0x11e0] sm:$0xff]
    %v918 = vld [vmem:[#allocation8 + $0x11e8] sm:$0xff]
    %v919 = vld [vmem:[#allocation8 + $0x11f0] sm:$0xff]
    %v920 = vld [vmem:[#allocation8 + $0x11f8] sm:$0xff]
    %v921 = vld [vmem:[#allocation8 + $0x1200] sm:$0xff]
    %v922 = vld [vmem:[#allocation8 + $0x1208] sm:$0xff]
    %v923 = vld [vmem:[#allocation8 + $0x1210] sm:$0xff]
    %v924 = vld [vmem:[#allocation8 + $0x1218] sm:$0xff]
    %v925 = vld [vmem:[#allocation8 + $0x1220] sm:$0xff]
    %v926 = vld [vmem:[#allocation8 + $0x1228] sm:$0xff]
    %v927 = vld [vmem:[#allocation8 + $0x1230] sm:$0xff]
    %v928 = vld [vmem:[#allocation8 + $0x1238] sm:$0xff]
    %v929 = vld [vmem:[#allocation8 + $0x1240] sm:$0xff]
    %v930 = vld [vmem:[#allocation8 + $0x1248] sm:$0xff]
    %v931 = vld [vmem:[#allocation8 + $0x1250] sm:$0xff]
    %v932 = vld [vmem:[#allocation8 + $0x1258] sm:$0xff]
    %v933 = vld [vmem:[#allocation8 + $0x1260] sm:$0xff]
    %v934 = vld [vmem:[#allocation8 + $0x1268] sm:$0xff]
    %v935 = vld [vmem:[#allocation8 + $0x1270] sm:$0xff]
    %v936 = vld [vmem:[#allocation8 + $0x1278] sm:$0xff]
    %v937 = vld [vmem:[#allocation8 + $0x1280] sm:$0xff]
    %v938 = vld [vmem:[#allocation8 + $0x1288] sm:$0xff]
    %v939 = vld [vmem:[#allocation8 + $0x1290] sm:$0xff]
    %v940 = vld [vmem:[#allocation8 + $0x1298] sm:$0xff]
    %v941 = vld [vmem:[#allocation8 + $0x12a0] sm:$0xff]
    %v942 = vld [vmem:[#allocation8 + $0x12a8] sm:$0xff]
    %v943 = vld [vmem:[#allocation8 + $0x12b0] sm:$0xff]
    %v944 = vld [vmem:[#allocation8 + $0x12b8] sm:$0xff]
    %v945 = vld [vmem:[#allocation8 + $0x12c0] sm:$0xff]
    %v946 = vld [vmem:[#allocation8 + $0x12c8] sm:$0xff]
    %v947 = vld [vmem:[#allocation8 + $0x12d0] sm:$0xff]
    %v948 = vld [vmem:[#allocation8 + $0x12d8] sm:$0xff]
    %v949 = vld [vmem:[#allocation8 + $0x12e0] sm:$0xff]
    %v950 = vld [vmem:[#allocation8 + $0x12e8] sm:$0xff]
    %v951 = vld [vmem:[#allocation8 + $0x12f0] sm:$0xff]
    %v952 = vld [vmem:[#allocation8 + $0x12f8] sm:$0xff]
    %v953 = vld [vmem:[#allocation8 + $0x1300] sm:$0xff]
    %v954 = vld [vmem:[#allocation8 + $0x1308] sm:$0xff]
    %v955 = vld [vmem:[#allocation8 + $0x1310] sm:$0xff]
    %v956 = vld [vmem:[#allocation8 + $0x1318] sm:$0xff]
    %v957 = vld [vmem:[#allocation8 + $0x1320] sm:$0xff]
    %v958 = vld [vmem:[#allocation8 + $0x1328] sm:$0xff]
    %v959 = vld [vmem:[#allocation8 + $0x1330] sm:$0xff]
    %v960 = vld [vmem:[#allocation8 + $0x1338] sm:$0xff]
    %v961 = vld [vmem:[#allocation8 + $0x1340] sm:$0xff]
    %v962 = vld [vmem:[#allocation8 + $0x1348] sm:$0xff]
    %v963 = vld [vmem:[#allocation8 + $0x1350] sm:$0xff]
    %v964 = vld [vmem:[#allocation8 + $0x1358] sm:$0xff]
    %v965 = vld [vmem:[#allocation8 + $0x1360] sm:$0xff]
    %v966 = vld [vmem:[#allocation8 + $0x1368] sm:$0xff]
    %v967 = vld [vmem:[#allocation8 + $0x1370] sm:$0xff]
    %v968 = vld [vmem:[#allocation8 + $0x1378] sm:$0xff]
    %v969 = vld [vmem:[#allocation8 + $0x1380] sm:$0xff]
    %v970 = vld [vmem:[#allocation8 + $0x1388] sm:$0xff]
    %v971 = vld [vmem:[#allocation8 + $0x1390] sm:$0xff]
    %v972 = vld [vmem:[#allocation8 + $0x1398] sm:$0xff]
    %v973 = vld [vmem:[#allocation8 + $0x13a0] sm:$0xff]
    %v974 = vld [vmem:[#allocation8 + $0x13a8] sm:$0xff]
    %v975 = vld [vmem:[#allocation8 + $0x13b0] sm:$0xff]
    %v976 = vld [vmem:[#allocation8 + $0x13b8] sm:$0xff]
    %v977 = vld [vmem:[#allocation8 + $0x13c0] sm:$0xff]
    %v978 = vld [vmem:[#allocation8 + $0x13c8] sm:$0xff]
    %v979 = vld [vmem:[#allocation8 + $0x13d0] sm:$0xff]
    %v980 = vld [vmem:[#allocation8 + $0x13d8] sm:$0xff]
    %v981 = vld [vmem:[#allocation8 + $0x13e0] sm:$0xff]
    %v982 = vld [vmem:[#allocation8 + $0x13e8] sm:$0xff]
    %v983 = vld [vmem:[#allocation8 + $0x13f0] sm:$0xff]
    %v984 = vld [vmem:[#allocation8 + $0x13f8] sm:$0xff]
    %v985 = vld [vmem:[#allocation8 + $0x1400] sm:$0xff]
    %v986 = vld [vmem:[#allocation8 + $0x1408] sm:$0xff]
    %v987 = vld [vmem:[#allocation8 + $0x1410] sm:$0xff]
    %v988 = vld [vmem:[#allocation8 + $0x1418] sm:$0xff]
    %v989 = vld [vmem:[#allocation8 + $0x1420] sm:$0xff]
    %v990 = vld [vmem:[#allocation8 + $0x1428] sm:$0xff]
    %v991 = vld [vmem:[#allocation8 + $0x1430] sm:$0xff]
    %v992 = vld [vmem:[#allocation8 + $0x1438] sm:$0xff]
    %v993 = vld [vmem:[#allocation8 + $0x1440] sm:$0xff]
    %v994 = vld [vmem:[#allocation8 + $0x1448] sm:$0xff]
    %v995 = vld [vmem:[#allocation8 + $0x1450] sm:$0xff]
    %v996 = vld [vmem:[#allocation8 + $0x1458] sm:$0xff]
    %v997 = vld [vmem:[#allocation8 + $0x1460] sm:$0xff]
    %v998 = vld [vmem:[#allocation8 + $0x1468] sm:$0xff]
    %v999 = vld [vmem:[#allocation8 + $0x1470] sm:$0xff]
    %v1000 = vld [vmem:[#allocation8 + $0x1478] sm:$0xff]
    %v1001 = vld [vmem:[#allocation8 + $0x1480] sm:$0xff]
    %v1002 = vld [vmem:[#allocation8 + $0x1488] sm:$0xff]
    %v1003 = vld [vmem:[#allocation8 + $0x1490] sm:$0xff]
    %v1004 = vld [vmem:[#allocation8 + $0x1498] sm:$0xff]
    %v1005 = vld [vmem:[#allocation8 + $0x14a0] sm:$0xff]
    %v1006 = vld [vmem:[#allocation8 + $0x14a8] sm:$0xff]
    %v1007 = vld [vmem:[#allocation8 + $0x14b0] sm:$0xff]
    %v1008 = vld [vmem:[#allocation8 + $0x14b8] sm:$0xff]
    %v1009 = vld [vmem:[#allocation8 + $0x14c0] sm:$0xff]
    %v1010 = vld [vmem:[#allocation8 + $0x14c8] sm:$0xff]
    %v1011 = vld [vmem:[#allocation8 + $0x14d0] sm:$0xff]
    %v1012 = vld [vmem:[#allocation8 + $0x14d8] sm:$0xff]
    %v1013 = vld [vmem:[#allocation8 + $0x14e0] sm:$0xff]
    %v1014 = vld [vmem:[#allocation8 + $0x14e8] sm:$0xff]
    %v1015 = vld [vmem:[#allocation8 + $0x14f0] sm:$0xff]
    %v1016 = vld [vmem:[#allocation8 + $0x14f8] sm:$0xff]
    %v1017 = vld [vmem:[#allocation8 + $0x1500] sm:$0xff]
    %v1018 = vld [vmem:[#allocation8 + $0x1508] sm:$0xff]
    %v1019 = vld [vmem:[#allocation8 + $0x1510] sm:$0xff]
    %v1020 = vld [vmem:[#allocation8 + $0x1518] sm:$0xff]
    %v1021 = vld [vmem:[#allocation8 + $0x1520] sm:$0xff]
    %v1022 = vld [vmem:[#allocation8 + $0x1528] sm:$0xff]
    %v1023 = vld [vmem:[#allocation8 + $0x1530] sm:$0xff]
    %v1024 = vld [vmem:[#allocation8 + $0x1538] sm:$0xff]
    %v1025 = vld [vmem:[#allocation8 + $0x1540] sm:$0xff]
    %v1026 = vld [vmem:[#allocation8 + $0x1548] sm:$0xff]
    %v1027 = vld [vmem:[#allocation8 + $0x1550] sm:$0xff]
    %v1028 = vld [vmem:[#allocation8 + $0x1558] sm:$0xff]
    %v1029 = vld [vmem:[#allocation8 + $0x1560] sm:$0xff]
    %v1030 = vld [vmem:[#allocation8 + $0x1568] sm:$0xff]
    %v1031 = vld [vmem:[#allocation8 + $0x1570] sm:$0xff]
    %v1032 = vld [vmem:[#allocation8 + $0x1578] sm:$0xff]
    %v1033 = vld [vmem:[#allocation8 + $0x1580] sm:$0xff]
    %v1034 = vld [vmem:[#allocation8 + $0x1588] sm:$0xff]
    %v1035 = vld [vmem:[#allocation8 + $0x1590] sm:$0xff]
    %v1036 = vld [vmem:[#allocation8 + $0x1598] sm:$0xff]
    %v1037 = vld [vmem:[#allocation8 + $0x15a0] sm:$0xff]
    %v1038 = vld [vmem:[#allocation8 + $0x15a8] sm:$0xff]
    %v1039 = vld [vmem:[#allocation8 + $0x15b0] sm:$0xff]
    %v1040 = vld [vmem:[#allocation8 + $0x15b8] sm:$0xff]
    %v1041 = vld [vmem:[#allocation8 + $0x15c0] sm:$0xff]
    %v1042 = vld [vmem:[#allocation8 + $0x15c8] sm:$0xff]
    %v1043 = vld [vmem:[#allocation8 + $0x15d0] sm:$0xff]
    %v1044 = vld [vmem:[#allocation8 + $0x15d8] sm:$0xff]
    %v1045 = vld [vmem:[#allocation8 + $0x15e0] sm:$0xff]
    %v1046 = vld [vmem:[#allocation8 + $0x15e8] sm:$0xff]
    %v1047 = vld [vmem:[#allocation8 + $0x15f0] sm:$0xff]
    %v1048 = vld [vmem:[#allocation8 + $0x15f8] sm:$0xff]
    %v1049 = vld [vmem:[#allocation8 + $0x1600] sm:$0xff]
    %v1050 = vld [vmem:[#allocation8 + $0x1608] sm:$0xff]
    %v1051 = vld [vmem:[#allocation8 + $0x1610] sm:$0xff]
    %v1052 = vld [vmem:[#allocation8 + $0x1618] sm:$0xff]
    %v1053 = vld [vmem:[#allocation8 + $0x1620] sm:$0xff]
    %v1054 = vld [vmem:[#allocation8 + $0x1628] sm:$0xff]
    %v1055 = vld [vmem:[#allocation8 + $0x1630] sm:$0xff]
    %v1056 = vld [vmem:[#allocation8 + $0x1638] sm:$0xff]
    %v1057 = vld [vmem:[#allocation8 + $0x1640] sm:$0xff]
    %v1058 = vld [vmem:[#allocation8 + $0x1648] sm:$0xff]
    %v1059 = vld [vmem:[#allocation8 + $0x1650] sm:$0xff]
    %v1060 = vld [vmem:[#allocation8 + $0x1658] sm:$0xff]
    %v1061 = vld [vmem:[#allocation8 + $0x1660] sm:$0xff]
    %v1062 = vld [vmem:[#allocation8 + $0x1668] sm:$0xff]
    %v1063 = vld [vmem:[#allocation8 + $0x1670] sm:$0xff]
    %v1064 = vld [vmem:[#allocation8 + $0x1678] sm:$0xff]
    %v1065 = vld [vmem:[#allocation8 + $0x1680] sm:$0xff]
    %v1066 = vld [vmem:[#allocation8 + $0x1688] sm:$0xff]
    %v1067 = vld [vmem:[#allocation8 + $0x1690] sm:$0xff]
    %v1068 = vld [vmem:[#allocation8 + $0x1698] sm:$0xff]
    %v1069 = vld [vmem:[#allocation8 + $0x16a0] sm:$0xff]
    %v1070 = vld [vmem:[#allocation8 + $0x16a8] sm:$0xff]
    %v1071 = vld [vmem:[#allocation8 + $0x16b0] sm:$0xff]
    %v1072 = vld [vmem:[#allocation8 + $0x16b8] sm:$0xff]
    %v1073 = vld [vmem:[#allocation8 + $0x16c0] sm:$0xff]
    %v1074 = vld [vmem:[#allocation8 + $0x16c8] sm:$0xff]
    %v1075 = vld [vmem:[#allocation8 + $0x16d0] sm:$0xff]
    %v1076 = vld [vmem:[#allocation8 + $0x16d8] sm:$0xff]
    %v1077 = vld [vmem:[#allocation8 + $0x16e0] sm:$0xff]
    %v1078 = vld [vmem:[#allocation8 + $0x16e8] sm:$0xff]
    %v1079 = vld [vmem:[#allocation8 + $0x16f0] sm:$0xff]
    %v1080 = vld [vmem:[#allocation8 + $0x16f8] sm:$0xff]
    %v1081 = vld [vmem:[#allocation8 + $0x1700] sm:$0xff]
    %v1082 = vld [vmem:[#allocation8 + $0x1708] sm:$0xff]
    %v1083 = vld [vmem:[#allocation8 + $0x1710] sm:$0xff]
    %v1084 = vld [vmem:[#allocation8 + $0x1718] sm:$0xff]
    %v1085 = vld [vmem:[#allocation8 + $0x1720] sm:$0xff]
    %v1086 = vld [vmem:[#allocation8 + $0x1728] sm:$0xff]
    %v1087 = vld [vmem:[#allocation8 + $0x1730] sm:$0xff]
    %v1088 = vld [vmem:[#allocation8 + $0x1738] sm:$0xff]
    %v1089 = vld [vmem:[#allocation8 + $0x1740] sm:$0xff]
    %v1090 = vld [vmem:[#allocation8 + $0x1748] sm:$0xff]
    %v1091 = vld [vmem:[#allocation8 + $0x1750] sm:$0xff]
    %v1092 = vld [vmem:[#allocation8 + $0x1758] sm:$0xff]
    %v1093 = vld [vmem:[#allocation8 + $0x1760] sm:$0xff]
    %v1094 = vld [vmem:[#allocation8 + $0x1768] sm:$0xff]
    %v1095 = vld [vmem:[#allocation8 + $0x1770] sm:$0xff]
    %v1096 = vld [vmem:[#allocation8 + $0x1778] sm:$0xff]
    %v1097 = vld [vmem:[#allocation8 + $0x1780] sm:$0xff]
    %v1098 = vld [vmem:[#allocation8 + $0x1788] sm:$0xff]
    %v1099 = vld [vmem:[#allocation8 + $0x1790] sm:$0xff]
    %v1100 = vld [vmem:[#allocation8 + $0x1798] sm:$0xff]
    %v1101 = vld [vmem:[#allocation8 + $0x17a0] sm:$0xff]
    %v1102 = vld [vmem:[#allocation8 + $0x17a8] sm:$0xff]
    %v1103 = vld [vmem:[#allocation8 + $0x17b0] sm:$0xff]
    %v1104 = vld [vmem:[#allocation8 + $0x17b8] sm:$0xff]
    %v1105 = vld [vmem:[#allocation8 + $0x17c0] sm:$0xff]
    %v1106 = vld [vmem:[#allocation8 + $0x17c8] sm:$0xff]
    %v1107 = vld [vmem:[#allocation8 + $0x17d0] sm:$0xff]
    %v1108 = vld [vmem:[#allocation8 + $0x17d8] sm:$0xff]
    %v1109 = vld [vmem:[#allocation8 + $0x17e0] sm:$0xff]
    %v1110 = vld [vmem:[#allocation8 + $0x17e8] sm:$0xff]
    %v1111 = vld [vmem:[#allocation8 + $0x17f0] sm:$0xff]
    %v1112 = vld [vmem:[#allocation8 + $0x17f8] sm:$0xff]
    %v1113 = vld [vmem:[#allocation9] sm:$0xff]
    %v1114 = vld [vmem:[#allocation9 + $0x8] sm:$0xff]
    %v1115 = vld [vmem:[#allocation9 + $0x10] sm:$0xff]
    %v1119 = vperm.slane %v1113, 0
    %v1120 = vperm.slane %v1113, 1
    %v1121 = vperm.slane %v1113, 2
    %v1122 = vperm.slane %v1113, 3
    %v1123 = vperm.slane %v1113, 4
    %v1124 = vperm.slane %v1113, 5
    %v1125 = vperm.slane %v1113, 6
    %v1126 = vperm.slane %v1113, 7
    %v1127 = vperm.slane %v1114, 0
    %v1128 = vperm.slane %v1114, 1
    %v1129 = vperm.slane %v1114, 2
    %v1130 = vperm.slane %v1114, 3
    %v1131 = vperm.slane %v1114, 4
    %v1132 = vperm.slane %v1114, 5
    %v1133 = vperm.slane %v1114, 6
    %v1134 = vperm.slane %v1114, 7
    %v1135 = vperm.slane %v1115, 0
    %v1136 = vperm.slane %v1115, 1
    %v1137 = vperm.slane %v1115, 2
    %v1138 = vperm.slane %v1115, 3
    %v1139 = vperm.slane %v1115, 4
    %v1140 = vperm.slane %v1115, 5
    %v1141 = vperm.slane %v1115, 6
    %v1142 = vperm.slane %v1115, 7
    %v1935 = vunpack.c.l.b16 %v345
    %v1936 = vunpack.c.h.b16 %v345
    %v1937 = vunpack.c.l.b16 %v346
    %v1938 = vunpack.c.h.b16 %v346
    %v1939 = vunpack.c.l.b16 %v347
    %v1940 = vunpack.c.h.b16 %v347
    %v1941 = vunpack.c.l.b16 %v348
    %v1942 = vunpack.c.h.b16 %v348
    %v1943 = vunpack.c.l.b16 %v349
    %v1944 = vunpack.c.h.b16 %v349
    %v1945 = vunpack.c.l.b16 %v350
    %v1946 = vunpack.c.h.b16 %v350
    %v1947 = vunpack.c.l.b16 %v351
    %v1948 = vunpack.c.h.b16 %v351
    %v1949 = vunpack.c.l.b16 %v352
    %v1950 = vunpack.c.h.b16 %v352
    %v1951 = vunpack.c.l.b16 %v353
    %v1952 = vunpack.c.h.b16 %v353
    %v1953 = vunpack.c.l.b16 %v354
    %v1954 = vunpack.c.h.b16 %v354
    %v1955 = vunpack.c.l.b16 %v355
    %v1956 = vunpack.c.h.b16 %v355
    %v1957 = vunpack.c.l.b16 %v356
    %v1958 = vunpack.c.h.b16 %v356
    %v1959 = vunpack.c.l.b16 %v357
    %v1960 = vunpack.c.h.b16 %v357
    %v1961 = vunpack.c.l.b16 %v358
    %v1962 = vunpack.c.h.b16 %v358
    %v1963 = vunpack.c.l.b16 %v359
    %v1964 = vunpack.c.h.b16 %v359
    %v1965 = vunpack.c.l.b16 %v360
    %v1966 = vunpack.c.h.b16 %v360
    %v1967 = vunpack.c.l.b16 %v361
    %v1968 = vunpack.c.h.b16 %v361
    %v1969 = vunpack.c.l.b16 %v362
    %v1970 = vunpack.c.h.b16 %v362
    %v1971 = vunpack.c.l.b16 %v363
    %v1972 = vunpack.c.h.b16 %v363
    %v1973 = vunpack.c.l.b16 %v364
    %v1974 = vunpack.c.h.b16 %v364
    %v1975 = vunpack.c.l.b16 %v365
    %v1976 = vunpack.c.h.b16 %v365
    %v1977 = vunpack.c.l.b16 %v366
    %v1978 = vunpack.c.h.b16 %v366
    %v1979 = vunpack.c.l.b16 %v367
    %v1980 = vunpack.c.h.b16 %v367
    %v1981 = vunpack.c.l.b16 %v368
    %v1982 = vunpack.c.h.b16 %v368
    %v1983 = vunpack.c.l.b16 %v369
    %v1984 = vunpack.c.h.b16 %v369
    %v1985 = vunpack.c.l.b16 %v370
    %v1986 = vunpack.c.h.b16 %v370
    %v1987 = vunpack.c.l.b16 %v371
    %v1988 = vunpack.c.h.b16 %v371
    %v1989 = vunpack.c.l.b16 %v372
    %v1990 = vunpack.c.h.b16 %v372
    %v1991 = vunpack.c.l.b16 %v373
    %v1992 = vunpack.c.h.b16 %v373
    %v1993 = vunpack.c.l.b16 %v374
    %v1994 = vunpack.c.h.b16 %v374
    %v1995 = vunpack.c.l.b16 %v375
    %v1996 = vunpack.c.h.b16 %v375
    %v1997 = vunpack.c.l.b16 %v376
    %v1998 = vunpack.c.h.b16 %v376
    %v1999 = vunpack.c.l.b16 %v377
    %v2000 = vunpack.c.h.b16 %v377
    %v2001 = vunpack.c.l.b16 %v378
    %v2002 = vunpack.c.h.b16 %v378
    %v2003 = vunpack.c.l.b16 %v379
    %v2004 = vunpack.c.h.b16 %v379
    %v2005 = vunpack.c.l.b16 %v380
    %v2006 = vunpack.c.h.b16 %v380
    %v2007 = vunpack.c.l.b16 %v381
    %v2008 = vunpack.c.h.b16 %v381
    %v2009 = vunpack.c.l.b16 %v382
    %v2010 = vunpack.c.h.b16 %v382
    %v2011 = vunpack.c.l.b16 %v383
    %v2012 = vunpack.c.h.b16 %v383
    %v2013 = vunpack.c.l.b16 %v384
    %v2014 = vunpack.c.h.b16 %v384
    %v2015 = vunpack.c.l.b16 %v385
    %v2016 = vunpack.c.h.b16 %v385
    %v2017 = vunpack.c.l.b16 %v386
    %v2018 = vunpack.c.h.b16 %v386
    %v2019 = vunpack.c.l.b16 %v387
    %v2020 = vunpack.c.h.b16 %v387
    %v2021 = vunpack.c.l.b16 %v388
    %v2022 = vunpack.c.h.b16 %v388
    %v2023 = vunpack.c.l.b16 %v389
    %v2024 = vunpack.c.h.b16 %v389
    %v2025 = vunpack.c.l.b16 %v390
    %v2026 = vunpack.c.h.b16 %v390
    %v2027 = vunpack.c.l.b16 %v391
    %v2028 = vunpack.c.h.b16 %v391
    %v2029 = vunpack.c.l.b16 %v392
    %v2030 = vunpack.c.h.b16 %v392
    %v2031 = vunpack.c.l.b16 %v393
    %v2032 = vunpack.c.h.b16 %v393
    %v2033 = vunpack.c.l.b16 %v394
    %v2034 = vunpack.c.h.b16 %v394
    %v2035 = vunpack.c.l.b16 %v395
    %v2036 = vunpack.c.h.b16 %v395
    %v2037 = vunpack.c.l.b16 %v396
    %v2038 = vunpack.c.h.b16 %v396
    %v2039 = vunpack.c.l.b16 %v397
    %v2040 = vunpack.c.h.b16 %v397
    %v2041 = vunpack.c.l.b16 %v398
    %v2042 = vunpack.c.h.b16 %v398
    %v2043 = vunpack.c.l.b16 %v399
    %v2044 = vunpack.c.h.b16 %v399
    %v2045 = vunpack.c.l.b16 %v400
    %v2046 = vunpack.c.h.b16 %v400
    %v2047 = vunpack.c.l.b16 %v401
    %v2048 = vunpack.c.h.b16 %v401
    %v2049 = vunpack.c.l.b16 %v402
    %v2050 = vunpack.c.h.b16 %v402
    %v2051 = vunpack.c.l.b16 %v403
    %v2052 = vunpack.c.h.b16 %v403
    %v2053 = vunpack.c.l.b16 %v404
    %v2054 = vunpack.c.h.b16 %v404
    %v2055 = vunpack.c.l.b16 %v405
    %v2056 = vunpack.c.h.b16 %v405
    %v2057 = vunpack.c.l.b16 %v406
    %v2058 = vunpack.c.h.b16 %v406
    %v2059 = vunpack.c.l.b16 %v407
    %v2060 = vunpack.c.h.b16 %v407
    %v2061 = vunpack.c.l.b16 %v408
    %v2062 = vunpack.c.h.b16 %v408
    %v2063 = vunpack.c.l.b16 %v409
    %v2064 = vunpack.c.h.b16 %v409
    %v2065 = vunpack.c.l.b16 %v410
    %v2066 = vunpack.c.h.b16 %v410
    %v2067 = vunpack.c.l.b16 %v411
    %v2068 = vunpack.c.h.b16 %v411
    %v2069 = vunpack.c.l.b16 %v412
    %v2070 = vunpack.c.h.b16 %v412
    %v2071 = vunpack.c.l.b16 %v413
    %v2072 = vunpack.c.h.b16 %v413
    %v2073 = vunpack.c.l.b16 %v414
    %v2074 = vunpack.c.h.b16 %v414
    %v2075 = vunpack.c.l.b16 %v415
    %v2076 = vunpack.c.h.b16 %v415
    %v2077 = vunpack.c.l.b16 %v416
    %v2078 = vunpack.c.h.b16 %v416
    %v2079 = vunpack.c.l.b16 %v417
    %v2080 = vunpack.c.h.b16 %v417
    %v2081 = vunpack.c.l.b16 %v418
    %v2082 = vunpack.c.h.b16 %v418
    %v2083 = vunpack.c.l.b16 %v419
    %v2084 = vunpack.c.h.b16 %v419
    %v2085 = vunpack.c.l.b16 %v420
    %v2086 = vunpack.c.h.b16 %v420
    %v2087 = vunpack.c.l.b16 %v421
    %v2088 = vunpack.c.h.b16 %v421
    %v2089 = vunpack.c.l.b16 %v422
    %v2090 = vunpack.c.h.b16 %v422
    %v2091 = vunpack.c.l.b16 %v423
    %v2092 = vunpack.c.h.b16 %v423
    %v2093 = vunpack.c.l.b16 %v424
    %v2094 = vunpack.c.h.b16 %v424
    %v2095 = vunpack.c.l.b16 %v425
    %v2096 = vunpack.c.h.b16 %v425
    %v2097 = vunpack.c.l.b16 %v426
    %v2098 = vunpack.c.h.b16 %v426
    %v2099 = vunpack.c.l.b16 %v427
    %v2100 = vunpack.c.h.b16 %v427
    %v2101 = vunpack.c.l.b16 %v428
    %v2102 = vunpack.c.h.b16 %v428
    %v2103 = vunpack.c.l.b16 %v429
    %v2104 = vunpack.c.h.b16 %v429
    %v2105 = vunpack.c.l.b16 %v430
    %v2106 = vunpack.c.h.b16 %v430
    %v2107 = vunpack.c.l.b16 %v431
    %v2108 = vunpack.c.h.b16 %v431
    %v2109 = vunpack.c.l.b16 %v432
    %v2110 = vunpack.c.h.b16 %v432
    %v2111 = vunpack.c.l.b16 %v433
    %v2112 = vunpack.c.h.b16 %v433
    %v2113 = vunpack.c.l.b16 %v434
    %v2114 = vunpack.c.h.b16 %v434
    %v2115 = vunpack.c.l.b16 %v435
    %v2116 = vunpack.c.h.b16 %v435
    %v2117 = vunpack.c.l.b16 %v436
    %v2118 = vunpack.c.h.b16 %v436
    %v2119 = vunpack.c.l.b16 %v437
    %v2120 = vunpack.c.h.b16 %v437
    %v2121 = vunpack.c.l.b16 %v438
    %v2122 = vunpack.c.h.b16 %v438
    %v2123 = vunpack.c.l.b16 %v439
    %v2124 = vunpack.c.h.b16 %v439
    %v2125 = vunpack.c.l.b16 %v440
    %v2126 = vunpack.c.h.b16 %v440
    %v2127 = vunpack.c.l.b16 %v441
    %v2128 = vunpack.c.h.b16 %v441
    %v2129 = vunpack.c.l.b16 %v442
    %v2130 = vunpack.c.h.b16 %v442
    %v2131 = vunpack.c.l.b16 %v443
    %v2132 = vunpack.c.h.b16 %v443
    %v2133 = vunpack.c.l.b16 %v444
    %v2134 = vunpack.c.h.b16 %v444
    %v2135 = vunpack.c.l.b16 %v445
    %v2136 = vunpack.c.h.b16 %v445
    %v2137 = vunpack.c.l.b16 %v446
    %v2138 = vunpack.c.h.b16 %v446
    %v2139 = vunpack.c.l.b16 %v447
    %v2140 = vunpack.c.h.b16 %v447
    %v2141 = vunpack.c.l.b16 %v448
    %v2142 = vunpack.c.h.b16 %v448
    %v2143 = vunpack.c.l.b16 %v449
    %v2144 = vunpack.c.h.b16 %v449
    %v2145 = vunpack.c.l.b16 %v450
    %v2146 = vunpack.c.h.b16 %v450
    %v2147 = vunpack.c.l.b16 %v451
    %v2148 = vunpack.c.h.b16 %v451
    %v2149 = vunpack.c.l.b16 %v452
    %v2150 = vunpack.c.h.b16 %v452
    %v2151 = vunpack.c.l.b16 %v453
    %v2152 = vunpack.c.h.b16 %v453
    %v2153 = vunpack.c.l.b16 %v454
    %v2154 = vunpack.c.h.b16 %v454
    %v2155 = vunpack.c.l.b16 %v455
    %v2156 = vunpack.c.h.b16 %v455
    %v2157 = vunpack.c.l.b16 %v456
    %v2158 = vunpack.c.h.b16 %v456
    %v2159 = vunpack.c.l.b16 %v457
    %v2160 = vunpack.c.h.b16 %v457
    %v2161 = vunpack.c.l.b16 %v458
    %v2162 = vunpack.c.h.b16 %v458
    %v2163 = vunpack.c.l.b16 %v459
    %v2164 = vunpack.c.h.b16 %v459
    %v2165 = vunpack.c.l.b16 %v460
    %v2166 = vunpack.c.h.b16 %v460
    %v2167 = vunpack.c.l.b16 %v461
    %v2168 = vunpack.c.h.b16 %v461
    %v2169 = vunpack.c.l.b16 %v462
    %v2170 = vunpack.c.h.b16 %v462
    %v2171 = vunpack.c.l.b16 %v463
    %v2172 = vunpack.c.h.b16 %v463
    %v2173 = vunpack.c.l.b16 %v464
    %v2174 = vunpack.c.h.b16 %v464
    %v2175 = vunpack.c.l.b16 %v465
    %v2176 = vunpack.c.h.b16 %v465
    %v2177 = vunpack.c.l.b16 %v466
    %v2178 = vunpack.c.h.b16 %v466
    %v2179 = vunpack.c.l.b16 %v467
    %v2180 = vunpack.c.h.b16 %v467
    %v2181 = vunpack.c.l.b16 %v468
    %v2182 = vunpack.c.h.b16 %v468
    %v2183 = vunpack.c.l.b16 %v469
    %v2184 = vunpack.c.h.b16 %v469
    %v2185 = vunpack.c.l.b16 %v470
    %v2186 = vunpack.c.h.b16 %v470
    %v2187 = vunpack.c.l.b16 %v471
    %v2188 = vunpack.c.h.b16 %v471
    %v2189 = vunpack.c.l.b16 %v472
    %v2190 = vunpack.c.h.b16 %v472
    %v2191 = vunpack.c.l.b16 %v473
    %v2192 = vunpack.c.h.b16 %v473
    %v2193 = vunpack.c.l.b16 %v474
    %v2194 = vunpack.c.h.b16 %v474
    %v2195 = vunpack.c.l.b16 %v475
    %v2196 = vunpack.c.h.b16 %v475
    %v2197 = vunpack.c.l.b16 %v476
    %v2198 = vunpack.c.h.b16 %v476
    %v2199 = vunpack.c.l.b16 %v477
    %v2200 = vunpack.c.h.b16 %v477
    %v2201 = vunpack.c.l.b16 %v478
    %v2202 = vunpack.c.h.b16 %v478
    %v2203 = vunpack.c.l.b16 %v479
    %v2204 = vunpack.c.h.b16 %v479
    %v2205 = vunpack.c.l.b16 %v480
    %v2206 = vunpack.c.h.b16 %v480
    %v2207 = vunpack.c.l.b16 %v481
    %v2208 = vunpack.c.h.b16 %v481
    %v2209 = vunpack.c.l.b16 %v482
    %v2210 = vunpack.c.h.b16 %v482
    %v2211 = vunpack.c.l.b16 %v483
    %v2212 = vunpack.c.h.b16 %v483
    %v2213 = vunpack.c.l.b16 %v484
    %v2214 = vunpack.c.h.b16 %v484
    %v2215 = vunpack.c.l.b16 %v485
    %v2216 = vunpack.c.h.b16 %v485
    %v2217 = vunpack.c.l.b16 %v486
    %v2218 = vunpack.c.h.b16 %v486
    %v2219 = vunpack.c.l.b16 %v487
    %v2220 = vunpack.c.h.b16 %v487
    %v2221 = vunpack.c.l.b16 %v488
    %v2222 = vunpack.c.h.b16 %v488
    %v2223 = vunpack.c.l.b16 %v489
    %v2224 = vunpack.c.h.b16 %v489
    %v2225 = vunpack.c.l.b16 %v490
    %v2226 = vunpack.c.h.b16 %v490
    %v2227 = vunpack.c.l.b16 %v491
    %v2228 = vunpack.c.h.b16 %v491
    %v2229 = vunpack.c.l.b16 %v492
    %v2230 = vunpack.c.h.b16 %v492
    %v2231 = vunpack.c.l.b16 %v493
    %v2232 = vunpack.c.h.b16 %v493
    %v2233 = vunpack.c.l.b16 %v494
    %v2234 = vunpack.c.h.b16 %v494
    %v2235 = vunpack.c.l.b16 %v495
    %v2236 = vunpack.c.h.b16 %v495
    %v2237 = vunpack.c.l.b16 %v496
    %v2238 = vunpack.c.h.b16 %v496
    %v2239 = vunpack.c.l.b16 %v497
    %v2240 = vunpack.c.h.b16 %v497
    %v2241 = vunpack.c.l.b16 %v498
    %v2242 = vunpack.c.h.b16 %v498
    %v2243 = vunpack.c.l.b16 %v499
    %v2244 = vunpack.c.h.b16 %v499
    %v2245 = vunpack.c.l.b16 %v500
    %v2246 = vunpack.c.h.b16 %v500
    %v2247 = vunpack.c.l.b16 %v501
    %v2248 = vunpack.c.h.b16 %v501
    %v2249 = vunpack.c.l.b16 %v502
    %v2250 = vunpack.c.h.b16 %v502
    %v2251 = vunpack.c.l.b16 %v503
    %v2252 = vunpack.c.h.b16 %v503
    %v2253 = vunpack.c.l.b16 %v504
    %v2254 = vunpack.c.h.b16 %v504
    %v2255 = vunpack.c.l.b16 %v505
    %v2256 = vunpack.c.h.b16 %v505
    %v2257 = vunpack.c.l.b16 %v506
    %v2258 = vunpack.c.h.b16 %v506
    %v2259 = vunpack.c.l.b16 %v507
    %v2260 = vunpack.c.h.b16 %v507
    %v2261 = vunpack.c.l.b16 %v508
    %v2262 = vunpack.c.h.b16 %v508
    %v2263 = vunpack.c.l.b16 %v509
    %v2264 = vunpack.c.h.b16 %v509
    %v2265 = vunpack.c.l.b16 %v510
    %v2266 = vunpack.c.h.b16 %v510
    %v2267 = vunpack.c.l.b16 %v511
    %v2268 = vunpack.c.h.b16 %v511
    %v2269 = vunpack.c.l.b16 %v512
    %v2270 = vunpack.c.h.b16 %v512
    %v2271 = vunpack.c.l.b16 %v513
    %v2272 = vunpack.c.h.b16 %v513
    %v2273 = vunpack.c.l.b16 %v514
    %v2274 = vunpack.c.h.b16 %v514
    %v2275 = vunpack.c.l.b16 %v515
    %v2276 = vunpack.c.h.b16 %v515
    %v2277 = vunpack.c.l.b16 %v516
    %v2278 = vunpack.c.h.b16 %v516
    %v2279 = vunpack.c.l.b16 %v517
    %v2280 = vunpack.c.h.b16 %v517
    %v2281 = vunpack.c.l.b16 %v518
    %v2282 = vunpack.c.h.b16 %v518
    %v2283 = vunpack.c.l.b16 %v519
    %v2284 = vunpack.c.h.b16 %v519
    %v2285 = vunpack.c.l.b16 %v520
    %v2286 = vunpack.c.h.b16 %v520
    %v2287 = vunpack.c.l.b16 %v521
    %v2288 = vunpack.c.h.b16 %v521
    %v2289 = vunpack.c.l.b16 %v522
    %v2290 = vunpack.c.h.b16 %v522
    %v2291 = vunpack.c.l.b16 %v523
    %v2292 = vunpack.c.h.b16 %v523
    %v2293 = vunpack.c.l.b16 %v524
    %v2294 = vunpack.c.h.b16 %v524
    %v2295 = vunpack.c.l.b16 %v525
    %v2296 = vunpack.c.h.b16 %v525
    %v2297 = vunpack.c.l.b16 %v526
    %v2298 = vunpack.c.h.b16 %v526
    %v2299 = vunpack.c.l.b16 %v527
    %v2300 = vunpack.c.h.b16 %v527
    %v2301 = vunpack.c.l.b16 %v528
    %v2302 = vunpack.c.h.b16 %v528
    %v2303 = vunpack.c.l.b16 %v529
    %v2304 = vunpack.c.h.b16 %v529
    %v2305 = vunpack.c.l.b16 %v530
    %v2306 = vunpack.c.h.b16 %v530
    %v2307 = vunpack.c.l.b16 %v531
    %v2308 = vunpack.c.h.b16 %v531
    %v2309 = vunpack.c.l.b16 %v532
    %v2310 = vunpack.c.h.b16 %v532
    %v2311 = vunpack.c.l.b16 %v533
    %v2312 = vunpack.c.h.b16 %v533
    %v2313 = vunpack.c.l.b16 %v534
    %v2314 = vunpack.c.h.b16 %v534
    %v2315 = vunpack.c.l.b16 %v535
    %v2316 = vunpack.c.h.b16 %v535
    %v2317 = vunpack.c.l.b16 %v536
    %v2318 = vunpack.c.h.b16 %v536
    %v2319 = vunpack.c.l.b16 %v537
    %v2320 = vunpack.c.h.b16 %v537
    %v2321 = vunpack.c.l.b16 %v538
    %v2322 = vunpack.c.h.b16 %v538
    %v2323 = vunpack.c.l.b16 %v539
    %v2324 = vunpack.c.h.b16 %v539
    %v2325 = vunpack.c.l.b16 %v540
    %v2326 = vunpack.c.h.b16 %v540
    %v2327 = vunpack.c.l.b16 %v541
    %v2328 = vunpack.c.h.b16 %v541
    %v2329 = vunpack.c.l.b16 %v542
    %v2330 = vunpack.c.h.b16 %v542
    %v2331 = vunpack.c.l.b16 %v543
    %v2332 = vunpack.c.h.b16 %v543
    %v2333 = vunpack.c.l.b16 %v544
    %v2334 = vunpack.c.h.b16 %v544
    %v2335 = vunpack.c.l.b16 %v545
    %v2336 = vunpack.c.h.b16 %v545
    %v2337 = vunpack.c.l.b16 %v546
    %v2338 = vunpack.c.h.b16 %v546
    %v2339 = vunpack.c.l.b16 %v547
    %v2340 = vunpack.c.h.b16 %v547
    %v2341 = vunpack.c.l.b16 %v548
    %v2342 = vunpack.c.h.b16 %v548
    %v2343 = vunpack.c.l.b16 %v549
    %v2344 = vunpack.c.h.b16 %v549
    %v2345 = vunpack.c.l.b16 %v550
    %v2346 = vunpack.c.h.b16 %v550
    %v2347 = vunpack.c.l.b16 %v551
    %v2348 = vunpack.c.h.b16 %v551
    %v2349 = vunpack.c.l.b16 %v552
    %v2350 = vunpack.c.h.b16 %v552
    %v2351 = vunpack.c.l.b16 %v553
    %v2352 = vunpack.c.h.b16 %v553
    %v2353 = vunpack.c.l.b16 %v554
    %v2354 = vunpack.c.h.b16 %v554
    %v2355 = vunpack.c.l.b16 %v555
    %v2356 = vunpack.c.h.b16 %v555
    %v2357 = vunpack.c.l.b16 %v556
    %v2358 = vunpack.c.h.b16 %v556
    %v2359 = vunpack.c.l.b16 %v557
    %v2360 = vunpack.c.h.b16 %v557
    %v2361 = vunpack.c.l.b16 %v558
    %v2362 = vunpack.c.h.b16 %v558
    %v2363 = vunpack.c.l.b16 %v559
    %v2364 = vunpack.c.h.b16 %v559
    %v2365 = vunpack.c.l.b16 %v560
    %v2366 = vunpack.c.h.b16 %v560
    %v2367 = vunpack.c.l.b16 %v561
    %v2368 = vunpack.c.h.b16 %v561
    %v2369 = vunpack.c.l.b16 %v562
    %v2370 = vunpack.c.h.b16 %v562
    %v2371 = vunpack.c.l.b16 %v563
    %v2372 = vunpack.c.h.b16 %v563
    %v2373 = vunpack.c.l.b16 %v564
    %v2374 = vunpack.c.h.b16 %v564
    %v2375 = vunpack.c.l.b16 %v565
    %v2376 = vunpack.c.h.b16 %v565
    %v2377 = vunpack.c.l.b16 %v566
    %v2378 = vunpack.c.h.b16 %v566
    %v2379 = vunpack.c.l.b16 %v567
    %v2380 = vunpack.c.h.b16 %v567
    %v2381 = vunpack.c.l.b16 %v568
    %v2382 = vunpack.c.h.b16 %v568
    %v2383 = vunpack.c.l.b16 %v569
    %v2384 = vunpack.c.h.b16 %v569
    %v2385 = vunpack.c.l.b16 %v570
    %v2386 = vunpack.c.h.b16 %v570
    %v2387 = vunpack.c.l.b16 %v571
    %v2388 = vunpack.c.h.b16 %v571
    %v2389 = vunpack.c.l.b16 %v572
    %v2390 = vunpack.c.h.b16 %v572
    %v2391 = vunpack.c.l.b16 %v573
    %v2392 = vunpack.c.h.b16 %v573
    %v2393 = vunpack.c.l.b16 %v574
    %v2394 = vunpack.c.h.b16 %v574
    %v2395 = vunpack.c.l.b16 %v575
    %v2396 = vunpack.c.h.b16 %v575
    %v2397 = vunpack.c.l.b16 %v576
    %v2398 = vunpack.c.h.b16 %v576
    %v2399 = vunpack.c.l.b16 %v577
    %v2400 = vunpack.c.h.b16 %v577
    %v2401 = vunpack.c.l.b16 %v578
    %v2402 = vunpack.c.h.b16 %v578
    %v2403 = vunpack.c.l.b16 %v579
    %v2404 = vunpack.c.h.b16 %v579
    %v2405 = vunpack.c.l.b16 %v580
    %v2406 = vunpack.c.h.b16 %v580
    %v2407 = vunpack.c.l.b16 %v581
    %v2408 = vunpack.c.h.b16 %v581
    %v2409 = vunpack.c.l.b16 %v582
    %v2410 = vunpack.c.h.b16 %v582
    %v2411 = vunpack.c.l.b16 %v583
    %v2412 = vunpack.c.h.b16 %v583
    %v2413 = vunpack.c.l.b16 %v584
    %v2414 = vunpack.c.h.b16 %v584
    %v2415 = vunpack.c.l.b16 %v585
    %v2416 = vunpack.c.h.b16 %v585
    %v2417 = vunpack.c.l.b16 %v586
    %v2418 = vunpack.c.h.b16 %v586
    %v2419 = vunpack.c.l.b16 %v587
    %v2420 = vunpack.c.h.b16 %v587
    %v2421 = vunpack.c.l.b16 %v588
    %v2422 = vunpack.c.h.b16 %v588
    %v2423 = vunpack.c.l.b16 %v589
    %v2424 = vunpack.c.h.b16 %v589
    %v2425 = vunpack.c.l.b16 %v590
    %v2426 = vunpack.c.h.b16 %v590
    %v2427 = vunpack.c.l.b16 %v591
    %v2428 = vunpack.c.h.b16 %v591
    %v2429 = vunpack.c.l.b16 %v592
    %v2430 = vunpack.c.h.b16 %v592
    %v2431 = vunpack.c.l.b16 %v593
    %v2432 = vunpack.c.h.b16 %v593
    %v2433 = vunpack.c.l.b16 %v594
    %v2434 = vunpack.c.h.b16 %v594
    %v2435 = vunpack.c.l.b16 %v595
    %v2436 = vunpack.c.h.b16 %v595
    %v2437 = vunpack.c.l.b16 %v596
    %v2438 = vunpack.c.h.b16 %v596
    %v2439 = vunpack.c.l.b16 %v597
    %v2440 = vunpack.c.h.b16 %v597
    %v2441 = vunpack.c.l.b16 %v598
    %v2442 = vunpack.c.h.b16 %v598
    %v2443 = vunpack.c.l.b16 %v599
    %v2444 = vunpack.c.h.b16 %v599
    %v2445 = vunpack.c.l.b16 %v600
    %v2446 = vunpack.c.h.b16 %v600
    %v2447 = vunpack.c.l.b16 %v601
    %v2448 = vunpack.c.h.b16 %v601
    %v2449 = vunpack.c.l.b16 %v602
    %v2450 = vunpack.c.h.b16 %v602
    %v2451 = vunpack.c.l.b16 %v603
    %v2452 = vunpack.c.h.b16 %v603
    %v2453 = vunpack.c.l.b16 %v604
    %v2454 = vunpack.c.h.b16 %v604
    %v2455 = vunpack.c.l.b16 %v605
    %v2456 = vunpack.c.h.b16 %v605
    %v2457 = vunpack.c.l.b16 %v606
    %v2458 = vunpack.c.h.b16 %v606
    %v2459 = vunpack.c.l.b16 %v607
    %v2460 = vunpack.c.h.b16 %v607
    %v2461 = vunpack.c.l.b16 %v608
    %v2462 = vunpack.c.h.b16 %v608
    %v2463 = vunpack.c.l.b16 %v609
    %v2464 = vunpack.c.h.b16 %v609
    %v2465 = vunpack.c.l.b16 %v610
    %v2466 = vunpack.c.h.b16 %v610
    %v2467 = vunpack.c.l.b16 %v611
    %v2468 = vunpack.c.h.b16 %v611
    %v2469 = vunpack.c.l.b16 %v612
    %v2470 = vunpack.c.h.b16 %v612
    %v2471 = vunpack.c.l.b16 %v613
    %v2472 = vunpack.c.h.b16 %v613
    %v2473 = vunpack.c.l.b16 %v614
    %v2474 = vunpack.c.h.b16 %v614
    %v2475 = vunpack.c.l.b16 %v615
    %v2476 = vunpack.c.h.b16 %v615
    %v2477 = vunpack.c.l.b16 %v616
    %v2478 = vunpack.c.h.b16 %v616
    %v2479 = vunpack.c.l.b16 %v617
    %v2480 = vunpack.c.h.b16 %v617
    %v2481 = vunpack.c.l.b16 %v618
    %v2482 = vunpack.c.h.b16 %v618
    %v2483 = vunpack.c.l.b16 %v619
    %v2484 = vunpack.c.h.b16 %v619
    %v2485 = vunpack.c.l.b16 %v620
    %v2486 = vunpack.c.h.b16 %v620
    %v2487 = vunpack.c.l.b16 %v621
    %v2488 = vunpack.c.h.b16 %v621
    %v2489 = vunpack.c.l.b16 %v622
    %v2490 = vunpack.c.h.b16 %v622
    %v2491 = vunpack.c.l.b16 %v623
    %v2492 = vunpack.c.h.b16 %v623
    %v2493 = vunpack.c.l.b16 %v624
    %v2494 = vunpack.c.h.b16 %v624
    %v2495 = vunpack.c.l.b16 %v625
    %v2496 = vunpack.c.h.b16 %v625
    %v2497 = vunpack.c.l.b16 %v626
    %v2498 = vunpack.c.h.b16 %v626
    %v2499 = vunpack.c.l.b16 %v627
    %v2500 = vunpack.c.h.b16 %v627
    %v2501 = vunpack.c.l.b16 %v628
    %v2502 = vunpack.c.h.b16 %v628
    %v2503 = vunpack.c.l.b16 %v629
    %v2504 = vunpack.c.h.b16 %v629
    %v2505 = vunpack.c.l.b16 %v630
    %v2506 = vunpack.c.h.b16 %v630
    %v2507 = vunpack.c.l.b16 %v631
    %v2508 = vunpack.c.h.b16 %v631
    %v2509 = vunpack.c.l.b16 %v632
    %v2510 = vunpack.c.h.b16 %v632
    %v2511 = vunpack.c.l.b16 %v633
    %v2512 = vunpack.c.h.b16 %v633
    %v2513 = vunpack.c.l.b16 %v634
    %v2514 = vunpack.c.h.b16 %v634
    %v2515 = vunpack.c.l.b16 %v635
    %v2516 = vunpack.c.h.b16 %v635
    %v2517 = vunpack.c.l.b16 %v636
    %v2518 = vunpack.c.h.b16 %v636
    %v2519 = vunpack.c.l.b16 %v637
    %v2520 = vunpack.c.h.b16 %v637
    %v2521 = vunpack.c.l.b16 %v638
    %v2522 = vunpack.c.h.b16 %v638
    %v2523 = vunpack.c.l.b16 %v639
    %v2524 = vunpack.c.h.b16 %v639
    %v2525 = vunpack.c.l.b16 %v640
    %v2526 = vunpack.c.h.b16 %v640
    %v2527 = vunpack.c.l.b16 %v641
    %v2528 = vunpack.c.h.b16 %v641
    %v2529 = vunpack.c.l.b16 %v642
    %v2530 = vunpack.c.h.b16 %v642
    %v2531 = vunpack.c.l.b16 %v643
    %v2532 = vunpack.c.h.b16 %v643
    %v2533 = vunpack.c.l.b16 %v644
    %v2534 = vunpack.c.h.b16 %v644
    %v2535 = vunpack.c.l.b16 %v645
    %v2536 = vunpack.c.h.b16 %v645
    %v2537 = vunpack.c.l.b16 %v646
    %v2538 = vunpack.c.h.b16 %v646
    %v2539 = vunpack.c.l.b16 %v647
    %v2540 = vunpack.c.h.b16 %v647
    %v2541 = vunpack.c.l.b16 %v648
    %v2542 = vunpack.c.h.b16 %v648
    %v2543 = vunpack.c.l.b16 %v649
    %v2544 = vunpack.c.h.b16 %v649
    %v2545 = vunpack.c.l.b16 %v650
    %v2546 = vunpack.c.h.b16 %v650
    %v2547 = vunpack.c.l.b16 %v651
    %v2548 = vunpack.c.h.b16 %v651
    %v2549 = vunpack.c.l.b16 %v652
    %v2550 = vunpack.c.h.b16 %v652
    %v2551 = vunpack.c.l.b16 %v653
    %v2552 = vunpack.c.h.b16 %v653
    %v2553 = vunpack.c.l.b16 %v654
    %v2554 = vunpack.c.h.b16 %v654
    %v2555 = vunpack.c.l.b16 %v655
    %v2556 = vunpack.c.h.b16 %v655
    %v2557 = vunpack.c.l.b16 %v656
    %v2558 = vunpack.c.h.b16 %v656
    %v2559 = vunpack.c.l.b16 %v657
    %v2560 = vunpack.c.h.b16 %v657
    %v2561 = vunpack.c.l.b16 %v658
    %v2562 = vunpack.c.h.b16 %v658
    %v2563 = vunpack.c.l.b16 %v659
    %v2564 = vunpack.c.h.b16 %v659
    %v2565 = vunpack.c.l.b16 %v660
    %v2566 = vunpack.c.h.b16 %v660
    %v2567 = vunpack.c.l.b16 %v661
    %v2568 = vunpack.c.h.b16 %v661
    %v2569 = vunpack.c.l.b16 %v662
    %v2570 = vunpack.c.h.b16 %v662
    %v2571 = vunpack.c.l.b16 %v663
    %v2572 = vunpack.c.h.b16 %v663
    %v2573 = vunpack.c.l.b16 %v664
    %v2574 = vunpack.c.h.b16 %v664
    %v2575 = vunpack.c.l.b16 %v665
    %v2576 = vunpack.c.h.b16 %v665
    %v2577 = vunpack.c.l.b16 %v666
    %v2578 = vunpack.c.h.b16 %v666
    %v2579 = vunpack.c.l.b16 %v667
    %v2580 = vunpack.c.h.b16 %v667
    %v2581 = vunpack.c.l.b16 %v668
    %v2582 = vunpack.c.h.b16 %v668
    %v2583 = vunpack.c.l.b16 %v669
    %v2584 = vunpack.c.h.b16 %v669
    %v2585 = vunpack.c.l.b16 %v670
    %v2586 = vunpack.c.h.b16 %v670
    %v2587 = vunpack.c.l.b16 %v671
    %v2588 = vunpack.c.h.b16 %v671
    %v2589 = vunpack.c.l.b16 %v672
    %v2590 = vunpack.c.h.b16 %v672
    %v2591 = vunpack.c.l.b16 %v673
    %v2592 = vunpack.c.h.b16 %v673
    %v2593 = vunpack.c.l.b16 %v674
    %v2594 = vunpack.c.h.b16 %v674
    %v2595 = vunpack.c.l.b16 %v675
    %v2596 = vunpack.c.h.b16 %v675
    %v2597 = vunpack.c.l.b16 %v676
    %v2598 = vunpack.c.h.b16 %v676
    %v2599 = vunpack.c.l.b16 %v677
    %v2600 = vunpack.c.h.b16 %v677
    %v2601 = vunpack.c.l.b16 %v678
    %v2602 = vunpack.c.h.b16 %v678
    %v2603 = vunpack.c.l.b16 %v679
    %v2604 = vunpack.c.h.b16 %v679
    %v2605 = vunpack.c.l.b16 %v680
    %v2606 = vunpack.c.h.b16 %v680
    %v2607 = vunpack.c.l.b16 %v681
    %v2608 = vunpack.c.h.b16 %v681
    %v2609 = vunpack.c.l.b16 %v682
    %v2610 = vunpack.c.h.b16 %v682
    %v2611 = vunpack.c.l.b16 %v683
    %v2612 = vunpack.c.h.b16 %v683
    %v2613 = vunpack.c.l.b16 %v684
    %v2614 = vunpack.c.h.b16 %v684
    %v2615 = vunpack.c.l.b16 %v685
    %v2616 = vunpack.c.h.b16 %v685
    %v2617 = vunpack.c.l.b16 %v686
    %v2618 = vunpack.c.h.b16 %v686
    %v2619 = vunpack.c.l.b16 %v687
    %v2620 = vunpack.c.h.b16 %v687
    %v2621 = vunpack.c.l.b16 %v688
    %v2622 = vunpack.c.h.b16 %v688
    %v2623 = vunpack.c.l.b16 %v689
    %v2624 = vunpack.c.h.b16 %v689
    %v2625 = vunpack.c.l.b16 %v690
    %v2626 = vunpack.c.h.b16 %v690
    %v2627 = vunpack.c.l.b16 %v691
    %v2628 = vunpack.c.h.b16 %v691
    %v2629 = vunpack.c.l.b16 %v692
    %v2630 = vunpack.c.h.b16 %v692
    %v2631 = vunpack.c.l.b16 %v693
    %v2632 = vunpack.c.h.b16 %v693
    %v2633 = vunpack.c.l.b16 %v694
    %v2634 = vunpack.c.h.b16 %v694
    %v2635 = vunpack.c.l.b16 %v695
    %v2636 = vunpack.c.h.b16 %v695
    %v2637 = vunpack.c.l.b16 %v696
    %v2638 = vunpack.c.h.b16 %v696
    %v2639 = vunpack.c.l.b16 %v697
    %v2640 = vunpack.c.h.b16 %v697
    %v2641 = vunpack.c.l.b16 %v698
    %v2642 = vunpack.c.h.b16 %v698
    %v2643 = vunpack.c.l.b16 %v699
    %v2644 = vunpack.c.h.b16 %v699
    %v2645 = vunpack.c.l.b16 %v700
    %v2646 = vunpack.c.h.b16 %v700
    %v2647 = vunpack.c.l.b16 %v701
    %v2648 = vunpack.c.h.b16 %v701
    %v2649 = vunpack.c.l.b16 %v702
    %v2650 = vunpack.c.h.b16 %v702
    %v2651 = vunpack.c.l.b16 %v703
    %v2652 = vunpack.c.h.b16 %v703
    %v2653 = vunpack.c.l.b16 %v704
    %v2654 = vunpack.c.h.b16 %v704
    %v2655 = vunpack.c.l.b16 %v705
    %v2656 = vunpack.c.h.b16 %v705
    %v2657 = vunpack.c.l.b16 %v706
    %v2658 = vunpack.c.h.b16 %v706
    %v2659 = vunpack.c.l.b16 %v707
    %v2660 = vunpack.c.h.b16 %v707
    %v2661 = vunpack.c.l.b16 %v708
    %v2662 = vunpack.c.h.b16 %v708
    %v2663 = vunpack.c.l.b16 %v709
    %v2664 = vunpack.c.h.b16 %v709
    %v2665 = vunpack.c.l.b16 %v710
    %v2666 = vunpack.c.h.b16 %v710
    %v2667 = vunpack.c.l.b16 %v711
    %v2668 = vunpack.c.h.b16 %v711
    %v2669 = vunpack.c.l.b16 %v712
    %v2670 = vunpack.c.h.b16 %v712
    %v2671 = vunpack.c.l.b16 %v713
    %v2672 = vunpack.c.h.b16 %v713
    %v2673 = vunpack.c.l.b16 %v714
    %v2674 = vunpack.c.h.b16 %v714
    %v2675 = vunpack.c.l.b16 %v715
    %v2676 = vunpack.c.h.b16 %v715
    %v2677 = vunpack.c.l.b16 %v716
    %v2678 = vunpack.c.h.b16 %v716
    %v2679 = vunpack.c.l.b16 %v717
    %v2680 = vunpack.c.h.b16 %v717
    %v2681 = vunpack.c.l.b16 %v718
    %v2682 = vunpack.c.h.b16 %v718
    %v2683 = vunpack.c.l.b16 %v719
    %v2684 = vunpack.c.h.b16 %v719
    %v2685 = vunpack.c.l.b16 %v720
    %v2686 = vunpack.c.h.b16 %v720
    %v2687 = vunpack.c.l.b16 %v721
    %v2688 = vunpack.c.h.b16 %v721
    %v2689 = vunpack.c.l.b16 %v722
    %v2690 = vunpack.c.h.b16 %v722
    %v2691 = vunpack.c.l.b16 %v723
    %v2692 = vunpack.c.h.b16 %v723
    %v2693 = vunpack.c.l.b16 %v724
    %v2694 = vunpack.c.h.b16 %v724
    %v2695 = vunpack.c.l.b16 %v725
    %v2696 = vunpack.c.h.b16 %v725
    %v2697 = vunpack.c.l.b16 %v726
    %v2698 = vunpack.c.h.b16 %v726
    %v2699 = vunpack.c.l.b16 %v727
    %v2700 = vunpack.c.h.b16 %v727
    %v2701 = vunpack.c.l.b16 %v728
    %v2702 = vunpack.c.h.b16 %v728
    %v2703 = vunpack.c.l.b16 %v729
    %v2704 = vunpack.c.h.b16 %v729
    %v2705 = vunpack.c.l.b16 %v730
    %v2706 = vunpack.c.h.b16 %v730
    %v2707 = vunpack.c.l.b16 %v731
    %v2708 = vunpack.c.h.b16 %v731
    %v2709 = vunpack.c.l.b16 %v732
    %v2710 = vunpack.c.h.b16 %v732
    %v2711 = vunpack.c.l.b16 %v733
    %v2712 = vunpack.c.h.b16 %v733
    %v2713 = vunpack.c.l.b16 %v734
    %v2714 = vunpack.c.h.b16 %v734
    %v2715 = vunpack.c.l.b16 %v735
    %v2716 = vunpack.c.h.b16 %v735
    %v2717 = vunpack.c.l.b16 %v736
    %v2718 = vunpack.c.h.b16 %v736
    %v2719 = vunpack.c.l.b16 %v737
    %v2720 = vunpack.c.h.b16 %v737
    %v2721 = vunpack.c.l.b16 %v738
    %v2722 = vunpack.c.h.b16 %v738
    %v2723 = vunpack.c.l.b16 %v739
    %v2724 = vunpack.c.h.b16 %v739
    %v2725 = vunpack.c.l.b16 %v740
    %v2726 = vunpack.c.h.b16 %v740
    %v2727 = vunpack.c.l.b16 %v741
    %v2728 = vunpack.c.h.b16 %v741
    %v2729 = vunpack.c.l.b16 %v742
    %v2730 = vunpack.c.h.b16 %v742
    %v2731 = vunpack.c.l.b16 %v743
    %v2732 = vunpack.c.h.b16 %v743
    %v2733 = vunpack.c.l.b16 %v744
    %v2734 = vunpack.c.h.b16 %v744
    %v2735 = vunpack.c.l.b16 %v745
    %v2736 = vunpack.c.h.b16 %v745
    %v2737 = vunpack.c.l.b16 %v746
    %v2738 = vunpack.c.h.b16 %v746
    %v2739 = vunpack.c.l.b16 %v747
    %v2740 = vunpack.c.h.b16 %v747
    %v2741 = vunpack.c.l.b16 %v748
    %v2742 = vunpack.c.h.b16 %v748
    %v2743 = vunpack.c.l.b16 %v749
    %v2744 = vunpack.c.h.b16 %v749
    %v2745 = vunpack.c.l.b16 %v750
    %v2746 = vunpack.c.h.b16 %v750
    %v2747 = vunpack.c.l.b16 %v751
    %v2748 = vunpack.c.h.b16 %v751
    %v2749 = vunpack.c.l.b16 %v752
    %v2750 = vunpack.c.h.b16 %v752
    %v2751 = vunpack.c.l.b16 %v753
    %v2752 = vunpack.c.h.b16 %v753
    %v2753 = vunpack.c.l.b16 %v754
    %v2754 = vunpack.c.h.b16 %v754
    %v2755 = vunpack.c.l.b16 %v755
    %v2756 = vunpack.c.h.b16 %v755
    %v2757 = vunpack.c.l.b16 %v756
    %v2758 = vunpack.c.h.b16 %v756
    %v2759 = vunpack.c.l.b16 %v757
    %v2760 = vunpack.c.h.b16 %v757
    %v2761 = vunpack.c.l.b16 %v758
    %v2762 = vunpack.c.h.b16 %v758
    %v2763 = vunpack.c.l.b16 %v759
    %v2764 = vunpack.c.h.b16 %v759
    %v2765 = vunpack.c.l.b16 %v760
    %v2766 = vunpack.c.h.b16 %v760
    %v2767 = vunpack.c.l.b16 %v761
    %v2768 = vunpack.c.h.b16 %v761
    %v2769 = vunpack.c.l.b16 %v762
    %v2770 = vunpack.c.h.b16 %v762
    %v2771 = vunpack.c.l.b16 %v763
    %v2772 = vunpack.c.h.b16 %v763
    %v2773 = vunpack.c.l.b16 %v764
    %v2774 = vunpack.c.h.b16 %v764
    %v2775 = vunpack.c.l.b16 %v765
    %v2776 = vunpack.c.h.b16 %v765
    %v2777 = vunpack.c.l.b16 %v766
    %v2778 = vunpack.c.h.b16 %v766
    %v2779 = vunpack.c.l.b16 %v767
    %v2780 = vunpack.c.h.b16 %v767
    %v2781 = vunpack.c.l.b16 %v768
    %v2782 = vunpack.c.h.b16 %v768
    %v2783 = vunpack.c.l.b16 %v769
    %v2784 = vunpack.c.h.b16 %v769
    %v2785 = vunpack.c.l.b16 %v770
    %v2786 = vunpack.c.h.b16 %v770
    %v2787 = vunpack.c.l.b16 %v771
    %v2788 = vunpack.c.h.b16 %v771
    %v2789 = vunpack.c.l.b16 %v772
    %v2790 = vunpack.c.h.b16 %v772
    %v2791 = vunpack.c.l.b16 %v773
    %v2792 = vunpack.c.h.b16 %v773
    %v2793 = vunpack.c.l.b16 %v774
    %v2794 = vunpack.c.h.b16 %v774
    %v2795 = vunpack.c.l.b16 %v775
    %v2796 = vunpack.c.h.b16 %v775
    %v2797 = vunpack.c.l.b16 %v776
    %v2798 = vunpack.c.h.b16 %v776
    %v2799 = vunpack.c.l.b16 %v777
    %v2800 = vunpack.c.h.b16 %v777
    %v2801 = vunpack.c.l.b16 %v778
    %v2802 = vunpack.c.h.b16 %v778
    %v2803 = vunpack.c.l.b16 %v779
    %v2804 = vunpack.c.h.b16 %v779
    %v2805 = vunpack.c.l.b16 %v780
    %v2806 = vunpack.c.h.b16 %v780
    %v2807 = vunpack.c.l.b16 %v781
    %v2808 = vunpack.c.h.b16 %v781
    %v2809 = vunpack.c.l.b16 %v782
    %v2810 = vunpack.c.h.b16 %v782
    %v2811 = vunpack.c.l.b16 %v783
    %v2812 = vunpack.c.h.b16 %v783
    %v2813 = vunpack.c.l.b16 %v784
    %v2814 = vunpack.c.h.b16 %v784
    %v2815 = vunpack.c.l.b16 %v785
    %v2816 = vunpack.c.h.b16 %v785
    %v2817 = vunpack.c.l.b16 %v786
    %v2818 = vunpack.c.h.b16 %v786
    %v2819 = vunpack.c.l.b16 %v787
    %v2820 = vunpack.c.h.b16 %v787
    %v2821 = vunpack.c.l.b16 %v788
    %v2822 = vunpack.c.h.b16 %v788
    %v2823 = vunpack.c.l.b16 %v789
    %v2824 = vunpack.c.h.b16 %v789
    %v2825 = vunpack.c.l.b16 %v790
    %v2826 = vunpack.c.h.b16 %v790
    %v2827 = vunpack.c.l.b16 %v791
    %v2828 = vunpack.c.h.b16 %v791
    %v2829 = vunpack.c.l.b16 %v792
    %v2830 = vunpack.c.h.b16 %v792
    %v2831 = vunpack.c.l.b16 %v793
    %v2832 = vunpack.c.h.b16 %v793
    %v2833 = vunpack.c.l.b16 %v794
    %v2834 = vunpack.c.h.b16 %v794
    %v2835 = vunpack.c.l.b16 %v795
    %v2836 = vunpack.c.h.b16 %v795
    %v2837 = vunpack.c.l.b16 %v796
    %v2838 = vunpack.c.h.b16 %v796
    %v2839 = vunpack.c.l.b16 %v797
    %v2840 = vunpack.c.h.b16 %v797
    %v2841 = vunpack.c.l.b16 %v798
    %v2842 = vunpack.c.h.b16 %v798
    %v2843 = vunpack.c.l.b16 %v799
    %v2844 = vunpack.c.h.b16 %v799
    %v2845 = vunpack.c.l.b16 %v800
    %v2846 = vunpack.c.h.b16 %v800
    %v2847 = vunpack.c.l.b16 %v801
    %v2848 = vunpack.c.h.b16 %v801
    %v2849 = vunpack.c.l.b16 %v802
    %v2850 = vunpack.c.h.b16 %v802
    %v2851 = vunpack.c.l.b16 %v803
    %v2852 = vunpack.c.h.b16 %v803
    %v2853 = vunpack.c.l.b16 %v804
    %v2854 = vunpack.c.h.b16 %v804
    %v2855 = vunpack.c.l.b16 %v805
    %v2856 = vunpack.c.h.b16 %v805
    %v2857 = vunpack.c.l.b16 %v806
    %v2858 = vunpack.c.h.b16 %v806
    %v2859 = vunpack.c.l.b16 %v807
    %v2860 = vunpack.c.h.b16 %v807
    %v2861 = vunpack.c.l.b16 %v808
    %v2862 = vunpack.c.h.b16 %v808
    %v2863 = vunpack.c.l.b16 %v809
    %v2864 = vunpack.c.h.b16 %v809
    %v2865 = vunpack.c.l.b16 %v810
    %v2866 = vunpack.c.h.b16 %v810
    %v2867 = vunpack.c.l.b16 %v811
    %v2868 = vunpack.c.h.b16 %v811
    %v2869 = vunpack.c.l.b16 %v812
    %v2870 = vunpack.c.h.b16 %v812
    %v2871 = vunpack.c.l.b16 %v813
    %v2872 = vunpack.c.h.b16 %v813
    %v2873 = vunpack.c.l.b16 %v814
    %v2874 = vunpack.c.h.b16 %v814
    %v2875 = vunpack.c.l.b16 %v815
    %v2876 = vunpack.c.h.b16 %v815
    %v2877 = vunpack.c.l.b16 %v816
    %v2878 = vunpack.c.h.b16 %v816
    %v2879 = vunpack.c.l.b16 %v817
    %v2880 = vunpack.c.h.b16 %v817
    %v2881 = vunpack.c.l.b16 %v818
    %v2882 = vunpack.c.h.b16 %v818
    %v2883 = vunpack.c.l.b16 %v819
    %v2884 = vunpack.c.h.b16 %v819
    %v2885 = vunpack.c.l.b16 %v820
    %v2886 = vunpack.c.h.b16 %v820
    %v2887 = vunpack.c.l.b16 %v821
    %v2888 = vunpack.c.h.b16 %v821
    %v2889 = vunpack.c.l.b16 %v822
    %v2890 = vunpack.c.h.b16 %v822
    %v2891 = vunpack.c.l.b16 %v823
    %v2892 = vunpack.c.h.b16 %v823
    %v2893 = vunpack.c.l.b16 %v824
    %v2894 = vunpack.c.h.b16 %v824
    %v2895 = vunpack.c.l.b16 %v825
    %v2896 = vunpack.c.h.b16 %v825
    %v2897 = vunpack.c.l.b16 %v826
    %v2898 = vunpack.c.h.b16 %v826
    %v2899 = vunpack.c.l.b16 %v827
    %v2900 = vunpack.c.h.b16 %v827
    %v2901 = vunpack.c.l.b16 %v828
    %v2902 = vunpack.c.h.b16 %v828
    %v2903 = vunpack.c.l.b16 %v829
    %v2904 = vunpack.c.h.b16 %v829
    %v2905 = vunpack.c.l.b16 %v830
    %v2906 = vunpack.c.h.b16 %v830
    %v2907 = vunpack.c.l.b16 %v831
    %v2908 = vunpack.c.h.b16 %v831
    %v2909 = vunpack.c.l.b16 %v832
    %v2910 = vunpack.c.h.b16 %v832
    %v2911 = vunpack.c.l.b16 %v833
    %v2912 = vunpack.c.h.b16 %v833
    %v2913 = vunpack.c.l.b16 %v834
    %v2914 = vunpack.c.h.b16 %v834
    %v2915 = vunpack.c.l.b16 %v835
    %v2916 = vunpack.c.h.b16 %v835
    %v2917 = vunpack.c.l.b16 %v836
    %v2918 = vunpack.c.h.b16 %v836
    %v2919 = vunpack.c.l.b16 %v837
    %v2920 = vunpack.c.h.b16 %v837
    %v2921 = vunpack.c.l.b16 %v838
    %v2922 = vunpack.c.h.b16 %v838
    %v2923 = vunpack.c.l.b16 %v839
    %v2924 = vunpack.c.h.b16 %v839
    %v2925 = vunpack.c.l.b16 %v840
    %v2926 = vunpack.c.h.b16 %v840
    %v2927 = vunpack.c.l.b16 %v841
    %v2928 = vunpack.c.h.b16 %v841
    %v2929 = vunpack.c.l.b16 %v842
    %v2930 = vunpack.c.h.b16 %v842
    %v2931 = vunpack.c.l.b16 %v843
    %v2932 = vunpack.c.h.b16 %v843
    %v2933 = vunpack.c.l.b16 %v844
    %v2934 = vunpack.c.h.b16 %v844
    %v2935 = vunpack.c.l.b16 %v845
    %v2936 = vunpack.c.h.b16 %v845
    %v2937 = vunpack.c.l.b16 %v846
    %v2938 = vunpack.c.h.b16 %v846
    %v2939 = vunpack.c.l.b16 %v847
    %v2940 = vunpack.c.h.b16 %v847
    %v2941 = vunpack.c.l.b16 %v848
    %v2942 = vunpack.c.h.b16 %v848
    %v2943 = vunpack.c.l.b16 %v849
    %v2944 = vunpack.c.h.b16 %v849
    %v2945 = vunpack.c.l.b16 %v850
    %v2946 = vunpack.c.h.b16 %v850
    %v2947 = vunpack.c.l.b16 %v851
    %v2948 = vunpack.c.h.b16 %v851
    %v2949 = vunpack.c.l.b16 %v852
    %v2950 = vunpack.c.h.b16 %v852
    %v2951 = vunpack.c.l.b16 %v853
    %v2952 = vunpack.c.h.b16 %v853
    %v2953 = vunpack.c.l.b16 %v854
    %v2954 = vunpack.c.h.b16 %v854
    %v2955 = vunpack.c.l.b16 %v855
    %v2956 = vunpack.c.h.b16 %v855
    %v2957 = vunpack.c.l.b16 %v856
    %v2958 = vunpack.c.h.b16 %v856
    %v2959 = vunpack.c.l.b16 %v857
    %v2960 = vunpack.c.h.b16 %v857
    %v2961 = vunpack.c.l.b16 %v858
    %v2962 = vunpack.c.h.b16 %v858
    %v2963 = vunpack.c.l.b16 %v859
    %v2964 = vunpack.c.h.b16 %v859
    %v2965 = vunpack.c.l.b16 %v860
    %v2966 = vunpack.c.h.b16 %v860
    %v2967 = vunpack.c.l.b16 %v861
    %v2968 = vunpack.c.h.b16 %v861
    %v2969 = vunpack.c.l.b16 %v862
    %v2970 = vunpack.c.h.b16 %v862
    %v2971 = vunpack.c.l.b16 %v863
    %v2972 = vunpack.c.h.b16 %v863
    %v2973 = vunpack.c.l.b16 %v864
    %v2974 = vunpack.c.h.b16 %v864
    %v2975 = vunpack.c.l.b16 %v865
    %v2976 = vunpack.c.h.b16 %v865
    %v2977 = vunpack.c.l.b16 %v866
    %v2978 = vunpack.c.h.b16 %v866
    %v2979 = vunpack.c.l.b16 %v867
    %v2980 = vunpack.c.h.b16 %v867
    %v2981 = vunpack.c.l.b16 %v868
    %v2982 = vunpack.c.h.b16 %v868
    %v2983 = vunpack.c.l.b16 %v869
    %v2984 = vunpack.c.h.b16 %v869
    %v2985 = vunpack.c.l.b16 %v870
    %v2986 = vunpack.c.h.b16 %v870
    %v2987 = vunpack.c.l.b16 %v871
    %v2988 = vunpack.c.h.b16 %v871
    %v2989 = vunpack.c.l.b16 %v872
    %v2990 = vunpack.c.h.b16 %v872
    %v2991 = vunpack.c.l.b16 %v873
    %v2992 = vunpack.c.h.b16 %v873
    %v2993 = vunpack.c.l.b16 %v874
    %v2994 = vunpack.c.h.b16 %v874
    %v2995 = vunpack.c.l.b16 %v875
    %v2996 = vunpack.c.h.b16 %v875
    %v2997 = vunpack.c.l.b16 %v876
    %v2998 = vunpack.c.h.b16 %v876
    %v2999 = vunpack.c.l.b16 %v877
    %v3000 = vunpack.c.h.b16 %v877
    %v3001 = vunpack.c.l.b16 %v878
    %v3002 = vunpack.c.h.b16 %v878
    %v3003 = vunpack.c.l.b16 %v879
    %v3004 = vunpack.c.h.b16 %v879
    %v3005 = vunpack.c.l.b16 %v880
    %v3006 = vunpack.c.h.b16 %v880
    %v3007 = vunpack.c.l.b16 %v881
    %v3008 = vunpack.c.h.b16 %v881
    %v3009 = vunpack.c.l.b16 %v882
    %v3010 = vunpack.c.h.b16 %v882
    %v3011 = vunpack.c.l.b16 %v883
    %v3012 = vunpack.c.h.b16 %v883
    %v3013 = vunpack.c.l.b16 %v884
    %v3014 = vunpack.c.h.b16 %v884
    %v3015 = vunpack.c.l.b16 %v885
    %v3016 = vunpack.c.h.b16 %v885
    %v3017 = vunpack.c.l.b16 %v886
    %v3018 = vunpack.c.h.b16 %v886
    %v3019 = vunpack.c.l.b16 %v887
    %v3020 = vunpack.c.h.b16 %v887
    %v3021 = vunpack.c.l.b16 %v888
    %v3022 = vunpack.c.h.b16 %v888
    %v3023 = vunpack.c.l.b16 %v889
    %v3024 = vunpack.c.h.b16 %v889
    %v3025 = vunpack.c.l.b16 %v890
    %v3026 = vunpack.c.h.b16 %v890
    %v3027 = vunpack.c.l.b16 %v891
    %v3028 = vunpack.c.h.b16 %v891
    %v3029 = vunpack.c.l.b16 %v892
    %v3030 = vunpack.c.h.b16 %v892
    %v3031 = vunpack.c.l.b16 %v893
    %v3032 = vunpack.c.h.b16 %v893
    %v3033 = vunpack.c.l.b16 %v894
    %v3034 = vunpack.c.h.b16 %v894
    %v3035 = vunpack.c.l.b16 %v895
    %v3036 = vunpack.c.h.b16 %v895
    %v3037 = vunpack.c.l.b16 %v896
    %v3038 = vunpack.c.h.b16 %v896
    %v3039 = vunpack.c.l.b16 %v897
    %v3040 = vunpack.c.h.b16 %v897
    %v3041 = vunpack.c.l.b16 %v898
    %v3042 = vunpack.c.h.b16 %v898
    %v3043 = vunpack.c.l.b16 %v899
    %v3044 = vunpack.c.h.b16 %v899
    %v3045 = vunpack.c.l.b16 %v900
    %v3046 = vunpack.c.h.b16 %v900
    %v3047 = vunpack.c.l.b16 %v901
    %v3048 = vunpack.c.h.b16 %v901
    %v3049 = vunpack.c.l.b16 %v902
    %v3050 = vunpack.c.h.b16 %v902
    %v3051 = vunpack.c.l.b16 %v903
    %v3052 = vunpack.c.h.b16 %v903
    %v3053 = vunpack.c.l.b16 %v904
    %v3054 = vunpack.c.h.b16 %v904
    %v3055 = vunpack.c.l.b16 %v905
    %v3056 = vunpack.c.h.b16 %v905
    %v3057 = vunpack.c.l.b16 %v906
    %v3058 = vunpack.c.h.b16 %v906
    %v3059 = vunpack.c.l.b16 %v907
    %v3060 = vunpack.c.h.b16 %v907
    %v3061 = vunpack.c.l.b16 %v908
    %v3062 = vunpack.c.h.b16 %v908
    %v3063 = vunpack.c.l.b16 %v909
    %v3064 = vunpack.c.h.b16 %v909
    %v3065 = vunpack.c.l.b16 %v910
    %v3066 = vunpack.c.h.b16 %v910
    %v3067 = vunpack.c.l.b16 %v911
    %v3068 = vunpack.c.h.b16 %v911
    %v3069 = vunpack.c.l.b16 %v912
    %v3070 = vunpack.c.h.b16 %v912
    %v3071 = vunpack.c.l.b16 %v913
    %v3072 = vunpack.c.h.b16 %v913
    %v3073 = vunpack.c.l.b16 %v914
    %v3074 = vunpack.c.h.b16 %v914
    %v3075 = vunpack.c.l.b16 %v915
    %v3076 = vunpack.c.h.b16 %v915
    %v3077 = vunpack.c.l.b16 %v916
    %v3078 = vunpack.c.h.b16 %v916
    %v3079 = vunpack.c.l.b16 %v917
    %v3080 = vunpack.c.h.b16 %v917
    %v3081 = vunpack.c.l.b16 %v918
    %v3082 = vunpack.c.h.b16 %v918
    %v3083 = vunpack.c.l.b16 %v919
    %v3084 = vunpack.c.h.b16 %v919
    %v3085 = vunpack.c.l.b16 %v920
    %v3086 = vunpack.c.h.b16 %v920
    %v3087 = vunpack.c.l.b16 %v921
    %v3088 = vunpack.c.h.b16 %v921
    %v3089 = vunpack.c.l.b16 %v922
    %v3090 = vunpack.c.h.b16 %v922
    %v3091 = vunpack.c.l.b16 %v923
    %v3092 = vunpack.c.h.b16 %v923
    %v3093 = vunpack.c.l.b16 %v924
    %v3094 = vunpack.c.h.b16 %v924
    %v3095 = vunpack.c.l.b16 %v925
    %v3096 = vunpack.c.h.b16 %v925
    %v3097 = vunpack.c.l.b16 %v926
    %v3098 = vunpack.c.h.b16 %v926
    %v3099 = vunpack.c.l.b16 %v927
    %v3100 = vunpack.c.h.b16 %v927
    %v3101 = vunpack.c.l.b16 %v928
    %v3102 = vunpack.c.h.b16 %v928
    %v3103 = vunpack.c.l.b16 %v929
    %v3104 = vunpack.c.h.b16 %v929
    %v3105 = vunpack.c.l.b16 %v930
    %v3106 = vunpack.c.h.b16 %v930
    %v3107 = vunpack.c.l.b16 %v931
    %v3108 = vunpack.c.h.b16 %v931
    %v3109 = vunpack.c.l.b16 %v932
    %v3110 = vunpack.c.h.b16 %v932
    %v3111 = vunpack.c.l.b16 %v933
    %v3112 = vunpack.c.h.b16 %v933
    %v3113 = vunpack.c.l.b16 %v934
    %v3114 = vunpack.c.h.b16 %v934
    %v3115 = vunpack.c.l.b16 %v935
    %v3116 = vunpack.c.h.b16 %v935
    %v3117 = vunpack.c.l.b16 %v936
    %v3118 = vunpack.c.h.b16 %v936
    %v3119 = vunpack.c.l.b16 %v937
    %v3120 = vunpack.c.h.b16 %v937
    %v3121 = vunpack.c.l.b16 %v938
    %v3122 = vunpack.c.h.b16 %v938
    %v3123 = vunpack.c.l.b16 %v939
    %v3124 = vunpack.c.h.b16 %v939
    %v3125 = vunpack.c.l.b16 %v940
    %v3126 = vunpack.c.h.b16 %v940
    %v3127 = vunpack.c.l.b16 %v941
    %v3128 = vunpack.c.h.b16 %v941
    %v3129 = vunpack.c.l.b16 %v942
    %v3130 = vunpack.c.h.b16 %v942
    %v3131 = vunpack.c.l.b16 %v943
    %v3132 = vunpack.c.h.b16 %v943
    %v3133 = vunpack.c.l.b16 %v944
    %v3134 = vunpack.c.h.b16 %v944
    %v3135 = vunpack.c.l.b16 %v945
    %v3136 = vunpack.c.h.b16 %v945
    %v3137 = vunpack.c.l.b16 %v946
    %v3138 = vunpack.c.h.b16 %v946
    %v3139 = vunpack.c.l.b16 %v947
    %v3140 = vunpack.c.h.b16 %v947
    %v3141 = vunpack.c.l.b16 %v948
    %v3142 = vunpack.c.h.b16 %v948
    %v3143 = vunpack.c.l.b16 %v949
    %v3144 = vunpack.c.h.b16 %v949
    %v3145 = vunpack.c.l.b16 %v950
    %v3146 = vunpack.c.h.b16 %v950
    %v3147 = vunpack.c.l.b16 %v951
    %v3148 = vunpack.c.h.b16 %v951
    %v3149 = vunpack.c.l.b16 %v952
    %v3150 = vunpack.c.h.b16 %v952
    %v3151 = vunpack.c.l.b16 %v953
    %v3152 = vunpack.c.h.b16 %v953
    %v3153 = vunpack.c.l.b16 %v954
    %v3154 = vunpack.c.h.b16 %v954
    %v3155 = vunpack.c.l.b16 %v955
    %v3156 = vunpack.c.h.b16 %v955
    %v3157 = vunpack.c.l.b16 %v956
    %v3158 = vunpack.c.h.b16 %v956
    %v3159 = vunpack.c.l.b16 %v957
    %v3160 = vunpack.c.h.b16 %v957
    %v3161 = vunpack.c.l.b16 %v958
    %v3162 = vunpack.c.h.b16 %v958
    %v3163 = vunpack.c.l.b16 %v959
    %v3164 = vunpack.c.h.b16 %v959
    %v3165 = vunpack.c.l.b16 %v960
    %v3166 = vunpack.c.h.b16 %v960
    %v3167 = vunpack.c.l.b16 %v961
    %v3168 = vunpack.c.h.b16 %v961
    %v3169 = vunpack.c.l.b16 %v962
    %v3170 = vunpack.c.h.b16 %v962
    %v3171 = vunpack.c.l.b16 %v963
    %v3172 = vunpack.c.h.b16 %v963
    %v3173 = vunpack.c.l.b16 %v964
    %v3174 = vunpack.c.h.b16 %v964
    %v3175 = vunpack.c.l.b16 %v965
    %v3176 = vunpack.c.h.b16 %v965
    %v3177 = vunpack.c.l.b16 %v966
    %v3178 = vunpack.c.h.b16 %v966
    %v3179 = vunpack.c.l.b16 %v967
    %v3180 = vunpack.c.h.b16 %v967
    %v3181 = vunpack.c.l.b16 %v968
    %v3182 = vunpack.c.h.b16 %v968
    %v3183 = vunpack.c.l.b16 %v969
    %v3184 = vunpack.c.h.b16 %v969
    %v3185 = vunpack.c.l.b16 %v970
    %v3186 = vunpack.c.h.b16 %v970
    %v3187 = vunpack.c.l.b16 %v971
    %v3188 = vunpack.c.h.b16 %v971
    %v3189 = vunpack.c.l.b16 %v972
    %v3190 = vunpack.c.h.b16 %v972
    %v3191 = vunpack.c.l.b16 %v973
    %v3192 = vunpack.c.h.b16 %v973
    %v3193 = vunpack.c.l.b16 %v974
    %v3194 = vunpack.c.h.b16 %v974
    %v3195 = vunpack.c.l.b16 %v975
    %v3196 = vunpack.c.h.b16 %v975
    %v3197 = vunpack.c.l.b16 %v976
    %v3198 = vunpack.c.h.b16 %v976
    %v3199 = vunpack.c.l.b16 %v977
    %v3200 = vunpack.c.h.b16 %v977
    %v3201 = vunpack.c.l.b16 %v978
    %v3202 = vunpack.c.h.b16 %v978
    %v3203 = vunpack.c.l.b16 %v979
    %v3204 = vunpack.c.h.b16 %v979
    %v3205 = vunpack.c.l.b16 %v980
    %v3206 = vunpack.c.h.b16 %v980
    %v3207 = vunpack.c.l.b16 %v981
    %v3208 = vunpack.c.h.b16 %v981
    %v3209 = vunpack.c.l.b16 %v982
    %v3210 = vunpack.c.h.b16 %v982
    %v3211 = vunpack.c.l.b16 %v983
    %v3212 = vunpack.c.h.b16 %v983
    %v3213 = vunpack.c.l.b16 %v984
    %v3214 = vunpack.c.h.b16 %v984
    %v3215 = vunpack.c.l.b16 %v985
    %v3216 = vunpack.c.h.b16 %v985
    %v3217 = vunpack.c.l.b16 %v986
    %v3218 = vunpack.c.h.b16 %v986
    %v3219 = vunpack.c.l.b16 %v987
    %v3220 = vunpack.c.h.b16 %v987
    %v3221 = vunpack.c.l.b16 %v988
    %v3222 = vunpack.c.h.b16 %v988
    %v3223 = vunpack.c.l.b16 %v989
    %v3224 = vunpack.c.h.b16 %v989
    %v3225 = vunpack.c.l.b16 %v990
    %v3226 = vunpack.c.h.b16 %v990
    %v3227 = vunpack.c.l.b16 %v991
    %v3228 = vunpack.c.h.b16 %v991
    %v3229 = vunpack.c.l.b16 %v992
    %v3230 = vunpack.c.h.b16 %v992
    %v3231 = vunpack.c.l.b16 %v993
    %v3232 = vunpack.c.h.b16 %v993
    %v3233 = vunpack.c.l.b16 %v994
    %v3234 = vunpack.c.h.b16 %v994
    %v3235 = vunpack.c.l.b16 %v995
    %v3236 = vunpack.c.h.b16 %v995
    %v3237 = vunpack.c.l.b16 %v996
    %v3238 = vunpack.c.h.b16 %v996
    %v3239 = vunpack.c.l.b16 %v997
    %v3240 = vunpack.c.h.b16 %v997
    %v3241 = vunpack.c.l.b16 %v998
    %v3242 = vunpack.c.h.b16 %v998
    %v3243 = vunpack.c.l.b16 %v999
    %v3244 = vunpack.c.h.b16 %v999
    %v3245 = vunpack.c.l.b16 %v1000
    %v3246 = vunpack.c.h.b16 %v1000
    %v3247 = vunpack.c.l.b16 %v1001
    %v3248 = vunpack.c.h.b16 %v1001
    %v3249 = vunpack.c.l.b16 %v1002
    %v3250 = vunpack.c.h.b16 %v1002
    %v3251 = vunpack.c.l.b16 %v1003
    %v3252 = vunpack.c.h.b16 %v1003
    %v3253 = vunpack.c.l.b16 %v1004
    %v3254 = vunpack.c.h.b16 %v1004
    %v3255 = vunpack.c.l.b16 %v1005
    %v3256 = vunpack.c.h.b16 %v1005
    %v3257 = vunpack.c.l.b16 %v1006
    %v3258 = vunpack.c.h.b16 %v1006
    %v3259 = vunpack.c.l.b16 %v1007
    %v3260 = vunpack.c.h.b16 %v1007
    %v3261 = vunpack.c.l.b16 %v1008
    %v3262 = vunpack.c.h.b16 %v1008
    %v3263 = vunpack.c.l.b16 %v1009
    %v3264 = vunpack.c.h.b16 %v1009
    %v3265 = vunpack.c.l.b16 %v1010
    %v3266 = vunpack.c.h.b16 %v1010
    %v3267 = vunpack.c.l.b16 %v1011
    %v3268 = vunpack.c.h.b16 %v1011
    %v3269 = vunpack.c.l.b16 %v1012
    %v3270 = vunpack.c.h.b16 %v1012
    %v3271 = vunpack.c.l.b16 %v1013
    %v3272 = vunpack.c.h.b16 %v1013
    %v3273 = vunpack.c.l.b16 %v1014
    %v3274 = vunpack.c.h.b16 %v1014
    %v3275 = vunpack.c.l.b16 %v1015
    %v3276 = vunpack.c.h.b16 %v1015
    %v3277 = vunpack.c.l.b16 %v1016
    %v3278 = vunpack.c.h.b16 %v1016
    %v3279 = vunpack.c.l.b16 %v1017
    %v3280 = vunpack.c.h.b16 %v1017
    %v3281 = vunpack.c.l.b16 %v1018
    %v3282 = vunpack.c.h.b16 %v1018
    %v3283 = vunpack.c.l.b16 %v1019
    %v3284 = vunpack.c.h.b16 %v1019
    %v3285 = vunpack.c.l.b16 %v1020
    %v3286 = vunpack.c.h.b16 %v1020
    %v3287 = vunpack.c.l.b16 %v1021
    %v3288 = vunpack.c.h.b16 %v1021
    %v3289 = vunpack.c.l.b16 %v1022
    %v3290 = vunpack.c.h.b16 %v1022
    %v3291 = vunpack.c.l.b16 %v1023
    %v3292 = vunpack.c.h.b16 %v1023
    %v3293 = vunpack.c.l.b16 %v1024
    %v3294 = vunpack.c.h.b16 %v1024
    %v3295 = vunpack.c.l.b16 %v1025
    %v3296 = vunpack.c.h.b16 %v1025
    %v3297 = vunpack.c.l.b16 %v1026
    %v3298 = vunpack.c.h.b16 %v1026
    %v3299 = vunpack.c.l.b16 %v1027
    %v3300 = vunpack.c.h.b16 %v1027
    %v3301 = vunpack.c.l.b16 %v1028
    %v3302 = vunpack.c.h.b16 %v1028
    %v3303 = vunpack.c.l.b16 %v1029
    %v3304 = vunpack.c.h.b16 %v1029
    %v3305 = vunpack.c.l.b16 %v1030
    %v3306 = vunpack.c.h.b16 %v1030
    %v3307 = vunpack.c.l.b16 %v1031
    %v3308 = vunpack.c.h.b16 %v1031
    %v3309 = vunpack.c.l.b16 %v1032
    %v3310 = vunpack.c.h.b16 %v1032
    %v3311 = vunpack.c.l.b16 %v1033
    %v3312 = vunpack.c.h.b16 %v1033
    %v3313 = vunpack.c.l.b16 %v1034
    %v3314 = vunpack.c.h.b16 %v1034
    %v3315 = vunpack.c.l.b16 %v1035
    %v3316 = vunpack.c.h.b16 %v1035
    %v3317 = vunpack.c.l.b16 %v1036
    %v3318 = vunpack.c.h.b16 %v1036
    %v3319 = vunpack.c.l.b16 %v1037
    %v3320 = vunpack.c.h.b16 %v1037
    %v3321 = vunpack.c.l.b16 %v1038
    %v3322 = vunpack.c.h.b16 %v1038
    %v3323 = vunpack.c.l.b16 %v1039
    %v3324 = vunpack.c.h.b16 %v1039
    %v3325 = vunpack.c.l.b16 %v1040
    %v3326 = vunpack.c.h.b16 %v1040
    %v3327 = vunpack.c.l.b16 %v1041
    %v3328 = vunpack.c.h.b16 %v1041
    %v3329 = vunpack.c.l.b16 %v1042
    %v3330 = vunpack.c.h.b16 %v1042
    %v3331 = vunpack.c.l.b16 %v1043
    %v3332 = vunpack.c.h.b16 %v1043
    %v3333 = vunpack.c.l.b16 %v1044
    %v3334 = vunpack.c.h.b16 %v1044
    %v3335 = vunpack.c.l.b16 %v1045
    %v3336 = vunpack.c.h.b16 %v1045
    %v3337 = vunpack.c.l.b16 %v1046
    %v3338 = vunpack.c.h.b16 %v1046
    %v3339 = vunpack.c.l.b16 %v1047
    %v3340 = vunpack.c.h.b16 %v1047
    %v3341 = vunpack.c.l.b16 %v1048
    %v3342 = vunpack.c.h.b16 %v1048
    %v3343 = vunpack.c.l.b16 %v1049
    %v3344 = vunpack.c.h.b16 %v1049
    %v3345 = vunpack.c.l.b16 %v1050
    %v3346 = vunpack.c.h.b16 %v1050
    %v3347 = vunpack.c.l.b16 %v1051
    %v3348 = vunpack.c.h.b16 %v1051
    %v3349 = vunpack.c.l.b16 %v1052
    %v3350 = vunpack.c.h.b16 %v1052
    %v3351 = vunpack.c.l.b16 %v1053
    %v3352 = vunpack.c.h.b16 %v1053
    %v3353 = vunpack.c.l.b16 %v1054
    %v3354 = vunpack.c.h.b16 %v1054
    %v3355 = vunpack.c.l.b16 %v1055
    %v3356 = vunpack.c.h.b16 %v1055
    %v3357 = vunpack.c.l.b16 %v1056
    %v3358 = vunpack.c.h.b16 %v1056
    %v3359 = vunpack.c.l.b16 %v1057
    %v3360 = vunpack.c.h.b16 %v1057
    %v3361 = vunpack.c.l.b16 %v1058
    %v3362 = vunpack.c.h.b16 %v1058
    %v3363 = vunpack.c.l.b16 %v1059
    %v3364 = vunpack.c.h.b16 %v1059
    %v3365 = vunpack.c.l.b16 %v1060
    %v3366 = vunpack.c.h.b16 %v1060
    %v3367 = vunpack.c.l.b16 %v1061
    %v3368 = vunpack.c.h.b16 %v1061
    %v3369 = vunpack.c.l.b16 %v1062
    %v3370 = vunpack.c.h.b16 %v1062
    %v3371 = vunpack.c.l.b16 %v1063
    %v3372 = vunpack.c.h.b16 %v1063
    %v3373 = vunpack.c.l.b16 %v1064
    %v3374 = vunpack.c.h.b16 %v1064
    %v3375 = vunpack.c.l.b16 %v1065
    %v3376 = vunpack.c.h.b16 %v1065
    %v3377 = vunpack.c.l.b16 %v1066
    %v3378 = vunpack.c.h.b16 %v1066
    %v3379 = vunpack.c.l.b16 %v1067
    %v3380 = vunpack.c.h.b16 %v1067
    %v3381 = vunpack.c.l.b16 %v1068
    %v3382 = vunpack.c.h.b16 %v1068
    %v3383 = vunpack.c.l.b16 %v1069
    %v3384 = vunpack.c.h.b16 %v1069
    %v3385 = vunpack.c.l.b16 %v1070
    %v3386 = vunpack.c.h.b16 %v1070
    %v3387 = vunpack.c.l.b16 %v1071
    %v3388 = vunpack.c.h.b16 %v1071
    %v3389 = vunpack.c.l.b16 %v1072
    %v3390 = vunpack.c.h.b16 %v1072
    %v3391 = vunpack.c.l.b16 %v1073
    %v3392 = vunpack.c.h.b16 %v1073
    %v3393 = vunpack.c.l.b16 %v1074
    %v3394 = vunpack.c.h.b16 %v1074
    %v3395 = vunpack.c.l.b16 %v1075
    %v3396 = vunpack.c.h.b16 %v1075
    %v3397 = vunpack.c.l.b16 %v1076
    %v3398 = vunpack.c.h.b16 %v1076
    %v3399 = vunpack.c.l.b16 %v1077
    %v3400 = vunpack.c.h.b16 %v1077
    %v3401 = vunpack.c.l.b16 %v1078
    %v3402 = vunpack.c.h.b16 %v1078
    %v3403 = vunpack.c.l.b16 %v1079
    %v3404 = vunpack.c.h.b16 %v1079
    %v3405 = vunpack.c.l.b16 %v1080
    %v3406 = vunpack.c.h.b16 %v1080
    %v3407 = vunpack.c.l.b16 %v1081
    %v3408 = vunpack.c.h.b16 %v1081
    %v3409 = vunpack.c.l.b16 %v1082
    %v3410 = vunpack.c.h.b16 %v1082
    %v3411 = vunpack.c.l.b16 %v1083
    %v3412 = vunpack.c.h.b16 %v1083
    %v3413 = vunpack.c.l.b16 %v1084
    %v3414 = vunpack.c.h.b16 %v1084
    %v3415 = vunpack.c.l.b16 %v1085
    %v3416 = vunpack.c.h.b16 %v1085
    %v3417 = vunpack.c.l.b16 %v1086
    %v3418 = vunpack.c.h.b16 %v1086
    %v3419 = vunpack.c.l.b16 %v1087
    %v3420 = vunpack.c.h.b16 %v1087
    %v3421 = vunpack.c.l.b16 %v1088
    %v3422 = vunpack.c.h.b16 %v1088
    %v3423 = vunpack.c.l.b16 %v1089
    %v3424 = vunpack.c.h.b16 %v1089
    %v3425 = vunpack.c.l.b16 %v1090
    %v3426 = vunpack.c.h.b16 %v1090
    %v3427 = vunpack.c.l.b16 %v1091
    %v3428 = vunpack.c.h.b16 %v1091
    %v3429 = vunpack.c.l.b16 %v1092
    %v3430 = vunpack.c.h.b16 %v1092
    %v3431 = vunpack.c.l.b16 %v1093
    %v3432 = vunpack.c.h.b16 %v1093
    %v3433 = vunpack.c.l.b16 %v1094
    %v3434 = vunpack.c.h.b16 %v1094
    %v3435 = vunpack.c.l.b16 %v1095
    %v3436 = vunpack.c.h.b16 %v1095
    %v3437 = vunpack.c.l.b16 %v1096
    %v3438 = vunpack.c.h.b16 %v1096
    %v3439 = vunpack.c.l.b16 %v1097
    %v3440 = vunpack.c.h.b16 %v1097
    %v3441 = vunpack.c.l.b16 %v1098
    %v3442 = vunpack.c.h.b16 %v1098
    %v3443 = vunpack.c.l.b16 %v1099
    %v3444 = vunpack.c.h.b16 %v1099
    %v3445 = vunpack.c.l.b16 %v1100
    %v3446 = vunpack.c.h.b16 %v1100
    %v3447 = vunpack.c.l.b16 %v1101
    %v3448 = vunpack.c.h.b16 %v1101
    %v3449 = vunpack.c.l.b16 %v1102
    %v3450 = vunpack.c.h.b16 %v1102
    %v3451 = vunpack.c.l.b16 %v1103
    %v3452 = vunpack.c.h.b16 %v1103
    %v3453 = vunpack.c.l.b16 %v1104
    %v3454 = vunpack.c.h.b16 %v1104
    %v3455 = vunpack.c.l.b16 %v1105
    %v3456 = vunpack.c.h.b16 %v1105
    %v3457 = vunpack.c.l.b16 %v1106
    %v3458 = vunpack.c.h.b16 %v1106
    %v3459 = vunpack.c.l.b16 %v1107
    %v3460 = vunpack.c.h.b16 %v1107
    %v3461 = vunpack.c.l.b16 %v1108
    %v3462 = vunpack.c.h.b16 %v1108
    %v3463 = vunpack.c.l.b16 %v1109
    %v3464 = vunpack.c.h.b16 %v1109
    %v3465 = vunpack.c.l.b16 %v1110
    %v3466 = vunpack.c.h.b16 %v1110
    %v3467 = vunpack.c.l.b16 %v1111
    %v3468 = vunpack.c.h.b16 %v1111
    %v3469 = vunpack.c.l.b16 %v1112
    %v3470 = vunpack.c.h.b16 %v1112
    %v3471 = vpack.c.b16 %v1959, %v1935
    %v3472 = vpack.c.b16 %v1960, %v1936
    %v3473 = vpack.c.b16 %v1961, %v1937
    %v3474 = vpack.c.b16 %v1962, %v1938
    %v3475 = vpack.c.b16 %v1963, %v1939
    %v3476 = vpack.c.b16 %v1964, %v1940
    %v3477 = vpack.c.b16 %v1965, %v1941
    %v3478 = vpack.c.b16 %v1966, %v1942
    %v3479 = vpack.c.b16 %v1967, %v1943
    %v3480 = vpack.c.b16 %v1968, %v1944
    %v3481 = vpack.c.b16 %v1969, %v1945
    %v3482 = vpack.c.b16 %v1970, %v1946
    %v3483 = vpack.c.b16 %v1971, %v1947
    %v3484 = vpack.c.b16 %v1972, %v1948
    %v3485 = vpack.c.b16 %v1973, %v1949
    %v3486 = vpack.c.b16 %v1974, %v1950
    %v3487 = vpack.c.b16 %v1975, %v1951
    %v3488 = vpack.c.b16 %v1976, %v1952
    %v3489 = vpack.c.b16 %v1977, %v1953
    %v3490 = vpack.c.b16 %v1978, %v1954
    %v3491 = vpack.c.b16 %v1979, %v1955
    %v3492 = vpack.c.b16 %v1980, %v1956
    %v3493 = vpack.c.b16 %v1981, %v1957
    %v3494 = vpack.c.b16 %v1982, %v1958
    %v3495 = vpack.c.b16 %v2007, %v1983
    %v3496 = vpack.c.b16 %v2008, %v1984
    %v3497 = vpack.c.b16 %v2009, %v1985
    %v3498 = vpack.c.b16 %v2010, %v1986
    %v3499 = vpack.c.b16 %v2011, %v1987
    %v3500 = vpack.c.b16 %v2012, %v1988
    %v3501 = vpack.c.b16 %v2013, %v1989
    %v3502 = vpack.c.b16 %v2014, %v1990
    %v3503 = vpack.c.b16 %v2015, %v1991
    %v3504 = vpack.c.b16 %v2016, %v1992
    %v3505 = vpack.c.b16 %v2017, %v1993
    %v3506 = vpack.c.b16 %v2018, %v1994
    %v3507 = vpack.c.b16 %v2019, %v1995
    %v3508 = vpack.c.b16 %v2020, %v1996
    %v3509 = vpack.c.b16 %v2021, %v1997
    %v3510 = vpack.c.b16 %v2022, %v1998
    %v3511 = vpack.c.b16 %v2023, %v1999
    %v3512 = vpack.c.b16 %v2024, %v2000
    %v3513 = vpack.c.b16 %v2025, %v2001
    %v3514 = vpack.c.b16 %v2026, %v2002
    %v3515 = vpack.c.b16 %v2027, %v2003
    %v3516 = vpack.c.b16 %v2028, %v2004
    %v3517 = vpack.c.b16 %v2029, %v2005
    %v3518 = vpack.c.b16 %v2030, %v2006
    %v3519 = vpack.c.b16 %v2055, %v2031
    %v3520 = vpack.c.b16 %v2056, %v2032
    %v3521 = vpack.c.b16 %v2057, %v2033
    %v3522 = vpack.c.b16 %v2058, %v2034
    %v3523 = vpack.c.b16 %v2059, %v2035
    %v3524 = vpack.c.b16 %v2060, %v2036
    %v3525 = vpack.c.b16 %v2061, %v2037
    %v3526 = vpack.c.b16 %v2062, %v2038
    %v3527 = vpack.c.b16 %v2063, %v2039
    %v3528 = vpack.c.b16 %v2064, %v2040
    %v3529 = vpack.c.b16 %v2065, %v2041
    %v3530 = vpack.c.b16 %v2066, %v2042
    %v3531 = vpack.c.b16 %v2067, %v2043
    %v3532 = vpack.c.b16 %v2068, %v2044
    %v3533 = vpack.c.b16 %v2069, %v2045
    %v3534 = vpack.c.b16 %v2070, %v2046
    %v3535 = vpack.c.b16 %v2071, %v2047
    %v3536 = vpack.c.b16 %v2072, %v2048
    %v3537 = vpack.c.b16 %v2073, %v2049
    %v3538 = vpack.c.b16 %v2074, %v2050
    %v3539 = vpack.c.b16 %v2075, %v2051
    %v3540 = vpack.c.b16 %v2076, %v2052
    %v3541 = vpack.c.b16 %v2077, %v2053
    %v3542 = vpack.c.b16 %v2078, %v2054
    %v3543 = vpack.c.b16 %v2103, %v2079
    %v3544 = vpack.c.b16 %v2104, %v2080
    %v3545 = vpack.c.b16 %v2105, %v2081
    %v3546 = vpack.c.b16 %v2106, %v2082
    %v3547 = vpack.c.b16 %v2107, %v2083
    %v3548 = vpack.c.b16 %v2108, %v2084
    %v3549 = vpack.c.b16 %v2109, %v2085
    %v3550 = vpack.c.b16 %v2110, %v2086
    %v3551 = vpack.c.b16 %v2111, %v2087
    %v3552 = vpack.c.b16 %v2112, %v2088
    %v3553 = vpack.c.b16 %v2113, %v2089
    %v3554 = vpack.c.b16 %v2114, %v2090
    %v3555 = vpack.c.b16 %v2115, %v2091
    %v3556 = vpack.c.b16 %v2116, %v2092
    %v3557 = vpack.c.b16 %v2117, %v2093
    %v3558 = vpack.c.b16 %v2118, %v2094
    %v3559 = vpack.c.b16 %v2119, %v2095
    %v3560 = vpack.c.b16 %v2120, %v2096
    %v3561 = vpack.c.b16 %v2121, %v2097
    %v3562 = vpack.c.b16 %v2122, %v2098
    %v3563 = vpack.c.b16 %v2123, %v2099
    %v3564 = vpack.c.b16 %v2124, %v2100
    %v3565 = vpack.c.b16 %v2125, %v2101
    %v3566 = vpack.c.b16 %v2126, %v2102
    %v3567 = vpack.c.b16 %v2151, %v2127
    %v3568 = vpack.c.b16 %v2152, %v2128
    %v3569 = vpack.c.b16 %v2153, %v2129
    %v3570 = vpack.c.b16 %v2154, %v2130
    %v3571 = vpack.c.b16 %v2155, %v2131
    %v3572 = vpack.c.b16 %v2156, %v2132
    %v3573 = vpack.c.b16 %v2157, %v2133
    %v3574 = vpack.c.b16 %v2158, %v2134
    %v3575 = vpack.c.b16 %v2159, %v2135
    %v3576 = vpack.c.b16 %v2160, %v2136
    %v3577 = vpack.c.b16 %v2161, %v2137
    %v3578 = vpack.c.b16 %v2162, %v2138
    %v3579 = vpack.c.b16 %v2163, %v2139
    %v3580 = vpack.c.b16 %v2164, %v2140
    %v3581 = vpack.c.b16 %v2165, %v2141
    %v3582 = vpack.c.b16 %v2166, %v2142
    %v3583 = vpack.c.b16 %v2167, %v2143
    %v3584 = vpack.c.b16 %v2168, %v2144
    %v3585 = vpack.c.b16 %v2169, %v2145
    %v3586 = vpack.c.b16 %v2170, %v2146
    %v3587 = vpack.c.b16 %v2171, %v2147
    %v3588 = vpack.c.b16 %v2172, %v2148
    %v3589 = vpack.c.b16 %v2173, %v2149
    %v3590 = vpack.c.b16 %v2174, %v2150
    %v3591 = vpack.c.b16 %v2199, %v2175
    %v3592 = vpack.c.b16 %v2200, %v2176
    %v3593 = vpack.c.b16 %v2201, %v2177
    %v3594 = vpack.c.b16 %v2202, %v2178
    %v3595 = vpack.c.b16 %v2203, %v2179
    %v3596 = vpack.c.b16 %v2204, %v2180
    %v3597 = vpack.c.b16 %v2205, %v2181
    %v3598 = vpack.c.b16 %v2206, %v2182
    %v3599 = vpack.c.b16 %v2207, %v2183
    %v3600 = vpack.c.b16 %v2208, %v2184
    %v3601 = vpack.c.b16 %v2209, %v2185
    %v3602 = vpack.c.b16 %v2210, %v2186
    %v3603 = vpack.c.b16 %v2211, %v2187
    %v3604 = vpack.c.b16 %v2212, %v2188
    %v3605 = vpack.c.b16 %v2213, %v2189
    %v3606 = vpack.c.b16 %v2214, %v2190
    %v3607 = vpack.c.b16 %v2215, %v2191
    %v3608 = vpack.c.b16 %v2216, %v2192
    %v3609 = vpack.c.b16 %v2217, %v2193
    %v3610 = vpack.c.b16 %v2218, %v2194
    %v3611 = vpack.c.b16 %v2219, %v2195
    %v3612 = vpack.c.b16 %v2220, %v2196
    %v3613 = vpack.c.b16 %v2221, %v2197
    %v3614 = vpack.c.b16 %v2222, %v2198
    %v3615 = vpack.c.b16 %v2247, %v2223
    %v3616 = vpack.c.b16 %v2248, %v2224
    %v3617 = vpack.c.b16 %v2249, %v2225
    %v3618 = vpack.c.b16 %v2250, %v2226
    %v3619 = vpack.c.b16 %v2251, %v2227
    %v3620 = vpack.c.b16 %v2252, %v2228
    %v3621 = vpack.c.b16 %v2253, %v2229
    %v3622 = vpack.c.b16 %v2254, %v2230
    %v3623 = vpack.c.b16 %v2255, %v2231
    %v3624 = vpack.c.b16 %v2256, %v2232
    %v3625 = vpack.c.b16 %v2257, %v2233
    %v3626 = vpack.c.b16 %v2258, %v2234
    %v3627 = vpack.c.b16 %v2259, %v2235
    %v3628 = vpack.c.b16 %v2260, %v2236
    %v3629 = vpack.c.b16 %v2261, %v2237
    %v3630 = vpack.c.b16 %v2262, %v2238
    %v3631 = vpack.c.b16 %v2263, %v2239
    %v3632 = vpack.c.b16 %v2264, %v2240
    %v3633 = vpack.c.b16 %v2265, %v2241
    %v3634 = vpack.c.b16 %v2266, %v2242
    %v3635 = vpack.c.b16 %v2267, %v2243
    %v3636 = vpack.c.b16 %v2268, %v2244
    %v3637 = vpack.c.b16 %v2269, %v2245
    %v3638 = vpack.c.b16 %v2270, %v2246
    %v3639 = vpack.c.b16 %v2295, %v2271
    %v3640 = vpack.c.b16 %v2296, %v2272
    %v3641 = vpack.c.b16 %v2297, %v2273
    %v3642 = vpack.c.b16 %v2298, %v2274
    %v3643 = vpack.c.b16 %v2299, %v2275
    %v3644 = vpack.c.b16 %v2300, %v2276
    %v3645 = vpack.c.b16 %v2301, %v2277
    %v3646 = vpack.c.b16 %v2302, %v2278
    %v3647 = vpack.c.b16 %v2303, %v2279
    %v3648 = vpack.c.b16 %v2304, %v2280
    %v3649 = vpack.c.b16 %v2305, %v2281
    %v3650 = vpack.c.b16 %v2306, %v2282
    %v3651 = vpack.c.b16 %v2307, %v2283
    %v3652 = vpack.c.b16 %v2308, %v2284
    %v3653 = vpack.c.b16 %v2309, %v2285
    %v3654 = vpack.c.b16 %v2310, %v2286
    %v3655 = vpack.c.b16 %v2311, %v2287
    %v3656 = vpack.c.b16 %v2312, %v2288
    %v3657 = vpack.c.b16 %v2313, %v2289
    %v3658 = vpack.c.b16 %v2314, %v2290
    %v3659 = vpack.c.b16 %v2315, %v2291
    %v3660 = vpack.c.b16 %v2316, %v2292
    %v3661 = vpack.c.b16 %v2317, %v2293
    %v3662 = vpack.c.b16 %v2318, %v2294
    %v3663 = vpack.c.b16 %v2343, %v2319
    %v3664 = vpack.c.b16 %v2344, %v2320
    %v3665 = vpack.c.b16 %v2345, %v2321
    %v3666 = vpack.c.b16 %v2346, %v2322
    %v3667 = vpack.c.b16 %v2347, %v2323
    %v3668 = vpack.c.b16 %v2348, %v2324
    %v3669 = vpack.c.b16 %v2349, %v2325
    %v3670 = vpack.c.b16 %v2350, %v2326
    %v3671 = vpack.c.b16 %v2351, %v2327
    %v3672 = vpack.c.b16 %v2352, %v2328
    %v3673 = vpack.c.b16 %v2353, %v2329
    %v3674 = vpack.c.b16 %v2354, %v2330
    %v3675 = vpack.c.b16 %v2355, %v2331
    %v3676 = vpack.c.b16 %v2356, %v2332
    %v3677 = vpack.c.b16 %v2357, %v2333
    %v3678 = vpack.c.b16 %v2358, %v2334
    %v3679 = vpack.c.b16 %v2359, %v2335
    %v3680 = vpack.c.b16 %v2360, %v2336
    %v3681 = vpack.c.b16 %v2361, %v2337
    %v3682 = vpack.c.b16 %v2362, %v2338
    %v3683 = vpack.c.b16 %v2363, %v2339
    %v3684 = vpack.c.b16 %v2364, %v2340
    %v3685 = vpack.c.b16 %v2365, %v2341
    %v3686 = vpack.c.b16 %v2366, %v2342
    %v3687 = vpack.c.b16 %v2391, %v2367
    %v3688 = vpack.c.b16 %v2392, %v2368
    %v3689 = vpack.c.b16 %v2393, %v2369
    %v3690 = vpack.c.b16 %v2394, %v2370
    %v3691 = vpack.c.b16 %v2395, %v2371
    %v3692 = vpack.c.b16 %v2396, %v2372
    %v3693 = vpack.c.b16 %v2397, %v2373
    %v3694 = vpack.c.b16 %v2398, %v2374
    %v3695 = vpack.c.b16 %v2399, %v2375
    %v3696 = vpack.c.b16 %v2400, %v2376
    %v3697 = vpack.c.b16 %v2401, %v2377
    %v3698 = vpack.c.b16 %v2402, %v2378
    %v3699 = vpack.c.b16 %v2403, %v2379
    %v3700 = vpack.c.b16 %v2404, %v2380
    %v3701 = vpack.c.b16 %v2405, %v2381
    %v3702 = vpack.c.b16 %v2406, %v2382
    %v3703 = vpack.c.b16 %v2407, %v2383
    %v3704 = vpack.c.b16 %v2408, %v2384
    %v3705 = vpack.c.b16 %v2409, %v2385
    %v3706 = vpack.c.b16 %v2410, %v2386
    %v3707 = vpack.c.b16 %v2411, %v2387
    %v3708 = vpack.c.b16 %v2412, %v2388
    %v3709 = vpack.c.b16 %v2413, %v2389
    %v3710 = vpack.c.b16 %v2414, %v2390
    %v3711 = vpack.c.b16 %v2439, %v2415
    %v3712 = vpack.c.b16 %v2440, %v2416
    %v3713 = vpack.c.b16 %v2441, %v2417
    %v3714 = vpack.c.b16 %v2442, %v2418
    %v3715 = vpack.c.b16 %v2443, %v2419
    %v3716 = vpack.c.b16 %v2444, %v2420
    %v3717 = vpack.c.b16 %v2445, %v2421
    %v3718 = vpack.c.b16 %v2446, %v2422
    %v3719 = vpack.c.b16 %v2447, %v2423
    %v3720 = vpack.c.b16 %v2448, %v2424
    %v3721 = vpack.c.b16 %v2449, %v2425
    %v3722 = vpack.c.b16 %v2450, %v2426
    %v3723 = vpack.c.b16 %v2451, %v2427
    %v3724 = vpack.c.b16 %v2452, %v2428
    %v3725 = vpack.c.b16 %v2453, %v2429
    %v3726 = vpack.c.b16 %v2454, %v2430
    %v3727 = vpack.c.b16 %v2455, %v2431
    %v3728 = vpack.c.b16 %v2456, %v2432
    %v3729 = vpack.c.b16 %v2457, %v2433
    %v3730 = vpack.c.b16 %v2458, %v2434
    %v3731 = vpack.c.b16 %v2459, %v2435
    %v3732 = vpack.c.b16 %v2460, %v2436
    %v3733 = vpack.c.b16 %v2461, %v2437
    %v3734 = vpack.c.b16 %v2462, %v2438
    %v3735 = vpack.c.b16 %v2487, %v2463
    %v3736 = vpack.c.b16 %v2488, %v2464
    %v3737 = vpack.c.b16 %v2489, %v2465
    %v3738 = vpack.c.b16 %v2490, %v2466
    %v3739 = vpack.c.b16 %v2491, %v2467
    %v3740 = vpack.c.b16 %v2492, %v2468
    %v3741 = vpack.c.b16 %v2493, %v2469
    %v3742 = vpack.c.b16 %v2494, %v2470
    %v3743 = vpack.c.b16 %v2495, %v2471
    %v3744 = vpack.c.b16 %v2496, %v2472
    %v3745 = vpack.c.b16 %v2497, %v2473
    %v3746 = vpack.c.b16 %v2498, %v2474
    %v3747 = vpack.c.b16 %v2499, %v2475
    %v3748 = vpack.c.b16 %v2500, %v2476
    %v3749 = vpack.c.b16 %v2501, %v2477
    %v3750 = vpack.c.b16 %v2502, %v2478
    %v3751 = vpack.c.b16 %v2503, %v2479
    %v3752 = vpack.c.b16 %v2504, %v2480
    %v3753 = vpack.c.b16 %v2505, %v2481
    %v3754 = vpack.c.b16 %v2506, %v2482
    %v3755 = vpack.c.b16 %v2507, %v2483
    %v3756 = vpack.c.b16 %v2508, %v2484
    %v3757 = vpack.c.b16 %v2509, %v2485
    %v3758 = vpack.c.b16 %v2510, %v2486
    %v3759 = vpack.c.b16 %v2535, %v2511
    %v3760 = vpack.c.b16 %v2536, %v2512
    %v3761 = vpack.c.b16 %v2537, %v2513
    %v3762 = vpack.c.b16 %v2538, %v2514
    %v3763 = vpack.c.b16 %v2539, %v2515
    %v3764 = vpack.c.b16 %v2540, %v2516
    %v3765 = vpack.c.b16 %v2541, %v2517
    %v3766 = vpack.c.b16 %v2542, %v2518
    %v3767 = vpack.c.b16 %v2543, %v2519
    %v3768 = vpack.c.b16 %v2544, %v2520
    %v3769 = vpack.c.b16 %v2545, %v2521
    %v3770 = vpack.c.b16 %v2546, %v2522
    %v3771 = vpack.c.b16 %v2547, %v2523
    %v3772 = vpack.c.b16 %v2548, %v2524
    %v3773 = vpack.c.b16 %v2549, %v2525
    %v3774 = vpack.c.b16 %v2550, %v2526
    %v3775 = vpack.c.b16 %v2551, %v2527
    %v3776 = vpack.c.b16 %v2552, %v2528
    %v3777 = vpack.c.b16 %v2553, %v2529
    %v3778 = vpack.c.b16 %v2554, %v2530
    %v3779 = vpack.c.b16 %v2555, %v2531
    %v3780 = vpack.c.b16 %v2556, %v2532
    %v3781 = vpack.c.b16 %v2557, %v2533
    %v3782 = vpack.c.b16 %v2558, %v2534
    %v3783 = vpack.c.b16 %v2583, %v2559
    %v3784 = vpack.c.b16 %v2584, %v2560
    %v3785 = vpack.c.b16 %v2585, %v2561
    %v3786 = vpack.c.b16 %v2586, %v2562
    %v3787 = vpack.c.b16 %v2587, %v2563
    %v3788 = vpack.c.b16 %v2588, %v2564
    %v3789 = vpack.c.b16 %v2589, %v2565
    %v3790 = vpack.c.b16 %v2590, %v2566
    %v3791 = vpack.c.b16 %v2591, %v2567
    %v3792 = vpack.c.b16 %v2592, %v2568
    %v3793 = vpack.c.b16 %v2593, %v2569
    %v3794 = vpack.c.b16 %v2594, %v2570
    %v3795 = vpack.c.b16 %v2595, %v2571
    %v3796 = vpack.c.b16 %v2596, %v2572
    %v3797 = vpack.c.b16 %v2597, %v2573
    %v3798 = vpack.c.b16 %v2598, %v2574
    %v3799 = vpack.c.b16 %v2599, %v2575
    %v3800 = vpack.c.b16 %v2600, %v2576
    %v3801 = vpack.c.b16 %v2601, %v2577
    %v3802 = vpack.c.b16 %v2602, %v2578
    %v3803 = vpack.c.b16 %v2603, %v2579
    %v3804 = vpack.c.b16 %v2604, %v2580
    %v3805 = vpack.c.b16 %v2605, %v2581
    %v3806 = vpack.c.b16 %v2606, %v2582
    %v3807 = vpack.c.b16 %v2631, %v2607
    %v3808 = vpack.c.b16 %v2632, %v2608
    %v3809 = vpack.c.b16 %v2633, %v2609
    %v3810 = vpack.c.b16 %v2634, %v2610
    %v3811 = vpack.c.b16 %v2635, %v2611
    %v3812 = vpack.c.b16 %v2636, %v2612
    %v3813 = vpack.c.b16 %v2637, %v2613
    %v3814 = vpack.c.b16 %v2638, %v2614
    %v3815 = vpack.c.b16 %v2639, %v2615
    %v3816 = vpack.c.b16 %v2640, %v2616
    %v3817 = vpack.c.b16 %v2641, %v2617
    %v3818 = vpack.c.b16 %v2642, %v2618
    %v3819 = vpack.c.b16 %v2643, %v2619
    %v3820 = vpack.c.b16 %v2644, %v2620
    %v3821 = vpack.c.b16 %v2645, %v2621
    %v3822 = vpack.c.b16 %v2646, %v2622
    %v3823 = vpack.c.b16 %v2647, %v2623
    %v3824 = vpack.c.b16 %v2648, %v2624
    %v3825 = vpack.c.b16 %v2649, %v2625
    %v3826 = vpack.c.b16 %v2650, %v2626
    %v3827 = vpack.c.b16 %v2651, %v2627
    %v3828 = vpack.c.b16 %v2652, %v2628
    %v3829 = vpack.c.b16 %v2653, %v2629
    %v3830 = vpack.c.b16 %v2654, %v2630
    %v3831 = vpack.c.b16 %v2679, %v2655
    %v3832 = vpack.c.b16 %v2680, %v2656
    %v3833 = vpack.c.b16 %v2681, %v2657
    %v3834 = vpack.c.b16 %v2682, %v2658
    %v3835 = vpack.c.b16 %v2683, %v2659
    %v3836 = vpack.c.b16 %v2684, %v2660
    %v3837 = vpack.c.b16 %v2685, %v2661
    %v3838 = vpack.c.b16 %v2686, %v2662
    %v3839 = vpack.c.b16 %v2687, %v2663
    %v3840 = vpack.c.b16 %v2688, %v2664
    %v3841 = vpack.c.b16 %v2689, %v2665
    %v3842 = vpack.c.b16 %v2690, %v2666
    %v3843 = vpack.c.b16 %v2691, %v2667
    %v3844 = vpack.c.b16 %v2692, %v2668
    %v3845 = vpack.c.b16 %v2693, %v2669
    %v3846 = vpack.c.b16 %v2694, %v2670
    %v3847 = vpack.c.b16 %v2695, %v2671
    %v3848 = vpack.c.b16 %v2696, %v2672
    %v3849 = vpack.c.b16 %v2697, %v2673
    %v3850 = vpack.c.b16 %v2698, %v2674
    %v3851 = vpack.c.b16 %v2699, %v2675
    %v3852 = vpack.c.b16 %v2700, %v2676
    %v3853 = vpack.c.b16 %v2701, %v2677
    %v3854 = vpack.c.b16 %v2702, %v2678
    %v3855 = vpack.c.b16 %v2727, %v2703
    %v3856 = vpack.c.b16 %v2728, %v2704
    %v3857 = vpack.c.b16 %v2729, %v2705
    %v3858 = vpack.c.b16 %v2730, %v2706
    %v3859 = vpack.c.b16 %v2731, %v2707
    %v3860 = vpack.c.b16 %v2732, %v2708
    %v3861 = vpack.c.b16 %v2733, %v2709
    %v3862 = vpack.c.b16 %v2734, %v2710
    %v3863 = vpack.c.b16 %v2735, %v2711
    %v3864 = vpack.c.b16 %v2736, %v2712
    %v3865 = vpack.c.b16 %v2737, %v2713
    %v3866 = vpack.c.b16 %v2738, %v2714
    %v3867 = vpack.c.b16 %v2739, %v2715
    %v3868 = vpack.c.b16 %v2740, %v2716
    %v3869 = vpack.c.b16 %v2741, %v2717
    %v3870 = vpack.c.b16 %v2742, %v2718
    %v3871 = vpack.c.b16 %v2743, %v2719
    %v3872 = vpack.c.b16 %v2744, %v2720
    %v3873 = vpack.c.b16 %v2745, %v2721
    %v3874 = vpack.c.b16 %v2746, %v2722
    %v3875 = vpack.c.b16 %v2747, %v2723
    %v3876 = vpack.c.b16 %v2748, %v2724
    %v3877 = vpack.c.b16 %v2749, %v2725
    %v3878 = vpack.c.b16 %v2750, %v2726
    %v3879 = vpack.c.b16 %v2775, %v2751
    %v3880 = vpack.c.b16 %v2776, %v2752
    %v3881 = vpack.c.b16 %v2777, %v2753
    %v3882 = vpack.c.b16 %v2778, %v2754
    %v3883 = vpack.c.b16 %v2779, %v2755
    %v3884 = vpack.c.b16 %v2780, %v2756
    %v3885 = vpack.c.b16 %v2781, %v2757
    %v3886 = vpack.c.b16 %v2782, %v2758
    %v3887 = vpack.c.b16 %v2783, %v2759
    %v3888 = vpack.c.b16 %v2784, %v2760
    %v3889 = vpack.c.b16 %v2785, %v2761
    %v3890 = vpack.c.b16 %v2786, %v2762
    %v3891 = vpack.c.b16 %v2787, %v2763
    %v3892 = vpack.c.b16 %v2788, %v2764
    %v3893 = vpack.c.b16 %v2789, %v2765
    %v3894 = vpack.c.b16 %v2790, %v2766
    %v3895 = vpack.c.b16 %v2791, %v2767
    %v3896 = vpack.c.b16 %v2792, %v2768
    %v3897 = vpack.c.b16 %v2793, %v2769
    %v3898 = vpack.c.b16 %v2794, %v2770
    %v3899 = vpack.c.b16 %v2795, %v2771
    %v3900 = vpack.c.b16 %v2796, %v2772
    %v3901 = vpack.c.b16 %v2797, %v2773
    %v3902 = vpack.c.b16 %v2798, %v2774
    %v3903 = vpack.c.b16 %v2823, %v2799
    %v3904 = vpack.c.b16 %v2824, %v2800
    %v3905 = vpack.c.b16 %v2825, %v2801
    %v3906 = vpack.c.b16 %v2826, %v2802
    %v3907 = vpack.c.b16 %v2827, %v2803
    %v3908 = vpack.c.b16 %v2828, %v2804
    %v3909 = vpack.c.b16 %v2829, %v2805
    %v3910 = vpack.c.b16 %v2830, %v2806
    %v3911 = vpack.c.b16 %v2831, %v2807
    %v3912 = vpack.c.b16 %v2832, %v2808
    %v3913 = vpack.c.b16 %v2833, %v2809
    %v3914 = vpack.c.b16 %v2834, %v2810
    %v3915 = vpack.c.b16 %v2835, %v2811
    %v3916 = vpack.c.b16 %v2836, %v2812
    %v3917 = vpack.c.b16 %v2837, %v2813
    %v3918 = vpack.c.b16 %v2838, %v2814
    %v3919 = vpack.c.b16 %v2839, %v2815
    %v3920 = vpack.c.b16 %v2840, %v2816
    %v3921 = vpack.c.b16 %v2841, %v2817
    %v3922 = vpack.c.b16 %v2842, %v2818
    %v3923 = vpack.c.b16 %v2843, %v2819
    %v3924 = vpack.c.b16 %v2844, %v2820
    %v3925 = vpack.c.b16 %v2845, %v2821
    %v3926 = vpack.c.b16 %v2846, %v2822
    %v3927 = vpack.c.b16 %v2871, %v2847
    %v3928 = vpack.c.b16 %v2872, %v2848
    %v3929 = vpack.c.b16 %v2873, %v2849
    %v3930 = vpack.c.b16 %v2874, %v2850
    %v3931 = vpack.c.b16 %v2875, %v2851
    %v3932 = vpack.c.b16 %v2876, %v2852
    %v3933 = vpack.c.b16 %v2877, %v2853
    %v3934 = vpack.c.b16 %v2878, %v2854
    %v3935 = vpack.c.b16 %v2879, %v2855
    %v3936 = vpack.c.b16 %v2880, %v2856
    %v3937 = vpack.c.b16 %v2881, %v2857
    %v3938 = vpack.c.b16 %v2882, %v2858
    %v3939 = vpack.c.b16 %v2883, %v2859
    %v3940 = vpack.c.b16 %v2884, %v2860
    %v3941 = vpack.c.b16 %v2885, %v2861
    %v3942 = vpack.c.b16 %v2886, %v2862
    %v3943 = vpack.c.b16 %v2887, %v2863
    %v3944 = vpack.c.b16 %v2888, %v2864
    %v3945 = vpack.c.b16 %v2889, %v2865
    %v3946 = vpack.c.b16 %v2890, %v2866
    %v3947 = vpack.c.b16 %v2891, %v2867
    %v3948 = vpack.c.b16 %v2892, %v2868
    %v3949 = vpack.c.b16 %v2893, %v2869
    %v3950 = vpack.c.b16 %v2894, %v2870
    %v3951 = vpack.c.b16 %v2919, %v2895
    %v3952 = vpack.c.b16 %v2920, %v2896
    %v3953 = vpack.c.b16 %v2921, %v2897
    %v3954 = vpack.c.b16 %v2922, %v2898
    %v3955 = vpack.c.b16 %v2923, %v2899
    %v3956 = vpack.c.b16 %v2924, %v2900
    %v3957 = vpack.c.b16 %v2925, %v2901
    %v3958 = vpack.c.b16 %v2926, %v2902
    %v3959 = vpack.c.b16 %v2927, %v2903
    %v3960 = vpack.c.b16 %v2928, %v2904
    %v3961 = vpack.c.b16 %v2929, %v2905
    %v3962 = vpack.c.b16 %v2930, %v2906
    %v3963 = vpack.c.b16 %v2931, %v2907
    %v3964 = vpack.c.b16 %v2932, %v2908
    %v3965 = vpack.c.b16 %v2933, %v2909
    %v3966 = vpack.c.b16 %v2934, %v2910
    %v3967 = vpack.c.b16 %v2935, %v2911
    %v3968 = vpack.c.b16 %v2936, %v2912
    %v3969 = vpack.c.b16 %v2937, %v2913
    %v3970 = vpack.c.b16 %v2938, %v2914
    %v3971 = vpack.c.b16 %v2939, %v2915
    %v3972 = vpack.c.b16 %v2940, %v2916
    %v3973 = vpack.c.b16 %v2941, %v2917
    %v3974 = vpack.c.b16 %v2942, %v2918
    %v3975 = vpack.c.b16 %v2967, %v2943
    %v3976 = vpack.c.b16 %v2968, %v2944
    %v3977 = vpack.c.b16 %v2969, %v2945
    %v3978 = vpack.c.b16 %v2970, %v2946
    %v3979 = vpack.c.b16 %v2971, %v2947
    %v3980 = vpack.c.b16 %v2972, %v2948
    %v3981 = vpack.c.b16 %v2973, %v2949
    %v3982 = vpack.c.b16 %v2974, %v2950
    %v3983 = vpack.c.b16 %v2975, %v2951
    %v3984 = vpack.c.b16 %v2976, %v2952
    %v3985 = vpack.c.b16 %v2977, %v2953
    %v3986 = vpack.c.b16 %v2978, %v2954
    %v3987 = vpack.c.b16 %v2979, %v2955
    %v3988 = vpack.c.b16 %v2980, %v2956
    %v3989 = vpack.c.b16 %v2981, %v2957
    %v3990 = vpack.c.b16 %v2982, %v2958
    %v3991 = vpack.c.b16 %v2983, %v2959
    %v3992 = vpack.c.b16 %v2984, %v2960
    %v3993 = vpack.c.b16 %v2985, %v2961
    %v3994 = vpack.c.b16 %v2986, %v2962
    %v3995 = vpack.c.b16 %v2987, %v2963
    %v3996 = vpack.c.b16 %v2988, %v2964
    %v3997 = vpack.c.b16 %v2989, %v2965
    %v3998 = vpack.c.b16 %v2990, %v2966
    %v3999 = vpack.c.b16 %v3015, %v2991
    %v4000 = vpack.c.b16 %v3016, %v2992
    %v4001 = vpack.c.b16 %v3017, %v2993
    %v4002 = vpack.c.b16 %v3018, %v2994
    %v4003 = vpack.c.b16 %v3019, %v2995
    %v4004 = vpack.c.b16 %v3020, %v2996
    %v4005 = vpack.c.b16 %v3021, %v2997
    %v4006 = vpack.c.b16 %v3022, %v2998
    %v4007 = vpack.c.b16 %v3023, %v2999
    %v4008 = vpack.c.b16 %v3024, %v3000
    %v4009 = vpack.c.b16 %v3025, %v3001
    %v4010 = vpack.c.b16 %v3026, %v3002
    %v4011 = vpack.c.b16 %v3027, %v3003
    %v4012 = vpack.c.b16 %v3028, %v3004
    %v4013 = vpack.c.b16 %v3029, %v3005
    %v4014 = vpack.c.b16 %v3030, %v3006
    %v4015 = vpack.c.b16 %v3031, %v3007
    %v4016 = vpack.c.b16 %v3032, %v3008
    %v4017 = vpack.c.b16 %v3033, %v3009
    %v4018 = vpack.c.b16 %v3034, %v3010
    %v4019 = vpack.c.b16 %v3035, %v3011
    %v4020 = vpack.c.b16 %v3036, %v3012
    %v4021 = vpack.c.b16 %v3037, %v3013
    %v4022 = vpack.c.b16 %v3038, %v3014
    %v4023 = vpack.c.b16 %v3063, %v3039
    %v4024 = vpack.c.b16 %v3064, %v3040
    %v4025 = vpack.c.b16 %v3065, %v3041
    %v4026 = vpack.c.b16 %v3066, %v3042
    %v4027 = vpack.c.b16 %v3067, %v3043
    %v4028 = vpack.c.b16 %v3068, %v3044
    %v4029 = vpack.c.b16 %v3069, %v3045
    %v4030 = vpack.c.b16 %v3070, %v3046
    %v4031 = vpack.c.b16 %v3071, %v3047
    %v4032 = vpack.c.b16 %v3072, %v3048
    %v4033 = vpack.c.b16 %v3073, %v3049
    %v4034 = vpack.c.b16 %v3074, %v3050
    %v4035 = vpack.c.b16 %v3075, %v3051
    %v4036 = vpack.c.b16 %v3076, %v3052
    %v4037 = vpack.c.b16 %v3077, %v3053
    %v4038 = vpack.c.b16 %v3078, %v3054
    %v4039 = vpack.c.b16 %v3079, %v3055
    %v4040 = vpack.c.b16 %v3080, %v3056
    %v4041 = vpack.c.b16 %v3081, %v3057
    %v4042 = vpack.c.b16 %v3082, %v3058
    %v4043 = vpack.c.b16 %v3083, %v3059
    %v4044 = vpack.c.b16 %v3084, %v3060
    %v4045 = vpack.c.b16 %v3085, %v3061
    %v4046 = vpack.c.b16 %v3086, %v3062
    %v4047 = vpack.c.b16 %v3111, %v3087
    %v4048 = vpack.c.b16 %v3112, %v3088
    %v4049 = vpack.c.b16 %v3113, %v3089
    %v4050 = vpack.c.b16 %v3114, %v3090
    %v4051 = vpack.c.b16 %v3115, %v3091
    %v4052 = vpack.c.b16 %v3116, %v3092
    %v4053 = vpack.c.b16 %v3117, %v3093
    %v4054 = vpack.c.b16 %v3118, %v3094
    %v4055 = vpack.c.b16 %v3119, %v3095
    %v4056 = vpack.c.b16 %v3120, %v3096
    %v4057 = vpack.c.b16 %v3121, %v3097
    %v4058 = vpack.c.b16 %v3122, %v3098
    %v4059 = vpack.c.b16 %v3123, %v3099
    %v4060 = vpack.c.b16 %v3124, %v3100
    %v4061 = vpack.c.b16 %v3125, %v3101
    %v4062 = vpack.c.b16 %v3126, %v3102
    %v4063 = vpack.c.b16 %v3127, %v3103
    %v4064 = vpack.c.b16 %v3128, %v3104
    %v4065 = vpack.c.b16 %v3129, %v3105
    %v4066 = vpack.c.b16 %v3130, %v3106
    %v4067 = vpack.c.b16 %v3131, %v3107
    %v4068 = vpack.c.b16 %v3132, %v3108
    %v4069 = vpack.c.b16 %v3133, %v3109
    %v4070 = vpack.c.b16 %v3134, %v3110
    %v4071 = vpack.c.b16 %v3159, %v3135
    %v4072 = vpack.c.b16 %v3160, %v3136
    %v4073 = vpack.c.b16 %v3161, %v3137
    %v4074 = vpack.c.b16 %v3162, %v3138
    %v4075 = vpack.c.b16 %v3163, %v3139
    %v4076 = vpack.c.b16 %v3164, %v3140
    %v4077 = vpack.c.b16 %v3165, %v3141
    %v4078 = vpack.c.b16 %v3166, %v3142
    %v4079 = vpack.c.b16 %v3167, %v3143
    %v4080 = vpack.c.b16 %v3168, %v3144
    %v4081 = vpack.c.b16 %v3169, %v3145
    %v4082 = vpack.c.b16 %v3170, %v3146
    %v4083 = vpack.c.b16 %v3171, %v3147
    %v4084 = vpack.c.b16 %v3172, %v3148
    %v4085 = vpack.c.b16 %v3173, %v3149
    %v4086 = vpack.c.b16 %v3174, %v3150
    %v4087 = vpack.c.b16 %v3175, %v3151
    %v4088 = vpack.c.b16 %v3176, %v3152
    %v4089 = vpack.c.b16 %v3177, %v3153
    %v4090 = vpack.c.b16 %v3178, %v3154
    %v4091 = vpack.c.b16 %v3179, %v3155
    %v4092 = vpack.c.b16 %v3180, %v3156
    %v4093 = vpack.c.b16 %v3181, %v3157
    %v4094 = vpack.c.b16 %v3182, %v3158
    %v4095 = vpack.c.b16 %v3207, %v3183
    %v4096 = vpack.c.b16 %v3208, %v3184
    %v4097 = vpack.c.b16 %v3209, %v3185
    %v4098 = vpack.c.b16 %v3210, %v3186
    %v4099 = vpack.c.b16 %v3211, %v3187
    %v4100 = vpack.c.b16 %v3212, %v3188
    %v4101 = vpack.c.b16 %v3213, %v3189
    %v4102 = vpack.c.b16 %v3214, %v3190
    %v4103 = vpack.c.b16 %v3215, %v3191
    %v4104 = vpack.c.b16 %v3216, %v3192
    %v4105 = vpack.c.b16 %v3217, %v3193
    %v4106 = vpack.c.b16 %v3218, %v3194
    %v4107 = vpack.c.b16 %v3219, %v3195
    %v4108 = vpack.c.b16 %v3220, %v3196
    %v4109 = vpack.c.b16 %v3221, %v3197
    %v4110 = vpack.c.b16 %v3222, %v3198
    %v4111 = vpack.c.b16 %v3223, %v3199
    %v4112 = vpack.c.b16 %v3224, %v3200
    %v4113 = vpack.c.b16 %v3225, %v3201
    %v4114 = vpack.c.b16 %v3226, %v3202
    %v4115 = vpack.c.b16 %v3227, %v3203
    %v4116 = vpack.c.b16 %v3228, %v3204
    %v4117 = vpack.c.b16 %v3229, %v3205
    %v4118 = vpack.c.b16 %v3230, %v3206
    %v4119 = vpack.c.b16 %v3255, %v3231
    %v4120 = vpack.c.b16 %v3256, %v3232
    %v4121 = vpack.c.b16 %v3257, %v3233
    %v4122 = vpack.c.b16 %v3258, %v3234
    %v4123 = vpack.c.b16 %v3259, %v3235
    %v4124 = vpack.c.b16 %v3260, %v3236
    %v4125 = vpack.c.b16 %v3261, %v3237
    %v4126 = vpack.c.b16 %v3262, %v3238
    %v4127 = vpack.c.b16 %v3263, %v3239
    %v4128 = vpack.c.b16 %v3264, %v3240
    %v4129 = vpack.c.b16 %v3265, %v3241
    %v4130 = vpack.c.b16 %v3266, %v3242
    %v4131 = vpack.c.b16 %v3267, %v3243
    %v4132 = vpack.c.b16 %v3268, %v3244
    %v4133 = vpack.c.b16 %v3269, %v3245
    %v4134 = vpack.c.b16 %v3270, %v3246
    %v4135 = vpack.c.b16 %v3271, %v3247
    %v4136 = vpack.c.b16 %v3272, %v3248
    %v4137 = vpack.c.b16 %v3273, %v3249
    %v4138 = vpack.c.b16 %v3274, %v3250
    %v4139 = vpack.c.b16 %v3275, %v3251
    %v4140 = vpack.c.b16 %v3276, %v3252
    %v4141 = vpack.c.b16 %v3277, %v3253
    %v4142 = vpack.c.b16 %v3278, %v3254
    %v4143 = vpack.c.b16 %v3303, %v3279
    %v4144 = vpack.c.b16 %v3304, %v3280
    %v4145 = vpack.c.b16 %v3305, %v3281
    %v4146 = vpack.c.b16 %v3306, %v3282
    %v4147 = vpack.c.b16 %v3307, %v3283
    %v4148 = vpack.c.b16 %v3308, %v3284
    %v4149 = vpack.c.b16 %v3309, %v3285
    %v4150 = vpack.c.b16 %v3310, %v3286
    %v4151 = vpack.c.b16 %v3311, %v3287
    %v4152 = vpack.c.b16 %v3312, %v3288
    %v4153 = vpack.c.b16 %v3313, %v3289
    %v4154 = vpack.c.b16 %v3314, %v3290
    %v4155 = vpack.c.b16 %v3315, %v3291
    %v4156 = vpack.c.b16 %v3316, %v3292
    %v4157 = vpack.c.b16 %v3317, %v3293
    %v4158 = vpack.c.b16 %v3318, %v3294
    %v4159 = vpack.c.b16 %v3319, %v3295
    %v4160 = vpack.c.b16 %v3320, %v3296
    %v4161 = vpack.c.b16 %v3321, %v3297
    %v4162 = vpack.c.b16 %v3322, %v3298
    %v4163 = vpack.c.b16 %v3323, %v3299
    %v4164 = vpack.c.b16 %v3324, %v3300
    %v4165 = vpack.c.b16 %v3325, %v3301
    %v4166 = vpack.c.b16 %v3326, %v3302
    %v4167 = vpack.c.b16 %v3351, %v3327
    %v4168 = vpack.c.b16 %v3352, %v3328
    %v4169 = vpack.c.b16 %v3353, %v3329
    %v4170 = vpack.c.b16 %v3354, %v3330
    %v4171 = vpack.c.b16 %v3355, %v3331
    %v4172 = vpack.c.b16 %v3356, %v3332
    %v4173 = vpack.c.b16 %v3357, %v3333
    %v4174 = vpack.c.b16 %v3358, %v3334
    %v4175 = vpack.c.b16 %v3359, %v3335
    %v4176 = vpack.c.b16 %v3360, %v3336
    %v4177 = vpack.c.b16 %v3361, %v3337
    %v4178 = vpack.c.b16 %v3362, %v3338
    %v4179 = vpack.c.b16 %v3363, %v3339
    %v4180 = vpack.c.b16 %v3364, %v3340
    %v4181 = vpack.c.b16 %v3365, %v3341
    %v4182 = vpack.c.b16 %v3366, %v3342
    %v4183 = vpack.c.b16 %v3367, %v3343
    %v4184 = vpack.c.b16 %v3368, %v3344
    %v4185 = vpack.c.b16 %v3369, %v3345
    %v4186 = vpack.c.b16 %v3370, %v3346
    %v4187 = vpack.c.b16 %v3371, %v3347
    %v4188 = vpack.c.b16 %v3372, %v3348
    %v4189 = vpack.c.b16 %v3373, %v3349
    %v4190 = vpack.c.b16 %v3374, %v3350
    %v4191 = vpack.c.b16 %v3399, %v3375
    %v4192 = vpack.c.b16 %v3400, %v3376
    %v4193 = vpack.c.b16 %v3401, %v3377
    %v4194 = vpack.c.b16 %v3402, %v3378
    %v4195 = vpack.c.b16 %v3403, %v3379
    %v4196 = vpack.c.b16 %v3404, %v3380
    %v4197 = vpack.c.b16 %v3405, %v3381
    %v4198 = vpack.c.b16 %v3406, %v3382
    %v4199 = vpack.c.b16 %v3407, %v3383
    %v4200 = vpack.c.b16 %v3408, %v3384
    %v4201 = vpack.c.b16 %v3409, %v3385
    %v4202 = vpack.c.b16 %v3410, %v3386
    %v4203 = vpack.c.b16 %v3411, %v3387
    %v4204 = vpack.c.b16 %v3412, %v3388
    %v4205 = vpack.c.b16 %v3413, %v3389
    %v4206 = vpack.c.b16 %v3414, %v3390
    %v4207 = vpack.c.b16 %v3415, %v3391
    %v4208 = vpack.c.b16 %v3416, %v3392
    %v4209 = vpack.c.b16 %v3417, %v3393
    %v4210 = vpack.c.b16 %v3418, %v3394
    %v4211 = vpack.c.b16 %v3419, %v3395
    %v4212 = vpack.c.b16 %v3420, %v3396
    %v4213 = vpack.c.b16 %v3421, %v3397
    %v4214 = vpack.c.b16 %v3422, %v3398
    %v4215 = vpack.c.b16 %v3447, %v3423
    %v4216 = vpack.c.b16 %v3448, %v3424
    %v4217 = vpack.c.b16 %v3449, %v3425
    %v4218 = vpack.c.b16 %v3450, %v3426
    %v4219 = vpack.c.b16 %v3451, %v3427
    %v4220 = vpack.c.b16 %v3452, %v3428
    %v4221 = vpack.c.b16 %v3453, %v3429
    %v4222 = vpack.c.b16 %v3454, %v3430
    %v4223 = vpack.c.b16 %v3455, %v3431
    %v4224 = vpack.c.b16 %v3456, %v3432
    %v4225 = vpack.c.b16 %v3457, %v3433
    %v4226 = vpack.c.b16 %v3458, %v3434
    %v4227 = vpack.c.b16 %v3459, %v3435
    %v4228 = vpack.c.b16 %v3460, %v3436
    %v4229 = vpack.c.b16 %v3461, %v3437
    %v4230 = vpack.c.b16 %v3462, %v3438
    %v4231 = vpack.c.b16 %v3463, %v3439
    %v4232 = vpack.c.b16 %v3464, %v3440
    %v4233 = vpack.c.b16 %v3465, %v3441
    %v4234 = vpack.c.b16 %v3466, %v3442
    %v4235 = vpack.c.b16 %v3467, %v3443
    %v4236 = vpack.c.b16 %v3468, %v3444
    %v4237 = vpack.c.b16 %v3469, %v3445
    %v4238 = vpack.c.b16 %v3470, %v3446
    %5007 = vmatpush.bf16.msra.mxu0 %v3639
    %5008 = vmatpush.bf16.msra.mxu0 %v3615
    %5009 = vmatpush.bf16.msra.mxu0 %v3591
    %5010 = vmatpush.bf16.msra.mxu0 %v3567
    %5011 = vmatpush.bf16.msra.mxu0 %v3543
    %5012 = vmatpush.bf16.msra.mxu0 %v3519
    %5013 = vmatpush.bf16.msra.mxu0 %v3495
    %5014 = vmatpush.bf16.msra.mxu0 %v3471
    %5015 = vmatmul.bf16.gmra.mxu0 %v341
    %v5016 = vpop.f32.mrf.mxu0
    %v5017 = vadd.f32 %v1119, %v5016
    %v5018 = vpop.f32.mrf.mxu0
    %5019 = vdwg.mxu0
    %5020 = vmatpush.bf16.msra.mxu0 %v3831
    %5021 = vmatpush.bf16.msra.mxu0 %v3807
    %5022 = vmatpush.bf16.msra.mxu0 %v3783
    %5023 = vmatpush.bf16.msra.mxu0 %v3759
    %5024 = vmatpush.bf16.msra.mxu0 %v3735
    %5025 = vmatpush.bf16.msra.mxu0 %v3711
    %5026 = vmatpush.bf16.msra.mxu0 %v3687
    %5027 = vmatpush.bf16.msra.mxu0 %v3663
    %5028 = vmatmul.bf16.gmra.mxu0 %v342
    %v5029 = vpop.f32.mrf.mxu0
    %v5030 = vadd.f32 %v5017, %v5029
    %v5031 = vpop.f32.mrf.mxu0
    %5032 = vdwg.mxu0
    %5033 = vmatpush.bf16.msra.mxu0 %v4023
    %5034 = vmatpush.bf16.msra.mxu0 %v3999
    %5035 = vmatpush.bf16.msra.mxu0 %v3975
    %5036 = vmatpush.bf16.msra.mxu0 %v3951
    %5037 = vmatpush.bf16.msra.mxu0 %v3927
    %5038 = vmatpush.bf16.msra.mxu0 %v3903
    %5039 = vmatpush.bf16.msra.mxu0 %v3879
    %5040 = vmatpush.bf16.msra.mxu0 %v3855
    %5041 = vmatmul.bf16.gmra.mxu0 %v343
    %v5042 = vpop.f32.mrf.mxu0
    %v5043 = vadd.f32 %v5030, %v5042
    %v5044 = vpop.f32.mrf.mxu0
    %5045 = vdwg.mxu0
    %5046 = vmatpush.bf16.msra.mxu0 %v4215
    %5047 = vmatpush.bf16.msra.mxu0 %v4191
    %5048 = vmatpush.bf16.msra.mxu0 %v4167
    %5049 = vmatpush.bf16.msra.mxu0 %v4143
    %5050 = vmatpush.bf16.msra.mxu0 %v4119
    %5051 = vmatpush.bf16.msra.mxu0 %v4095
    %5052 = vmatpush.bf16.msra.mxu0 %v4071
    %5053 = vmatpush.bf16.msra.mxu0 %v4047
    %5054 = vmatmul.bf16.gmra.mxu0 %v344
    %v5055 = vpop.f32.mrf.mxu0
    %v5056 = vadd.f32 %v5043, %v5055
    %v5057 = vpop.f32.mrf.mxu0
    %5058 = vdwg.mxu0
    %5059 = vmatpush.bf16.msra.mxu0 %v3640
    %5060 = vmatpush.bf16.msra.mxu0 %v3616
    %5061 = vmatpush.bf16.msra.mxu0 %v3592
    %5062 = vmatpush.bf16.msra.mxu0 %v3568
    %5063 = vmatpush.bf16.msra.mxu0 %v3544
    %5064 = vmatpush.bf16.msra.mxu0 %v3520
    %5065 = vmatpush.bf16.msra.mxu0 %v3496
    %5066 = vmatpush.bf16.msra.mxu0 %v3472
    %5067 = vmatmul.bf16.gmra.mxu0 %v341
    %v5068 = vpop.f32.mrf.mxu0
    %v5069 = vadd.f32 %v1120, %v5068
    %v5070 = vpop.f32.mrf.mxu0
    %5071 = vdwg.mxu0
    %5072 = vmatpush.bf16.msra.mxu0 %v3832
    %5073 = vmatpush.bf16.msra.mxu0 %v3808
    %5074 = vmatpush.bf16.msra.mxu0 %v3784
    %5075 = vmatpush.bf16.msra.mxu0 %v3760
    %5076 = vmatpush.bf16.msra.mxu0 %v3736
    %5077 = vmatpush.bf16.msra.mxu0 %v3712
    %5078 = vmatpush.bf16.msra.mxu0 %v3688
    %5079 = vmatpush.bf16.msra.mxu0 %v3664
    %5080 = vmatmul.bf16.gmra.mxu0 %v342
    %v5081 = vpop.f32.mrf.mxu0
    %v5082 = vadd.f32 %v5069, %v5081
    %v5083 = vpop.f32.mrf.mxu0
    %5084 = vdwg.mxu0
    %5085 = vmatpush.bf16.msra.mxu0 %v4024
    %5086 = vmatpush.bf16.msra.mxu0 %v4000
    %5087 = vmatpush.bf16.msra.mxu0 %v3976
    %5088 = vmatpush.bf16.msra.mxu0 %v3952
    %5089 = vmatpush.bf16.msra.mxu0 %v3928
    %5090 = vmatpush.bf16.msra.mxu0 %v3904
    %5091 = vmatpush.bf16.msra.mxu0 %v3880
    %5092 = vmatpush.bf16.msra.mxu0 %v3856
    %5093 = vmatmul.bf16.gmra.mxu0 %v343
    %v5094 = vpop.f32.mrf.mxu0
    %v5095 = vadd.f32 %v5082, %v5094
    %v5096 = vpop.f32.mrf.mxu0
    %5097 = vdwg.mxu0
    %5098 = vmatpush.bf16.msra.mxu0 %v4216
    %5099 = vmatpush.bf16.msra.mxu0 %v4192
    %5100 = vmatpush.bf16.msra.mxu0 %v4168
    %5101 = vmatpush.bf16.msra.mxu0 %v4144
    %5102 = vmatpush.bf16.msra.mxu0 %v4120
    %5103 = vmatpush.bf16.msra.mxu0 %v4096
    %5104 = vmatpush.bf16.msra.mxu0 %v4072
    %5105 = vmatpush.bf16.msra.mxu0 %v4048
    %5106 = vmatmul.bf16.gmra.mxu0 %v344
    %v5107 = vpop.f32.mrf.mxu0
    %v5108 = vadd.f32 %v5095, %v5107
    %v5109 = vpop.f32.mrf.mxu0
    %5110 = vdwg.mxu0
    %5111 = vmatpush.bf16.msra.mxu0 %v3641
    %5112 = vmatpush.bf16.msra.mxu0 %v3617
    %5113 = vmatpush.bf16.msra.mxu0 %v3593
    %5114 = vmatpush.bf16.msra.mxu0 %v3569
    %5115 = vmatpush.bf16.msra.mxu0 %v3545
    %5116 = vmatpush.bf16.msra.mxu0 %v3521
    %5117 = vmatpush.bf16.msra.mxu0 %v3497
    %5118 = vmatpush.bf16.msra.mxu0 %v3473
    %5119 = vmatmul.bf16.gmra.mxu0 %v341
    %v5120 = vpop.f32.mrf.mxu0
    %v5121 = vadd.f32 %v1121, %v5120
    %v5122 = vpop.f32.mrf.mxu0
    %5123 = vdwg.mxu0
    %5124 = vmatpush.bf16.msra.mxu0 %v3833
    %5125 = vmatpush.bf16.msra.mxu0 %v3809
    %5126 = vmatpush.bf16.msra.mxu0 %v3785
    %5127 = vmatpush.bf16.msra.mxu0 %v3761
    %5128 = vmatpush.bf16.msra.mxu0 %v3737
    %5129 = vmatpush.bf16.msra.mxu0 %v3713
    %5130 = vmatpush.bf16.msra.mxu0 %v3689
    %5131 = vmatpush.bf16.msra.mxu0 %v3665
    %5132 = vmatmul.bf16.gmra.mxu0 %v342
    %v5133 = vpop.f32.mrf.mxu0
    %v5134 = vadd.f32 %v5121, %v5133
    %v5135 = vpop.f32.mrf.mxu0
    %5136 = vdwg.mxu0
    %5137 = vmatpush.bf16.msra.mxu0 %v4025
    %5138 = vmatpush.bf16.msra.mxu0 %v4001
    %5139 = vmatpush.bf16.msra.mxu0 %v3977
    %5140 = vmatpush.bf16.msra.mxu0 %v3953
    %5141 = vmatpush.bf16.msra.mxu0 %v3929
    %5142 = vmatpush.bf16.msra.mxu0 %v3905
    %5143 = vmatpush.bf16.msra.mxu0 %v3881
    %5144 = vmatpush.bf16.msra.mxu0 %v3857
    %5145 = vmatmul.bf16.gmra.mxu0 %v343
    %v5146 = vpop.f32.mrf.mxu0
    %v5147 = vadd.f32 %v5134, %v5146
    %v5148 = vpop.f32.mrf.mxu0
    %5149 = vdwg.mxu0
    %5150 = vmatpush.bf16.msra.mxu0 %v4217
    %5151 = vmatpush.bf16.msra.mxu0 %v4193
    %5152 = vmatpush.bf16.msra.mxu0 %v4169
    %5153 = vmatpush.bf16.msra.mxu0 %v4145
    %5154 = vmatpush.bf16.msra.mxu0 %v4121
    %5155 = vmatpush.bf16.msra.mxu0 %v4097
    %5156 = vmatpush.bf16.msra.mxu0 %v4073
    %5157 = vmatpush.bf16.msra.mxu0 %v4049
    %5158 = vmatmul.bf16.gmra.mxu0 %v344
    %v5159 = vpop.f32.mrf.mxu0
    %v5160 = vadd.f32 %v5147, %v5159
    %v5161 = vpop.f32.mrf.mxu0
    %5162 = vdwg.mxu0
    %5163 = vmatpush.bf16.msra.mxu0 %v3642
    %5164 = vmatpush.bf16.msra.mxu0 %v3618
    %5165 = vmatpush.bf16.msra.mxu0 %v3594
    %5166 = vmatpush.bf16.msra.mxu0 %v3570
    %5167 = vmatpush.bf16.msra.mxu0 %v3546
    %5168 = vmatpush.bf16.msra.mxu0 %v3522
    %5169 = vmatpush.bf16.msra.mxu0 %v3498
    %5170 = vmatpush.bf16.msra.mxu0 %v3474
    %5171 = vmatmul.bf16.gmra.mxu0 %v341
    %v5172 = vpop.f32.mrf.mxu0
    %v5173 = vadd.f32 %v1122, %v5172
    %v5174 = vpop.f32.mrf.mxu0
    %5175 = vdwg.mxu0
    %5176 = vmatpush.bf16.msra.mxu0 %v3834
    %5177 = vmatpush.bf16.msra.mxu0 %v3810
    %5178 = vmatpush.bf16.msra.mxu0 %v3786
    %5179 = vmatpush.bf16.msra.mxu0 %v3762
    %5180 = vmatpush.bf16.msra.mxu0 %v3738
    %5181 = vmatpush.bf16.msra.mxu0 %v3714
    %5182 = vmatpush.bf16.msra.mxu0 %v3690
    %5183 = vmatpush.bf16.msra.mxu0 %v3666
    %5184 = vmatmul.bf16.gmra.mxu0 %v342
    %v5185 = vpop.f32.mrf.mxu0
    %v5186 = vadd.f32 %v5173, %v5185
    %v5187 = vpop.f32.mrf.mxu0
    %5188 = vdwg.mxu0
    %5189 = vmatpush.bf16.msra.mxu0 %v4026
    %5190 = vmatpush.bf16.msra.mxu0 %v4002
    %5191 = vmatpush.bf16.msra.mxu0 %v3978
    %5192 = vmatpush.bf16.msra.mxu0 %v3954
    %5193 = vmatpush.bf16.msra.mxu0 %v3930
    %5194 = vmatpush.bf16.msra.mxu0 %v3906
    %5195 = vmatpush.bf16.msra.mxu0 %v3882
    %5196 = vmatpush.bf16.msra.mxu0 %v3858
    %5197 = vmatmul.bf16.gmra.mxu0 %v343
    %v5198 = vpop.f32.mrf.mxu0
    %v5199 = vadd.f32 %v5186, %v5198
    %v5200 = vpop.f32.mrf.mxu0
    %5201 = vdwg.mxu0
    %5202 = vmatpush.bf16.msra.mxu0 %v4218
    %5203 = vmatpush.bf16.msra.mxu0 %v4194
    %5204 = vmatpush.bf16.msra.mxu0 %v4170
    %5205 = vmatpush.bf16.msra.mxu0 %v4146
    %5206 = vmatpush.bf16.msra.mxu0 %v4122
    %5207 = vmatpush.bf16.msra.mxu0 %v4098
    %5208 = vmatpush.bf16.msra.mxu0 %v4074
    %5209 = vmatpush.bf16.msra.mxu0 %v4050
    %5210 = vmatmul.bf16.gmra.mxu0 %v344
    %v5211 = vpop.f32.mrf.mxu0
    %v5212 = vadd.f32 %v5199, %v5211
    %v5213 = vpop.f32.mrf.mxu0
    %5214 = vdwg.mxu0
    %5215 = vmatpush.bf16.msra.mxu0 %v3643
    %5216 = vmatpush.bf16.msra.mxu0 %v3619
    %5217 = vmatpush.bf16.msra.mxu0 %v3595
    %5218 = vmatpush.bf16.msra.mxu0 %v3571
    %5219 = vmatpush.bf16.msra.mxu0 %v3547
    %5220 = vmatpush.bf16.msra.mxu0 %v3523
    %5221 = vmatpush.bf16.msra.mxu0 %v3499
    %5222 = vmatpush.bf16.msra.mxu0 %v3475
    %5223 = vmatmul.bf16.gmra.mxu0 %v341
    %v5224 = vpop.f32.mrf.mxu0
    %v5225 = vadd.f32 %v1123, %v5224
    %v5226 = vpop.f32.mrf.mxu0
    %5227 = vdwg.mxu0
    %5228 = vmatpush.bf16.msra.mxu0 %v3835
    %5229 = vmatpush.bf16.msra.mxu0 %v3811
    %5230 = vmatpush.bf16.msra.mxu0 %v3787
    %5231 = vmatpush.bf16.msra.mxu0 %v3763
    %5232 = vmatpush.bf16.msra.mxu0 %v3739
    %5233 = vmatpush.bf16.msra.mxu0 %v3715
    %5234 = vmatpush.bf16.msra.mxu0 %v3691
    %5235 = vmatpush.bf16.msra.mxu0 %v3667
    %5236 = vmatmul.bf16.gmra.mxu0 %v342
    %v5237 = vpop.f32.mrf.mxu0
    %v5238 = vadd.f32 %v5225, %v5237
    %v5239 = vpop.f32.mrf.mxu0
    %5240 = vdwg.mxu0
    %5241 = vmatpush.bf16.msra.mxu0 %v4027
    %5242 = vmatpush.bf16.msra.mxu0 %v4003
    %5243 = vmatpush.bf16.msra.mxu0 %v3979
    %5244 = vmatpush.bf16.msra.mxu0 %v3955
    %5245 = vmatpush.bf16.msra.mxu0 %v3931
    %5246 = vmatpush.bf16.msra.mxu0 %v3907
    %5247 = vmatpush.bf16.msra.mxu0 %v3883
    %5248 = vmatpush.bf16.msra.mxu0 %v3859
    %5249 = vmatmul.bf16.gmra.mxu0 %v343
    %v5250 = vpop.f32.mrf.mxu0
    %v5251 = vadd.f32 %v5238, %v5250
    %v5252 = vpop.f32.mrf.mxu0
    %5253 = vdwg.mxu0
    %5254 = vmatpush.bf16.msra.mxu0 %v4219
    %5255 = vmatpush.bf16.msra.mxu0 %v4195
    %5256 = vmatpush.bf16.msra.mxu0 %v4171
    %5257 = vmatpush.bf16.msra.mxu0 %v4147
    %5258 = vmatpush.bf16.msra.mxu0 %v4123
    %5259 = vmatpush.bf16.msra.mxu0 %v4099
    %5260 = vmatpush.bf16.msra.mxu0 %v4075
    %5261 = vmatpush.bf16.msra.mxu0 %v4051
    %5262 = vmatmul.bf16.gmra.mxu0 %v344
    %v5263 = vpop.f32.mrf.mxu0
    %v5264 = vadd.f32 %v5251, %v5263
    %v5265 = vpop.f32.mrf.mxu0
    %5266 = vdwg.mxu0
    %5267 = vmatpush.bf16.msra.mxu0 %v3644
    %5268 = vmatpush.bf16.msra.mxu0 %v3620
    %5269 = vmatpush.bf16.msra.mxu0 %v3596
    %5270 = vmatpush.bf16.msra.mxu0 %v3572
    %5271 = vmatpush.bf16.msra.mxu0 %v3548
    %5272 = vmatpush.bf16.msra.mxu0 %v3524
    %5273 = vmatpush.bf16.msra.mxu0 %v3500
    %5274 = vmatpush.bf16.msra.mxu0 %v3476
    %5275 = vmatmul.bf16.gmra.mxu0 %v341
    %v5276 = vpop.f32.mrf.mxu0
    %v5277 = vadd.f32 %v1124, %v5276
    %v5278 = vpop.f32.mrf.mxu0
    %5279 = vdwg.mxu0
    %5280 = vmatpush.bf16.msra.mxu0 %v3836
    %5281 = vmatpush.bf16.msra.mxu0 %v3812
    %5282 = vmatpush.bf16.msra.mxu0 %v3788
    %5283 = vmatpush.bf16.msra.mxu0 %v3764
    %5284 = vmatpush.bf16.msra.mxu0 %v3740
    %5285 = vmatpush.bf16.msra.mxu0 %v3716
    %5286 = vmatpush.bf16.msra.mxu0 %v3692
    %5287 = vmatpush.bf16.msra.mxu0 %v3668
    %5288 = vmatmul.bf16.gmra.mxu0 %v342
    %v5289 = vpop.f32.mrf.mxu0
    %v5290 = vadd.f32 %v5277, %v5289
    %v5291 = vpop.f32.mrf.mxu0
    %5292 = vdwg.mxu0
    %5293 = vmatpush.bf16.msra.mxu0 %v4028
    %5294 = vmatpush.bf16.msra.mxu0 %v4004
    %5295 = vmatpush.bf16.msra.mxu0 %v3980
    %5296 = vmatpush.bf16.msra.mxu0 %v3956
    %5297 = vmatpush.bf16.msra.mxu0 %v3932
    %5298 = vmatpush.bf16.msra.mxu0 %v3908
    %5299 = vmatpush.bf16.msra.mxu0 %v3884
    %5300 = vmatpush.bf16.msra.mxu0 %v3860
    %5301 = vmatmul.bf16.gmra.mxu0 %v343
    %v5302 = vpop.f32.mrf.mxu0
    %v5303 = vadd.f32 %v5290, %v5302
    %v5304 = vpop.f32.mrf.mxu0
    %5305 = vdwg.mxu0
    %5306 = vmatpush.bf16.msra.mxu0 %v4220
    %5307 = vmatpush.bf16.msra.mxu0 %v4196
    %5308 = vmatpush.bf16.msra.mxu0 %v4172
    %5309 = vmatpush.bf16.msra.mxu0 %v4148
    %5310 = vmatpush.bf16.msra.mxu0 %v4124
    %5311 = vmatpush.bf16.msra.mxu0 %v4100
    %5312 = vmatpush.bf16.msra.mxu0 %v4076
    %5313 = vmatpush.bf16.msra.mxu0 %v4052
    %5314 = vmatmul.bf16.gmra.mxu0 %v344
    %v5315 = vpop.f32.mrf.mxu0
    %v5316 = vadd.f32 %v5303, %v5315
    %v5317 = vpop.f32.mrf.mxu0
    %5318 = vdwg.mxu0
    %5319 = vmatpush.bf16.msra.mxu0 %v3645
    %5320 = vmatpush.bf16.msra.mxu0 %v3621
    %5321 = vmatpush.bf16.msra.mxu0 %v3597
    %5322 = vmatpush.bf16.msra.mxu0 %v3573
    %5323 = vmatpush.bf16.msra.mxu0 %v3549
    %5324 = vmatpush.bf16.msra.mxu0 %v3525
    %5325 = vmatpush.bf16.msra.mxu0 %v3501
    %5326 = vmatpush.bf16.msra.mxu0 %v3477
    %5327 = vmatmul.bf16.gmra.mxu0 %v341
    %v5328 = vpop.f32.mrf.mxu0
    %v5329 = vadd.f32 %v1125, %v5328
    %v5330 = vpop.f32.mrf.mxu0
    %5331 = vdwg.mxu0
    %5332 = vmatpush.bf16.msra.mxu0 %v3837
    %5333 = vmatpush.bf16.msra.mxu0 %v3813
    %5334 = vmatpush.bf16.msra.mxu0 %v3789
    %5335 = vmatpush.bf16.msra.mxu0 %v3765
    %5336 = vmatpush.bf16.msra.mxu0 %v3741
    %5337 = vmatpush.bf16.msra.mxu0 %v3717
    %5338 = vmatpush.bf16.msra.mxu0 %v3693
    %5339 = vmatpush.bf16.msra.mxu0 %v3669
    %5340 = vmatmul.bf16.gmra.mxu0 %v342
    %v5341 = vpop.f32.mrf.mxu0
    %v5342 = vadd.f32 %v5329, %v5341
    %v5343 = vpop.f32.mrf.mxu0
    %5344 = vdwg.mxu0
    %5345 = vmatpush.bf16.msra.mxu0 %v4029
    %5346 = vmatpush.bf16.msra.mxu0 %v4005
    %5347 = vmatpush.bf16.msra.mxu0 %v3981
    %5348 = vmatpush.bf16.msra.mxu0 %v3957
    %5349 = vmatpush.bf16.msra.mxu0 %v3933
    %5350 = vmatpush.bf16.msra.mxu0 %v3909
    %5351 = vmatpush.bf16.msra.mxu0 %v3885
    %5352 = vmatpush.bf16.msra.mxu0 %v3861
    %5353 = vmatmul.bf16.gmra.mxu0 %v343
    %v5354 = vpop.f32.mrf.mxu0
    %v5355 = vadd.f32 %v5342, %v5354
    %v5356 = vpop.f32.mrf.mxu0
    %5357 = vdwg.mxu0
    %5358 = vmatpush.bf16.msra.mxu0 %v4221
    %5359 = vmatpush.bf16.msra.mxu0 %v4197
    %5360 = vmatpush.bf16.msra.mxu0 %v4173
    %5361 = vmatpush.bf16.msra.mxu0 %v4149
    %5362 = vmatpush.bf16.msra.mxu0 %v4125
    %5363 = vmatpush.bf16.msra.mxu0 %v4101
    %5364 = vmatpush.bf16.msra.mxu0 %v4077
    %5365 = vmatpush.bf16.msra.mxu0 %v4053
    %5366 = vmatmul.bf16.gmra.mxu0 %v344
    %v5367 = vpop.f32.mrf.mxu0
    %v5368 = vadd.f32 %v5355, %v5367
    %v5369 = vpop.f32.mrf.mxu0
    %5370 = vdwg.mxu0
    %5371 = vmatpush.bf16.msra.mxu0 %v3646
    %5372 = vmatpush.bf16.msra.mxu0 %v3622
    %5373 = vmatpush.bf16.msra.mxu0 %v3598
    %5374 = vmatpush.bf16.msra.mxu0 %v3574
    %5375 = vmatpush.bf16.msra.mxu0 %v3550
    %5376 = vmatpush.bf16.msra.mxu0 %v3526
    %5377 = vmatpush.bf16.msra.mxu0 %v3502
    %5378 = vmatpush.bf16.msra.mxu0 %v3478
    %5379 = vmatmul.bf16.gmra.mxu0 %v341
    %v5380 = vpop.f32.mrf.mxu0
    %v5381 = vadd.f32 %v1126, %v5380
    %v5382 = vpop.f32.mrf.mxu0
    %5383 = vdwg.mxu0
    %5384 = vmatpush.bf16.msra.mxu0 %v3838
    %5385 = vmatpush.bf16.msra.mxu0 %v3814
    %5386 = vmatpush.bf16.msra.mxu0 %v3790
    %5387 = vmatpush.bf16.msra.mxu0 %v3766
    %5388 = vmatpush.bf16.msra.mxu0 %v3742
    %5389 = vmatpush.bf16.msra.mxu0 %v3718
    %5390 = vmatpush.bf16.msra.mxu0 %v3694
    %5391 = vmatpush.bf16.msra.mxu0 %v3670
    %5392 = vmatmul.bf16.gmra.mxu0 %v342
    %v5393 = vpop.f32.mrf.mxu0
    %v5394 = vadd.f32 %v5381, %v5393
    %v5395 = vpop.f32.mrf.mxu0
    %5396 = vdwg.mxu0
    %5397 = vmatpush.bf16.msra.mxu0 %v4030
    %5398 = vmatpush.bf16.msra.mxu0 %v4006
    %5399 = vmatpush.bf16.msra.mxu0 %v3982
    %5400 = vmatpush.bf16.msra.mxu0 %v3958
    %5401 = vmatpush.bf16.msra.mxu0 %v3934
    %5402 = vmatpush.bf16.msra.mxu0 %v3910
    %5403 = vmatpush.bf16.msra.mxu0 %v3886
    %5404 = vmatpush.bf16.msra.mxu0 %v3862
    %5405 = vmatmul.bf16.gmra.mxu0 %v343
    %v5406 = vpop.f32.mrf.mxu0
    %v5407 = vadd.f32 %v5394, %v5406
    %v5408 = vpop.f32.mrf.mxu0
    %5409 = vdwg.mxu0
    %5410 = vmatpush.bf16.msra.mxu0 %v4222
    %5411 = vmatpush.bf16.msra.mxu0 %v4198
    %5412 = vmatpush.bf16.msra.mxu0 %v4174
    %5413 = vmatpush.bf16.msra.mxu0 %v4150
    %5414 = vmatpush.bf16.msra.mxu0 %v4126
    %5415 = vmatpush.bf16.msra.mxu0 %v4102
    %5416 = vmatpush.bf16.msra.mxu0 %v4078
    %5417 = vmatpush.bf16.msra.mxu0 %v4054
    %5418 = vmatmul.bf16.gmra.mxu0 %v344
    %v5419 = vpop.f32.mrf.mxu0
    %v5420 = vadd.f32 %v5407, %v5419
    %v5421 = vpop.f32.mrf.mxu0
    %5422 = vdwg.mxu0
    %5423 = vmatpush.bf16.msra.mxu0 %v3647
    %5424 = vmatpush.bf16.msra.mxu0 %v3623
    %5425 = vmatpush.bf16.msra.mxu0 %v3599
    %5426 = vmatpush.bf16.msra.mxu0 %v3575
    %5427 = vmatpush.bf16.msra.mxu0 %v3551
    %5428 = vmatpush.bf16.msra.mxu0 %v3527
    %5429 = vmatpush.bf16.msra.mxu0 %v3503
    %5430 = vmatpush.bf16.msra.mxu0 %v3479
    %5431 = vmatmul.bf16.gmra.mxu0 %v341
    %v5432 = vpop.f32.mrf.mxu0
    %v5433 = vadd.f32 %v1127, %v5432
    %v5434 = vpop.f32.mrf.mxu0
    %5435 = vdwg.mxu0
    %5436 = vmatpush.bf16.msra.mxu0 %v3839
    %5437 = vmatpush.bf16.msra.mxu0 %v3815
    %5438 = vmatpush.bf16.msra.mxu0 %v3791
    %5439 = vmatpush.bf16.msra.mxu0 %v3767
    %5440 = vmatpush.bf16.msra.mxu0 %v3743
    %5441 = vmatpush.bf16.msra.mxu0 %v3719
    %5442 = vmatpush.bf16.msra.mxu0 %v3695
    %5443 = vmatpush.bf16.msra.mxu0 %v3671
    %5444 = vmatmul.bf16.gmra.mxu0 %v342
    %v5445 = vpop.f32.mrf.mxu0
    %v5446 = vadd.f32 %v5433, %v5445
    %v5447 = vpop.f32.mrf.mxu0
    %5448 = vdwg.mxu0
    %5449 = vmatpush.bf16.msra.mxu0 %v4031
    %5450 = vmatpush.bf16.msra.mxu0 %v4007
    %5451 = vmatpush.bf16.msra.mxu0 %v3983
    %5452 = vmatpush.bf16.msra.mxu0 %v3959
    %5453 = vmatpush.bf16.msra.mxu0 %v3935
    %5454 = vmatpush.bf16.msra.mxu0 %v3911
    %5455 = vmatpush.bf16.msra.mxu0 %v3887
    %5456 = vmatpush.bf16.msra.mxu0 %v3863
    %5457 = vmatmul.bf16.gmra.mxu0 %v343
    %v5458 = vpop.f32.mrf.mxu0
    %v5459 = vadd.f32 %v5446, %v5458
    %v5460 = vpop.f32.mrf.mxu0
    %5461 = vdwg.mxu0
    %5462 = vmatpush.bf16.msra.mxu0 %v4223
    %5463 = vmatpush.bf16.msra.mxu0 %v4199
    %5464 = vmatpush.bf16.msra.mxu0 %v4175
    %5465 = vmatpush.bf16.msra.mxu0 %v4151
    %5466 = vmatpush.bf16.msra.mxu0 %v4127
    %5467 = vmatpush.bf16.msra.mxu0 %v4103
    %5468 = vmatpush.bf16.msra.mxu0 %v4079
    %5469 = vmatpush.bf16.msra.mxu0 %v4055
    %5470 = vmatmul.bf16.gmra.mxu0 %v344
    %v5471 = vpop.f32.mrf.mxu0
    %v5472 = vadd.f32 %v5459, %v5471
    %v5473 = vpop.f32.mrf.mxu0
    %5474 = vdwg.mxu0
    %5475 = vmatpush.bf16.msra.mxu0 %v3648
    %5476 = vmatpush.bf16.msra.mxu0 %v3624
    %5477 = vmatpush.bf16.msra.mxu0 %v3600
    %5478 = vmatpush.bf16.msra.mxu0 %v3576
    %5479 = vmatpush.bf16.msra.mxu0 %v3552
    %5480 = vmatpush.bf16.msra.mxu0 %v3528
    %5481 = vmatpush.bf16.msra.mxu0 %v3504
    %5482 = vmatpush.bf16.msra.mxu0 %v3480
    %5483 = vmatmul.bf16.gmra.mxu0 %v341
    %v5484 = vpop.f32.mrf.mxu0
    %v5485 = vadd.f32 %v1128, %v5484
    %v5486 = vpop.f32.mrf.mxu0
    %5487 = vdwg.mxu0
    %5488 = vmatpush.bf16.msra.mxu0 %v3840
    %5489 = vmatpush.bf16.msra.mxu0 %v3816
    %5490 = vmatpush.bf16.msra.mxu0 %v3792
    %5491 = vmatpush.bf16.msra.mxu0 %v3768
    %5492 = vmatpush.bf16.msra.mxu0 %v3744
    %5493 = vmatpush.bf16.msra.mxu0 %v3720
    %5494 = vmatpush.bf16.msra.mxu0 %v3696
    %5495 = vmatpush.bf16.msra.mxu0 %v3672
    %5496 = vmatmul.bf16.gmra.mxu0 %v342
    %v5497 = vpop.f32.mrf.mxu0
    %v5498 = vadd.f32 %v5485, %v5497
    %v5499 = vpop.f32.mrf.mxu0
    %5500 = vdwg.mxu0
    %5501 = vmatpush.bf16.msra.mxu0 %v4032
    %5502 = vmatpush.bf16.msra.mxu0 %v4008
    %5503 = vmatpush.bf16.msra.mxu0 %v3984
    %5504 = vmatpush.bf16.msra.mxu0 %v3960
    %5505 = vmatpush.bf16.msra.mxu0 %v3936
    %5506 = vmatpush.bf16.msra.mxu0 %v3912
    %5507 = vmatpush.bf16.msra.mxu0 %v3888
    %5508 = vmatpush.bf16.msra.mxu0 %v3864
    %5509 = vmatmul.bf16.gmra.mxu0 %v343
    %v5510 = vpop.f32.mrf.mxu0
    %v5511 = vadd.f32 %v5498, %v5510
    %v5512 = vpop.f32.mrf.mxu0
    %5513 = vdwg.mxu0
    %5514 = vmatpush.bf16.msra.mxu0 %v4224
    %5515 = vmatpush.bf16.msra.mxu0 %v4200
    %5516 = vmatpush.bf16.msra.mxu0 %v4176
    %5517 = vmatpush.bf16.msra.mxu0 %v4152
    %5518 = vmatpush.bf16.msra.mxu0 %v4128
    %5519 = vmatpush.bf16.msra.mxu0 %v4104
    %5520 = vmatpush.bf16.msra.mxu0 %v4080
    %5521 = vmatpush.bf16.msra.mxu0 %v4056
    %5522 = vmatmul.bf16.gmra.mxu0 %v344
    %v5523 = vpop.f32.mrf.mxu0
    %v5524 = vadd.f32 %v5511, %v5523
    %v5525 = vpop.f32.mrf.mxu0
    %5526 = vdwg.mxu0
    %5527 = vmatpush.bf16.msra.mxu0 %v3649
    %5528 = vmatpush.bf16.msra.mxu0 %v3625
    %5529 = vmatpush.bf16.msra.mxu0 %v3601
    %5530 = vmatpush.bf16.msra.mxu0 %v3577
    %5531 = vmatpush.bf16.msra.mxu0 %v3553
    %5532 = vmatpush.bf16.msra.mxu0 %v3529
    %5533 = vmatpush.bf16.msra.mxu0 %v3505
    %5534 = vmatpush.bf16.msra.mxu0 %v3481
    %5535 = vmatmul.bf16.gmra.mxu0 %v341
    %v5536 = vpop.f32.mrf.mxu0
    %v5537 = vadd.f32 %v1129, %v5536
    %v5538 = vpop.f32.mrf.mxu0
    %5539 = vdwg.mxu0
    %5540 = vmatpush.bf16.msra.mxu0 %v3841
    %5541 = vmatpush.bf16.msra.mxu0 %v3817
    %5542 = vmatpush.bf16.msra.mxu0 %v3793
    %5543 = vmatpush.bf16.msra.mxu0 %v3769
    %5544 = vmatpush.bf16.msra.mxu0 %v3745
    %5545 = vmatpush.bf16.msra.mxu0 %v3721
    %5546 = vmatpush.bf16.msra.mxu0 %v3697
    %5547 = vmatpush.bf16.msra.mxu0 %v3673
    %5548 = vmatmul.bf16.gmra.mxu0 %v342
    %v5549 = vpop.f32.mrf.mxu0
    %v5550 = vadd.f32 %v5537, %v5549
    %v5551 = vpop.f32.mrf.mxu0
    %5552 = vdwg.mxu0
    %5553 = vmatpush.bf16.msra.mxu0 %v4033
    %5554 = vmatpush.bf16.msra.mxu0 %v4009
    %5555 = vmatpush.bf16.msra.mxu0 %v3985
    %5556 = vmatpush.bf16.msra.mxu0 %v3961
    %5557 = vmatpush.bf16.msra.mxu0 %v3937
    %5558 = vmatpush.bf16.msra.mxu0 %v3913
    %5559 = vmatpush.bf16.msra.mxu0 %v3889
    %5560 = vmatpush.bf16.msra.mxu0 %v3865
    %5561 = vmatmul.bf16.gmra.mxu0 %v343
    %v5562 = vpop.f32.mrf.mxu0
    %v5563 = vadd.f32 %v5550, %v5562
    %v5564 = vpop.f32.mrf.mxu0
    %5565 = vdwg.mxu0
    %5566 = vmatpush.bf16.msra.mxu0 %v4225
    %5567 = vmatpush.bf16.msra.mxu0 %v4201
    %5568 = vmatpush.bf16.msra.mxu0 %v4177
    %5569 = vmatpush.bf16.msra.mxu0 %v4153
    %5570 = vmatpush.bf16.msra.mxu0 %v4129
    %5571 = vmatpush.bf16.msra.mxu0 %v4105
    %5572 = vmatpush.bf16.msra.mxu0 %v4081
    %5573 = vmatpush.bf16.msra.mxu0 %v4057
    %5574 = vmatmul.bf16.gmra.mxu0 %v344
    %v5575 = vpop.f32.mrf.mxu0
    %v5576 = vadd.f32 %v5563, %v5575
    %v5577 = vpop.f32.mrf.mxu0
    %5578 = vdwg.mxu0
    %5579 = vmatpush.bf16.msra.mxu0 %v3650
    %5580 = vmatpush.bf16.msra.mxu0 %v3626
    %5581 = vmatpush.bf16.msra.mxu0 %v3602
    %5582 = vmatpush.bf16.msra.mxu0 %v3578
    %5583 = vmatpush.bf16.msra.mxu0 %v3554
    %5584 = vmatpush.bf16.msra.mxu0 %v3530
    %5585 = vmatpush.bf16.msra.mxu0 %v3506
    %5586 = vmatpush.bf16.msra.mxu0 %v3482
    %5587 = vmatmul.bf16.gmra.mxu0 %v341
    %v5588 = vpop.f32.mrf.mxu0
    %v5589 = vadd.f32 %v1130, %v5588
    %v5590 = vpop.f32.mrf.mxu0
    %5591 = vdwg.mxu0
    %5592 = vmatpush.bf16.msra.mxu0 %v3842
    %5593 = vmatpush.bf16.msra.mxu0 %v3818
    %5594 = vmatpush.bf16.msra.mxu0 %v3794
    %5595 = vmatpush.bf16.msra.mxu0 %v3770
    %5596 = vmatpush.bf16.msra.mxu0 %v3746
    %5597 = vmatpush.bf16.msra.mxu0 %v3722
    %5598 = vmatpush.bf16.msra.mxu0 %v3698
    %5599 = vmatpush.bf16.msra.mxu0 %v3674
    %5600 = vmatmul.bf16.gmra.mxu0 %v342
    %v5601 = vpop.f32.mrf.mxu0
    %v5602 = vadd.f32 %v5589, %v5601
    %v5603 = vpop.f32.mrf.mxu0
    %5604 = vdwg.mxu0
    %5605 = vmatpush.bf16.msra.mxu0 %v4034
    %5606 = vmatpush.bf16.msra.mxu0 %v4010
    %5607 = vmatpush.bf16.msra.mxu0 %v3986
    %5608 = vmatpush.bf16.msra.mxu0 %v3962
    %5609 = vmatpush.bf16.msra.mxu0 %v3938
    %5610 = vmatpush.bf16.msra.mxu0 %v3914
    %5611 = vmatpush.bf16.msra.mxu0 %v3890
    %5612 = vmatpush.bf16.msra.mxu0 %v3866
    %5613 = vmatmul.bf16.gmra.mxu0 %v343
    %v5614 = vpop.f32.mrf.mxu0
    %v5615 = vadd.f32 %v5602, %v5614
    %v5616 = vpop.f32.mrf.mxu0
    %5617 = vdwg.mxu0
    %5618 = vmatpush.bf16.msra.mxu0 %v4226
    %5619 = vmatpush.bf16.msra.mxu0 %v4202
    %5620 = vmatpush.bf16.msra.mxu0 %v4178
    %5621 = vmatpush.bf16.msra.mxu0 %v4154
    %5622 = vmatpush.bf16.msra.mxu0 %v4130
    %5623 = vmatpush.bf16.msra.mxu0 %v4106
    %5624 = vmatpush.bf16.msra.mxu0 %v4082
    %5625 = vmatpush.bf16.msra.mxu0 %v4058
    %5626 = vmatmul.bf16.gmra.mxu0 %v344
    %v5627 = vpop.f32.mrf.mxu0
    %v5628 = vadd.f32 %v5615, %v5627
    %v5629 = vpop.f32.mrf.mxu0
    %5630 = vdwg.mxu0
    %5631 = vmatpush.bf16.msra.mxu0 %v3651
    %5632 = vmatpush.bf16.msra.mxu0 %v3627
    %5633 = vmatpush.bf16.msra.mxu0 %v3603
    %5634 = vmatpush.bf16.msra.mxu0 %v3579
    %5635 = vmatpush.bf16.msra.mxu0 %v3555
    %5636 = vmatpush.bf16.msra.mxu0 %v3531
    %5637 = vmatpush.bf16.msra.mxu0 %v3507
    %5638 = vmatpush.bf16.msra.mxu0 %v3483
    %5639 = vmatmul.bf16.gmra.mxu0 %v341
    %v5640 = vpop.f32.mrf.mxu0
    %v5641 = vadd.f32 %v1131, %v5640
    %v5642 = vpop.f32.mrf.mxu0
    %5643 = vdwg.mxu0
    %5644 = vmatpush.bf16.msra.mxu0 %v3843
    %5645 = vmatpush.bf16.msra.mxu0 %v3819
    %5646 = vmatpush.bf16.msra.mxu0 %v3795
    %5647 = vmatpush.bf16.msra.mxu0 %v3771
    %5648 = vmatpush.bf16.msra.mxu0 %v3747
    %5649 = vmatpush.bf16.msra.mxu0 %v3723
    %5650 = vmatpush.bf16.msra.mxu0 %v3699
    %5651 = vmatpush.bf16.msra.mxu0 %v3675
    %5652 = vmatmul.bf16.gmra.mxu0 %v342
    %v5653 = vpop.f32.mrf.mxu0
    %v5654 = vadd.f32 %v5641, %v5653
    %v5655 = vpop.f32.mrf.mxu0
    %5656 = vdwg.mxu0
    %5657 = vmatpush.bf16.msra.mxu0 %v4035
    %5658 = vmatpush.bf16.msra.mxu0 %v4011
    %5659 = vmatpush.bf16.msra.mxu0 %v3987
    %5660 = vmatpush.bf16.msra.mxu0 %v3963
    %5661 = vmatpush.bf16.msra.mxu0 %v3939
    %5662 = vmatpush.bf16.msra.mxu0 %v3915
    %5663 = vmatpush.bf16.msra.mxu0 %v3891
    %5664 = vmatpush.bf16.msra.mxu0 %v3867
    %5665 = vmatmul.bf16.gmra.mxu0 %v343
    %v5666 = vpop.f32.mrf.mxu0
    %v5667 = vadd.f32 %v5654, %v5666
    %v5668 = vpop.f32.mrf.mxu0
    %5669 = vdwg.mxu0
    %5670 = vmatpush.bf16.msra.mxu0 %v4227
    %5671 = vmatpush.bf16.msra.mxu0 %v4203
    %5672 = vmatpush.bf16.msra.mxu0 %v4179
    %5673 = vmatpush.bf16.msra.mxu0 %v4155
    %5674 = vmatpush.bf16.msra.mxu0 %v4131
    %5675 = vmatpush.bf16.msra.mxu0 %v4107
    %5676 = vmatpush.bf16.msra.mxu0 %v4083
    %5677 = vmatpush.bf16.msra.mxu0 %v4059
    %5678 = vmatmul.bf16.gmra.mxu0 %v344
    %v5679 = vpop.f32.mrf.mxu0
    %v5680 = vadd.f32 %v5667, %v5679
    %v5681 = vpop.f32.mrf.mxu0
    %5682 = vdwg.mxu0
    %5683 = vmatpush.bf16.msra.mxu0 %v3652
    %5684 = vmatpush.bf16.msra.mxu0 %v3628
    %5685 = vmatpush.bf16.msra.mxu0 %v3604
    %5686 = vmatpush.bf16.msra.mxu0 %v3580
    %5687 = vmatpush.bf16.msra.mxu0 %v3556
    %5688 = vmatpush.bf16.msra.mxu0 %v3532
    %5689 = vmatpush.bf16.msra.mxu0 %v3508
    %5690 = vmatpush.bf16.msra.mxu0 %v3484
    %5691 = vmatmul.bf16.gmra.mxu0 %v341
    %v5692 = vpop.f32.mrf.mxu0
    %v5693 = vadd.f32 %v1132, %v5692
    %v5694 = vpop.f32.mrf.mxu0
    %5695 = vdwg.mxu0
    %5696 = vmatpush.bf16.msra.mxu0 %v3844
    %5697 = vmatpush.bf16.msra.mxu0 %v3820
    %5698 = vmatpush.bf16.msra.mxu0 %v3796
    %5699 = vmatpush.bf16.msra.mxu0 %v3772
    %5700 = vmatpush.bf16.msra.mxu0 %v3748
    %5701 = vmatpush.bf16.msra.mxu0 %v3724
    %5702 = vmatpush.bf16.msra.mxu0 %v3700
    %5703 = vmatpush.bf16.msra.mxu0 %v3676
    %5704 = vmatmul.bf16.gmra.mxu0 %v342
    %v5705 = vpop.f32.mrf.mxu0
    %v5706 = vadd.f32 %v5693, %v5705
    %v5707 = vpop.f32.mrf.mxu0
    %5708 = vdwg.mxu0
    %5709 = vmatpush.bf16.msra.mxu0 %v4036
    %5710 = vmatpush.bf16.msra.mxu0 %v4012
    %5711 = vmatpush.bf16.msra.mxu0 %v3988
    %5712 = vmatpush.bf16.msra.mxu0 %v3964
    %5713 = vmatpush.bf16.msra.mxu0 %v3940
    %5714 = vmatpush.bf16.msra.mxu0 %v3916
    %5715 = vmatpush.bf16.msra.mxu0 %v3892
    %5716 = vmatpush.bf16.msra.mxu0 %v3868
    %5717 = vmatmul.bf16.gmra.mxu0 %v343
    %v5718 = vpop.f32.mrf.mxu0
    %v5719 = vadd.f32 %v5706, %v5718
    %v5720 = vpop.f32.mrf.mxu0
    %5721 = vdwg.mxu0
    %5722 = vmatpush.bf16.msra.mxu0 %v4228
    %5723 = vmatpush.bf16.msra.mxu0 %v4204
    %5724 = vmatpush.bf16.msra.mxu0 %v4180
    %5725 = vmatpush.bf16.msra.mxu0 %v4156
    %5726 = vmatpush.bf16.msra.mxu0 %v4132
    %5727 = vmatpush.bf16.msra.mxu0 %v4108
    %5728 = vmatpush.bf16.msra.mxu0 %v4084
    %5729 = vmatpush.bf16.msra.mxu0 %v4060
    %5730 = vmatmul.bf16.gmra.mxu0 %v344
    %v5731 = vpop.f32.mrf.mxu0
    %v5732 = vadd.f32 %v5719, %v5731
    %v5733 = vpop.f32.mrf.mxu0
    %5734 = vdwg.mxu0
    %5735 = vmatpush.bf16.msra.mxu0 %v3653
    %5736 = vmatpush.bf16.msra.mxu0 %v3629
    %5737 = vmatpush.bf16.msra.mxu0 %v3605
    %5738 = vmatpush.bf16.msra.mxu0 %v3581
    %5739 = vmatpush.bf16.msra.mxu0 %v3557
    %5740 = vmatpush.bf16.msra.mxu0 %v3533
    %5741 = vmatpush.bf16.msra.mxu0 %v3509
    %5742 = vmatpush.bf16.msra.mxu0 %v3485
    %5743 = vmatmul.bf16.gmra.mxu0 %v341
    %v5744 = vpop.f32.mrf.mxu0
    %v5745 = vadd.f32 %v1133, %v5744
    %v5746 = vpop.f32.mrf.mxu0
    %5747 = vdwg.mxu0
    %5748 = vmatpush.bf16.msra.mxu0 %v3845
    %5749 = vmatpush.bf16.msra.mxu0 %v3821
    %5750 = vmatpush.bf16.msra.mxu0 %v3797
    %5751 = vmatpush.bf16.msra.mxu0 %v3773
    %5752 = vmatpush.bf16.msra.mxu0 %v3749
    %5753 = vmatpush.bf16.msra.mxu0 %v3725
    %5754 = vmatpush.bf16.msra.mxu0 %v3701
    %5755 = vmatpush.bf16.msra.mxu0 %v3677
    %5756 = vmatmul.bf16.gmra.mxu0 %v342
    %v5757 = vpop.f32.mrf.mxu0
    %v5758 = vadd.f32 %v5745, %v5757
    %v5759 = vpop.f32.mrf.mxu0
    %5760 = vdwg.mxu0
    %5761 = vmatpush.bf16.msra.mxu0 %v4037
    %5762 = vmatpush.bf16.msra.mxu0 %v4013
    %5763 = vmatpush.bf16.msra.mxu0 %v3989
    %5764 = vmatpush.bf16.msra.mxu0 %v3965
    %5765 = vmatpush.bf16.msra.mxu0 %v3941
    %5766 = vmatpush.bf16.msra.mxu0 %v3917
    %5767 = vmatpush.bf16.msra.mxu0 %v3893
    %5768 = vmatpush.bf16.msra.mxu0 %v3869
    %5769 = vmatmul.bf16.gmra.mxu0 %v343
    %v5770 = vpop.f32.mrf.mxu0
    %v5771 = vadd.f32 %v5758, %v5770
    %v5772 = vpop.f32.mrf.mxu0
    %5773 = vdwg.mxu0
    %5774 = vmatpush.bf16.msra.mxu0 %v4229
    %5775 = vmatpush.bf16.msra.mxu0 %v4205
    %5776 = vmatpush.bf16.msra.mxu0 %v4181
    %5777 = vmatpush.bf16.msra.mxu0 %v4157
    %5778 = vmatpush.bf16.msra.mxu0 %v4133
    %5779 = vmatpush.bf16.msra.mxu0 %v4109
    %5780 = vmatpush.bf16.msra.mxu0 %v4085
    %5781 = vmatpush.bf16.msra.mxu0 %v4061
    %5782 = vmatmul.bf16.gmra.mxu0 %v344
    %v5783 = vpop.f32.mrf.mxu0
    %v5784 = vadd.f32 %v5771, %v5783
    %v5785 = vpop.f32.mrf.mxu0
    %5786 = vdwg.mxu0
    %5787 = vmatpush.bf16.msra.mxu0 %v3654
    %5788 = vmatpush.bf16.msra.mxu0 %v3630
    %5789 = vmatpush.bf16.msra.mxu0 %v3606
    %5790 = vmatpush.bf16.msra.mxu0 %v3582
    %5791 = vmatpush.bf16.msra.mxu0 %v3558
    %5792 = vmatpush.bf16.msra.mxu0 %v3534
    %5793 = vmatpush.bf16.msra.mxu0 %v3510
    %5794 = vmatpush.bf16.msra.mxu0 %v3486
    %5795 = vmatmul.bf16.gmra.mxu0 %v341
    %v5796 = vpop.f32.mrf.mxu0
    %v5797 = vadd.f32 %v1134, %v5796
    %v5798 = vpop.f32.mrf.mxu0
    %5799 = vdwg.mxu0
    %5800 = vmatpush.bf16.msra.mxu0 %v3846
    %5801 = vmatpush.bf16.msra.mxu0 %v3822
    %5802 = vmatpush.bf16.msra.mxu0 %v3798
    %5803 = vmatpush.bf16.msra.mxu0 %v3774
    %5804 = vmatpush.bf16.msra.mxu0 %v3750
    %5805 = vmatpush.bf16.msra.mxu0 %v3726
    %5806 = vmatpush.bf16.msra.mxu0 %v3702
    %5807 = vmatpush.bf16.msra.mxu0 %v3678
    %5808 = vmatmul.bf16.gmra.mxu0 %v342
    %v5809 = vpop.f32.mrf.mxu0
    %v5810 = vadd.f32 %v5797, %v5809
    %v5811 = vpop.f32.mrf.mxu0
    %5812 = vdwg.mxu0
    %5813 = vmatpush.bf16.msra.mxu0 %v4038
    %5814 = vmatpush.bf16.msra.mxu0 %v4014
    %5815 = vmatpush.bf16.msra.mxu0 %v3990
    %5816 = vmatpush.bf16.msra.mxu0 %v3966
    %5817 = vmatpush.bf16.msra.mxu0 %v3942
    %5818 = vmatpush.bf16.msra.mxu0 %v3918
    %5819 = vmatpush.bf16.msra.mxu0 %v3894
    %5820 = vmatpush.bf16.msra.mxu0 %v3870
    %5821 = vmatmul.bf16.gmra.mxu0 %v343
    %v5822 = vpop.f32.mrf.mxu0
    %v5823 = vadd.f32 %v5810, %v5822
    %v5824 = vpop.f32.mrf.mxu0
    %5825 = vdwg.mxu0
    %5826 = vmatpush.bf16.msra.mxu0 %v4230
    %5827 = vmatpush.bf16.msra.mxu0 %v4206
    %5828 = vmatpush.bf16.msra.mxu0 %v4182
    %5829 = vmatpush.bf16.msra.mxu0 %v4158
    %5830 = vmatpush.bf16.msra.mxu0 %v4134
    %5831 = vmatpush.bf16.msra.mxu0 %v4110
    %5832 = vmatpush.bf16.msra.mxu0 %v4086
    %5833 = vmatpush.bf16.msra.mxu0 %v4062
    %5834 = vmatmul.bf16.gmra.mxu0 %v344
    %v5835 = vpop.f32.mrf.mxu0
    %v5836 = vadd.f32 %v5823, %v5835
    %v5837 = vpop.f32.mrf.mxu0
    %5838 = vdwg.mxu0
    %5839 = vmatpush.bf16.msra.mxu0 %v3655
    %5840 = vmatpush.bf16.msra.mxu0 %v3631
    %5841 = vmatpush.bf16.msra.mxu0 %v3607
    %5842 = vmatpush.bf16.msra.mxu0 %v3583
    %5843 = vmatpush.bf16.msra.mxu0 %v3559
    %5844 = vmatpush.bf16.msra.mxu0 %v3535
    %5845 = vmatpush.bf16.msra.mxu0 %v3511
    %5846 = vmatpush.bf16.msra.mxu0 %v3487
    %5847 = vmatmul.bf16.gmra.mxu0 %v341
    %v5848 = vpop.f32.mrf.mxu0
    %v5849 = vadd.f32 %v1135, %v5848
    %v5850 = vpop.f32.mrf.mxu0
    %5851 = vdwg.mxu0
    %5852 = vmatpush.bf16.msra.mxu0 %v3847
    %5853 = vmatpush.bf16.msra.mxu0 %v3823
    %5854 = vmatpush.bf16.msra.mxu0 %v3799
    %5855 = vmatpush.bf16.msra.mxu0 %v3775
    %5856 = vmatpush.bf16.msra.mxu0 %v3751
    %5857 = vmatpush.bf16.msra.mxu0 %v3727
    %5858 = vmatpush.bf16.msra.mxu0 %v3703
    %5859 = vmatpush.bf16.msra.mxu0 %v3679
    %5860 = vmatmul.bf16.gmra.mxu0 %v342
    %v5861 = vpop.f32.mrf.mxu0
    %v5862 = vadd.f32 %v5849, %v5861
    %v5863 = vpop.f32.mrf.mxu0
    %5864 = vdwg.mxu0
    %5865 = vmatpush.bf16.msra.mxu0 %v4039
    %5866 = vmatpush.bf16.msra.mxu0 %v4015
    %5867 = vmatpush.bf16.msra.mxu0 %v3991
    %5868 = vmatpush.bf16.msra.mxu0 %v3967
    %5869 = vmatpush.bf16.msra.mxu0 %v3943
    %5870 = vmatpush.bf16.msra.mxu0 %v3919
    %5871 = vmatpush.bf16.msra.mxu0 %v3895
    %5872 = vmatpush.bf16.msra.mxu0 %v3871
    %5873 = vmatmul.bf16.gmra.mxu0 %v343
    %v5874 = vpop.f32.mrf.mxu0
    %v5875 = vadd.f32 %v5862, %v5874
    %v5876 = vpop.f32.mrf.mxu0
    %5877 = vdwg.mxu0
    %5878 = vmatpush.bf16.msra.mxu0 %v4231
    %5879 = vmatpush.bf16.msra.mxu0 %v4207
    %5880 = vmatpush.bf16.msra.mxu0 %v4183
    %5881 = vmatpush.bf16.msra.mxu0 %v4159
    %5882 = vmatpush.bf16.msra.mxu0 %v4135
    %5883 = vmatpush.bf16.msra.mxu0 %v4111
    %5884 = vmatpush.bf16.msra.mxu0 %v4087
    %5885 = vmatpush.bf16.msra.mxu0 %v4063
    %5886 = vmatmul.bf16.gmra.mxu0 %v344
    %v5887 = vpop.f32.mrf.mxu0
    %v5888 = vadd.f32 %v5875, %v5887
    %v5889 = vpop.f32.mrf.mxu0
    %5890 = vdwg.mxu0
    %5891 = vmatpush.bf16.msra.mxu0 %v3656
    %5892 = vmatpush.bf16.msra.mxu0 %v3632
    %5893 = vmatpush.bf16.msra.mxu0 %v3608
    %5894 = vmatpush.bf16.msra.mxu0 %v3584
    %5895 = vmatpush.bf16.msra.mxu0 %v3560
    %5896 = vmatpush.bf16.msra.mxu0 %v3536
    %5897 = vmatpush.bf16.msra.mxu0 %v3512
    %5898 = vmatpush.bf16.msra.mxu0 %v3488
    %5899 = vmatmul.bf16.gmra.mxu0 %v341
    %v5900 = vpop.f32.mrf.mxu0
    %v5901 = vadd.f32 %v1136, %v5900
    %v5902 = vpop.f32.mrf.mxu0
    %5903 = vdwg.mxu0
    %5904 = vmatpush.bf16.msra.mxu0 %v3848
    %5905 = vmatpush.bf16.msra.mxu0 %v3824
    %5906 = vmatpush.bf16.msra.mxu0 %v3800
    %5907 = vmatpush.bf16.msra.mxu0 %v3776
    %5908 = vmatpush.bf16.msra.mxu0 %v3752
    %5909 = vmatpush.bf16.msra.mxu0 %v3728
    %5910 = vmatpush.bf16.msra.mxu0 %v3704
    %5911 = vmatpush.bf16.msra.mxu0 %v3680
    %5912 = vmatmul.bf16.gmra.mxu0 %v342
    %v5913 = vpop.f32.mrf.mxu0
    %v5914 = vadd.f32 %v5901, %v5913
    %v5915 = vpop.f32.mrf.mxu0
    %5916 = vdwg.mxu0
    %5917 = vmatpush.bf16.msra.mxu0 %v4040
    %5918 = vmatpush.bf16.msra.mxu0 %v4016
    %5919 = vmatpush.bf16.msra.mxu0 %v3992
    %5920 = vmatpush.bf16.msra.mxu0 %v3968
    %5921 = vmatpush.bf16.msra.mxu0 %v3944
    %5922 = vmatpush.bf16.msra.mxu0 %v3920
    %5923 = vmatpush.bf16.msra.mxu0 %v3896
    %5924 = vmatpush.bf16.msra.mxu0 %v3872
    %5925 = vmatmul.bf16.gmra.mxu0 %v343
    %v5926 = vpop.f32.mrf.mxu0
    %v5927 = vadd.f32 %v5914, %v5926
    %v5928 = vpop.f32.mrf.mxu0
    %5929 = vdwg.mxu0
    %5930 = vmatpush.bf16.msra.mxu0 %v4232
    %5931 = vmatpush.bf16.msra.mxu0 %v4208
    %5932 = vmatpush.bf16.msra.mxu0 %v4184
    %5933 = vmatpush.bf16.msra.mxu0 %v4160
    %5934 = vmatpush.bf16.msra.mxu0 %v4136
    %5935 = vmatpush.bf16.msra.mxu0 %v4112
    %5936 = vmatpush.bf16.msra.mxu0 %v4088
    %5937 = vmatpush.bf16.msra.mxu0 %v4064
    %5938 = vmatmul.bf16.gmra.mxu0 %v344
    %v5939 = vpop.f32.mrf.mxu0
    %v5940 = vadd.f32 %v5927, %v5939
    %v5941 = vpop.f32.mrf.mxu0
    %5942 = vdwg.mxu0
    %5943 = vmatpush.bf16.msra.mxu0 %v3657
    %5944 = vmatpush.bf16.msra.mxu0 %v3633
    %5945 = vmatpush.bf16.msra.mxu0 %v3609
    %5946 = vmatpush.bf16.msra.mxu0 %v3585
    %5947 = vmatpush.bf16.msra.mxu0 %v3561
    %5948 = vmatpush.bf16.msra.mxu0 %v3537
    %5949 = vmatpush.bf16.msra.mxu0 %v3513
    %5950 = vmatpush.bf16.msra.mxu0 %v3489
    %5951 = vmatmul.bf16.gmra.mxu0 %v341
    %v5952 = vpop.f32.mrf.mxu0
    %v5953 = vadd.f32 %v1137, %v5952
    %v5954 = vpop.f32.mrf.mxu0
    %5955 = vdwg.mxu0
    %5956 = vmatpush.bf16.msra.mxu0 %v3849
    %5957 = vmatpush.bf16.msra.mxu0 %v3825
    %5958 = vmatpush.bf16.msra.mxu0 %v3801
    %5959 = vmatpush.bf16.msra.mxu0 %v3777
    %5960 = vmatpush.bf16.msra.mxu0 %v3753
    %5961 = vmatpush.bf16.msra.mxu0 %v3729
    %5962 = vmatpush.bf16.msra.mxu0 %v3705
    %5963 = vmatpush.bf16.msra.mxu0 %v3681
    %5964 = vmatmul.bf16.gmra.mxu0 %v342
    %v5965 = vpop.f32.mrf.mxu0
    %v5966 = vadd.f32 %v5953, %v5965
    %v5967 = vpop.f32.mrf.mxu0
    %5968 = vdwg.mxu0
    %5969 = vmatpush.bf16.msra.mxu0 %v4041
    %5970 = vmatpush.bf16.msra.mxu0 %v4017
    %5971 = vmatpush.bf16.msra.mxu0 %v3993
    %5972 = vmatpush.bf16.msra.mxu0 %v3969
    %5973 = vmatpush.bf16.msra.mxu0 %v3945
    %5974 = vmatpush.bf16.msra.mxu0 %v3921
    %5975 = vmatpush.bf16.msra.mxu0 %v3897
    %5976 = vmatpush.bf16.msra.mxu0 %v3873
    %5977 = vmatmul.bf16.gmra.mxu0 %v343
    %v5978 = vpop.f32.mrf.mxu0
    %v5979 = vadd.f32 %v5966, %v5978
    %v5980 = vpop.f32.mrf.mxu0
    %5981 = vdwg.mxu0
    %5982 = vmatpush.bf16.msra.mxu0 %v4233
    %5983 = vmatpush.bf16.msra.mxu0 %v4209
    %5984 = vmatpush.bf16.msra.mxu0 %v4185
    %5985 = vmatpush.bf16.msra.mxu0 %v4161
    %5986 = vmatpush.bf16.msra.mxu0 %v4137
    %5987 = vmatpush.bf16.msra.mxu0 %v4113
    %5988 = vmatpush.bf16.msra.mxu0 %v4089
    %5989 = vmatpush.bf16.msra.mxu0 %v4065
    %5990 = vmatmul.bf16.gmra.mxu0 %v344
    %v5991 = vpop.f32.mrf.mxu0
    %v5992 = vadd.f32 %v5979, %v5991
    %v5993 = vpop.f32.mrf.mxu0
    %5994 = vdwg.mxu0
    %5995 = vmatpush.bf16.msra.mxu0 %v3658
    %5996 = vmatpush.bf16.msra.mxu0 %v3634
    %5997 = vmatpush.bf16.msra.mxu0 %v3610
    %5998 = vmatpush.bf16.msra.mxu0 %v3586
    %5999 = vmatpush.bf16.msra.mxu0 %v3562
    %6000 = vmatpush.bf16.msra.mxu0 %v3538
    %6001 = vmatpush.bf16.msra.mxu0 %v3514
    %6002 = vmatpush.bf16.msra.mxu0 %v3490
    %6003 = vmatmul.bf16.gmra.mxu0 %v341
    %v6004 = vpop.f32.mrf.mxu0
    %v6005 = vadd.f32 %v1138, %v6004
    %v6006 = vpop.f32.mrf.mxu0
    %6007 = vdwg.mxu0
    %6008 = vmatpush.bf16.msra.mxu0 %v3850
    %6009 = vmatpush.bf16.msra.mxu0 %v3826
    %6010 = vmatpush.bf16.msra.mxu0 %v3802
    %6011 = vmatpush.bf16.msra.mxu0 %v3778
    %6012 = vmatpush.bf16.msra.mxu0 %v3754
    %6013 = vmatpush.bf16.msra.mxu0 %v3730
    %6014 = vmatpush.bf16.msra.mxu0 %v3706
    %6015 = vmatpush.bf16.msra.mxu0 %v3682
    %6016 = vmatmul.bf16.gmra.mxu0 %v342
    %v6017 = vpop.f32.mrf.mxu0
    %v6018 = vadd.f32 %v6005, %v6017
    %v6019 = vpop.f32.mrf.mxu0
    %6020 = vdwg.mxu0
    %6021 = vmatpush.bf16.msra.mxu0 %v4042
    %6022 = vmatpush.bf16.msra.mxu0 %v4018
    %6023 = vmatpush.bf16.msra.mxu0 %v3994
    %6024 = vmatpush.bf16.msra.mxu0 %v3970
    %6025 = vmatpush.bf16.msra.mxu0 %v3946
    %6026 = vmatpush.bf16.msra.mxu0 %v3922
    %6027 = vmatpush.bf16.msra.mxu0 %v3898
    %6028 = vmatpush.bf16.msra.mxu0 %v3874
    %6029 = vmatmul.bf16.gmra.mxu0 %v343
    %v6030 = vpop.f32.mrf.mxu0
    %v6031 = vadd.f32 %v6018, %v6030
    %v6032 = vpop.f32.mrf.mxu0
    %6033 = vdwg.mxu0
    %6034 = vmatpush.bf16.msra.mxu0 %v4234
    %6035 = vmatpush.bf16.msra.mxu0 %v4210
    %6036 = vmatpush.bf16.msra.mxu0 %v4186
    %6037 = vmatpush.bf16.msra.mxu0 %v4162
    %6038 = vmatpush.bf16.msra.mxu0 %v4138
    %6039 = vmatpush.bf16.msra.mxu0 %v4114
    %6040 = vmatpush.bf16.msra.mxu0 %v4090
    %6041 = vmatpush.bf16.msra.mxu0 %v4066
    %6042 = vmatmul.bf16.gmra.mxu0 %v344
    %v6043 = vpop.f32.mrf.mxu0
    %v6044 = vadd.f32 %v6031, %v6043
    %v6045 = vpop.f32.mrf.mxu0
    %6046 = vdwg.mxu0
    %6047 = vmatpush.bf16.msra.mxu0 %v3659
    %6048 = vmatpush.bf16.msra.mxu0 %v3635
    %6049 = vmatpush.bf16.msra.mxu0 %v3611
    %6050 = vmatpush.bf16.msra.mxu0 %v3587
    %6051 = vmatpush.bf16.msra.mxu0 %v3563
    %6052 = vmatpush.bf16.msra.mxu0 %v3539
    %6053 = vmatpush.bf16.msra.mxu0 %v3515
    %6054 = vmatpush.bf16.msra.mxu0 %v3491
    %6055 = vmatmul.bf16.gmra.mxu0 %v341
    %v6056 = vpop.f32.mrf.mxu0
    %v6057 = vadd.f32 %v1139, %v6056
    %v6058 = vpop.f32.mrf.mxu0
    %6059 = vdwg.mxu0
    %6060 = vmatpush.bf16.msra.mxu0 %v3851
    %6061 = vmatpush.bf16.msra.mxu0 %v3827
    %6062 = vmatpush.bf16.msra.mxu0 %v3803
    %6063 = vmatpush.bf16.msra.mxu0 %v3779
    %6064 = vmatpush.bf16.msra.mxu0 %v3755
    %6065 = vmatpush.bf16.msra.mxu0 %v3731
    %6066 = vmatpush.bf16.msra.mxu0 %v3707
    %6067 = vmatpush.bf16.msra.mxu0 %v3683
    %6068 = vmatmul.bf16.gmra.mxu0 %v342
    %v6069 = vpop.f32.mrf.mxu0
    %v6070 = vadd.f32 %v6057, %v6069
    %v6071 = vpop.f32.mrf.mxu0
    %6072 = vdwg.mxu0
    %6073 = vmatpush.bf16.msra.mxu0 %v4043
    %6074 = vmatpush.bf16.msra.mxu0 %v4019
    %6075 = vmatpush.bf16.msra.mxu0 %v3995
    %6076 = vmatpush.bf16.msra.mxu0 %v3971
    %6077 = vmatpush.bf16.msra.mxu0 %v3947
    %6078 = vmatpush.bf16.msra.mxu0 %v3923
    %6079 = vmatpush.bf16.msra.mxu0 %v3899
    %6080 = vmatpush.bf16.msra.mxu0 %v3875
    %6081 = vmatmul.bf16.gmra.mxu0 %v343
    %v6082 = vpop.f32.mrf.mxu0
    %v6083 = vadd.f32 %v6070, %v6082
    %v6084 = vpop.f32.mrf.mxu0
    %6085 = vdwg.mxu0
    %6086 = vmatpush.bf16.msra.mxu0 %v4235
    %6087 = vmatpush.bf16.msra.mxu0 %v4211
    %6088 = vmatpush.bf16.msra.mxu0 %v4187
    %6089 = vmatpush.bf16.msra.mxu0 %v4163
    %6090 = vmatpush.bf16.msra.mxu0 %v4139
    %6091 = vmatpush.bf16.msra.mxu0 %v4115
    %6092 = vmatpush.bf16.msra.mxu0 %v4091
    %6093 = vmatpush.bf16.msra.mxu0 %v4067
    %6094 = vmatmul.bf16.gmra.mxu0 %v344
    %v6095 = vpop.f32.mrf.mxu0
    %v6096 = vadd.f32 %v6083, %v6095
    %v6097 = vpop.f32.mrf.mxu0
    %6098 = vdwg.mxu0
    %6099 = vmatpush.bf16.msra.mxu0 %v3660
    %6100 = vmatpush.bf16.msra.mxu0 %v3636
    %6101 = vmatpush.bf16.msra.mxu0 %v3612
    %6102 = vmatpush.bf16.msra.mxu0 %v3588
    %6103 = vmatpush.bf16.msra.mxu0 %v3564
    %6104 = vmatpush.bf16.msra.mxu0 %v3540
    %6105 = vmatpush.bf16.msra.mxu0 %v3516
    %6106 = vmatpush.bf16.msra.mxu0 %v3492
    %6107 = vmatmul.bf16.gmra.mxu0 %v341
    %v6108 = vpop.f32.mrf.mxu0
    %v6109 = vadd.f32 %v1140, %v6108
    %v6110 = vpop.f32.mrf.mxu0
    %6111 = vdwg.mxu0
    %6112 = vmatpush.bf16.msra.mxu0 %v3852
    %6113 = vmatpush.bf16.msra.mxu0 %v3828
    %6114 = vmatpush.bf16.msra.mxu0 %v3804
    %6115 = vmatpush.bf16.msra.mxu0 %v3780
    %6116 = vmatpush.bf16.msra.mxu0 %v3756
    %6117 = vmatpush.bf16.msra.mxu0 %v3732
    %6118 = vmatpush.bf16.msra.mxu0 %v3708
    %6119 = vmatpush.bf16.msra.mxu0 %v3684
    %6120 = vmatmul.bf16.gmra.mxu0 %v342
    %v6121 = vpop.f32.mrf.mxu0
    %v6122 = vadd.f32 %v6109, %v6121
    %v6123 = vpop.f32.mrf.mxu0
    %6124 = vdwg.mxu0
    %6125 = vmatpush.bf16.msra.mxu0 %v4044
    %6126 = vmatpush.bf16.msra.mxu0 %v4020
    %6127 = vmatpush.bf16.msra.mxu0 %v3996
    %6128 = vmatpush.bf16.msra.mxu0 %v3972
    %6129 = vmatpush.bf16.msra.mxu0 %v3948
    %6130 = vmatpush.bf16.msra.mxu0 %v3924
    %6131 = vmatpush.bf16.msra.mxu0 %v3900
    %6132 = vmatpush.bf16.msra.mxu0 %v3876
    %6133 = vmatmul.bf16.gmra.mxu0 %v343
    %v6134 = vpop.f32.mrf.mxu0
    %v6135 = vadd.f32 %v6122, %v6134
    %v6136 = vpop.f32.mrf.mxu0
    %6137 = vdwg.mxu0
    %6138 = vmatpush.bf16.msra.mxu0 %v4236
    %6139 = vmatpush.bf16.msra.mxu0 %v4212
    %6140 = vmatpush.bf16.msra.mxu0 %v4188
    %6141 = vmatpush.bf16.msra.mxu0 %v4164
    %6142 = vmatpush.bf16.msra.mxu0 %v4140
    %6143 = vmatpush.bf16.msra.mxu0 %v4116
    %6144 = vmatpush.bf16.msra.mxu0 %v4092
    %6145 = vmatpush.bf16.msra.mxu0 %v4068
    %6146 = vmatmul.bf16.gmra.mxu0 %v344
    %v6147 = vpop.f32.mrf.mxu0
    %v6148 = vadd.f32 %v6135, %v6147
    %v6149 = vpop.f32.mrf.mxu0
    %6150 = vdwg.mxu0
    %6151 = vmatpush.bf16.msra.mxu0 %v3661
    %6152 = vmatpush.bf16.msra.mxu0 %v3637
    %6153 = vmatpush.bf16.msra.mxu0 %v3613
    %6154 = vmatpush.bf16.msra.mxu0 %v3589
    %6155 = vmatpush.bf16.msra.mxu0 %v3565
    %6156 = vmatpush.bf16.msra.mxu0 %v3541
    %6157 = vmatpush.bf16.msra.mxu0 %v3517
    %6158 = vmatpush.bf16.msra.mxu0 %v3493
    %6159 = vmatmul.bf16.gmra.mxu0 %v341
    %v6160 = vpop.f32.mrf.mxu0
    %v6161 = vadd.f32 %v1141, %v6160
    %v6162 = vpop.f32.mrf.mxu0
    %6163 = vdwg.mxu0
    %6164 = vmatpush.bf16.msra.mxu0 %v3853
    %6165 = vmatpush.bf16.msra.mxu0 %v3829
    %6166 = vmatpush.bf16.msra.mxu0 %v3805
    %6167 = vmatpush.bf16.msra.mxu0 %v3781
    %6168 = vmatpush.bf16.msra.mxu0 %v3757
    %6169 = vmatpush.bf16.msra.mxu0 %v3733
    %6170 = vmatpush.bf16.msra.mxu0 %v3709
    %6171 = vmatpush.bf16.msra.mxu0 %v3685
    %6172 = vmatmul.bf16.gmra.mxu0 %v342
    %v6173 = vpop.f32.mrf.mxu0
    %v6174 = vadd.f32 %v6161, %v6173
    %v6175 = vpop.f32.mrf.mxu0
    %6176 = vdwg.mxu0
    %6177 = vmatpush.bf16.msra.mxu0 %v4045
    %6178 = vmatpush.bf16.msra.mxu0 %v4021
    %6179 = vmatpush.bf16.msra.mxu0 %v3997
    %6180 = vmatpush.bf16.msra.mxu0 %v3973
    %6181 = vmatpush.bf16.msra.mxu0 %v3949
    %6182 = vmatpush.bf16.msra.mxu0 %v3925
    %6183 = vmatpush.bf16.msra.mxu0 %v3901
    %6184 = vmatpush.bf16.msra.mxu0 %v3877
    %6185 = vmatmul.bf16.gmra.mxu0 %v343
    %v6186 = vpop.f32.mrf.mxu0
    %v6187 = vadd.f32 %v6174, %v6186
    %v6188 = vpop.f32.mrf.mxu0
    %6189 = vdwg.mxu0
    %6190 = vmatpush.bf16.msra.mxu0 %v4237
    %6191 = vmatpush.bf16.msra.mxu0 %v4213
    %6192 = vmatpush.bf16.msra.mxu0 %v4189
    %6193 = vmatpush.bf16.msra.mxu0 %v4165
    %6194 = vmatpush.bf16.msra.mxu0 %v4141
    %6195 = vmatpush.bf16.msra.mxu0 %v4117
    %6196 = vmatpush.bf16.msra.mxu0 %v4093
    %6197 = vmatpush.bf16.msra.mxu0 %v4069
    %6198 = vmatmul.bf16.gmra.mxu0 %v344
    %v6199 = vpop.f32.mrf.mxu0
    %v6200 = vadd.f32 %v6187, %v6199
    %v6201 = vpop.f32.mrf.mxu0
    %6202 = vdwg.mxu0
    %6203 = vmatpush.bf16.msra.mxu0 %v3662
    %6204 = vmatpush.bf16.msra.mxu0 %v3638
    %6205 = vmatpush.bf16.msra.mxu0 %v3614
    %6206 = vmatpush.bf16.msra.mxu0 %v3590
    %6207 = vmatpush.bf16.msra.mxu0 %v3566
    %6208 = vmatpush.bf16.msra.mxu0 %v3542
    %6209 = vmatpush.bf16.msra.mxu0 %v3518
    %6210 = vmatpush.bf16.msra.mxu0 %v3494
    %6211 = vmatmul.bf16.gmra.mxu0 %v341
    %v6212 = vpop.f32.mrf.mxu0
    %v6213 = vadd.f32 %v1142, %v6212
    %v6214 = vpop.f32.mrf.mxu0
    %6215 = vdwg.mxu0
    %6216 = vmatpush.bf16.msra.mxu0 %v3854
    %6217 = vmatpush.bf16.msra.mxu0 %v3830
    %6218 = vmatpush.bf16.msra.mxu0 %v3806
    %6219 = vmatpush.bf16.msra.mxu0 %v3782
    %6220 = vmatpush.bf16.msra.mxu0 %v3758
    %6221 = vmatpush.bf16.msra.mxu0 %v3734
    %6222 = vmatpush.bf16.msra.mxu0 %v3710
    %6223 = vmatpush.bf16.msra.mxu0 %v3686
    %6224 = vmatmul.bf16.gmra.mxu0 %v342
    %v6225 = vpop.f32.mrf.mxu0
    %v6226 = vadd.f32 %v6213, %v6225
    %v6227 = vpop.f32.mrf.mxu0
    %6228 = vdwg.mxu0
    %6229 = vmatpush.bf16.msra.mxu0 %v4046
    %6230 = vmatpush.bf16.msra.mxu0 %v4022
    %6231 = vmatpush.bf16.msra.mxu0 %v3998
    %6232 = vmatpush.bf16.msra.mxu0 %v3974
    %6233 = vmatpush.bf16.msra.mxu0 %v3950
    %6234 = vmatpush.bf16.msra.mxu0 %v3926
    %6235 = vmatpush.bf16.msra.mxu0 %v3902
    %6236 = vmatpush.bf16.msra.mxu0 %v3878
    %6237 = vmatmul.bf16.gmra.mxu0 %v343
    %v6238 = vpop.f32.mrf.mxu0
    %v6239 = vadd.f32 %v6226, %v6238
    %v6240 = vpop.f32.mrf.mxu0
    %6241 = vdwg.mxu0
    %6242 = vmatpush.bf16.msra.mxu0 %v4238
    %6243 = vmatpush.bf16.msra.mxu0 %v4214
    %6244 = vmatpush.bf16.msra.mxu0 %v4190
    %6245 = vmatpush.bf16.msra.mxu0 %v4166
    %6246 = vmatpush.bf16.msra.mxu0 %v4142
    %6247 = vmatpush.bf16.msra.mxu0 %v4118
    %6248 = vmatpush.bf16.msra.mxu0 %v4094
    %6249 = vmatpush.bf16.msra.mxu0 %v4070
    %6250 = vmatmul.bf16.gmra.mxu0 %v344
    %v6251 = vpop.f32.mrf.mxu0
    %v6252 = vadd.f32 %v6239, %v6251
    %v6253 = vpop.f32.mrf.mxu0
    %6254 = vdwg.mxu0
    %v6255 = vtanh.pop %v5056
    %v6256 = vtanh.pop %v5108
    %v6257 = vtanh.pop %v5160
    %v6258 = vtanh.pop %v5212
    %v6259 = vtanh.pop %v5264
    %v6260 = vtanh.pop %v5316
    %v6261 = vtanh.pop %v5368
    %v6262 = vtanh.pop %v5420
    %v6263 = vtanh.pop %v5472
    %v6264 = vtanh.pop %v5524
    %v6265 = vtanh.pop %v5576
    %v6266 = vtanh.pop %v5628
    %v6267 = vtanh.pop %v5680
    %v6268 = vtanh.pop %v5732
    %v6269 = vtanh.pop %v5784
    %v6270 = vtanh.pop %v5836
    %v6271 = vtanh.pop %v5888
    %v6272 = vtanh.pop %v5940
    %v6273 = vtanh.pop %v5992
    %v6274 = vtanh.pop %v6044
    %v6275 = vtanh.pop %v6096
    %v6276 = vtanh.pop %v6148
    %v6277 = vtanh.pop %v6200
    %v6278 = vtanh.pop %v6252
    %v6279 = vld [vmem:[#allocation11] sm:$0xff]
    %v6280 = vld [vmem:[#allocation11 + $0x8] sm:$0xff]
    %v6281 = vld [vmem:[#allocation11 + $0x10] sm:$0xff]
    %v6282 = vld [vmem:[#allocation11 + $0x18] sm:$0xff]
    %v6283 = vld [vmem:[#allocation11 + $0x20] sm:$0xff]
    %v6284 = vld [vmem:[#allocation11 + $0x28] sm:$0xff]
    %v6285 = vld [vmem:[#allocation11 + $0x30] sm:$0xff]
    %v6286 = vld [vmem:[#allocation11 + $0x38] sm:$0xff]
    %v6287 = vld [vmem:[#allocation11 + $0x40] sm:$0xff]
    %v6288 = vld [vmem:[#allocation11 + $0x48] sm:$0xff]
    %v6289 = vld [vmem:[#allocation11 + $0x50] sm:$0xff]
    %v6290 = vld [vmem:[#allocation11 + $0x58] sm:$0xff]
    %v6291 = vld [vmem:[#allocation11 + $0x60] sm:$0xff]
    %v6292 = vld [vmem:[#allocation11 + $0x68] sm:$0xff]
    %v6293 = vld [vmem:[#allocation11 + $0x70] sm:$0xff]
    %v6294 = vld [vmem:[#allocation11 + $0x78] sm:$0xff]
    %v6295 = vld [vmem:[#allocation11 + $0x80] sm:$0xff]
    %v6296 = vld [vmem:[#allocation11 + $0x88] sm:$0xff]
    %v6297 = vld [vmem:[#allocation11 + $0x90] sm:$0xff]
    %v6298 = vld [vmem:[#allocation11 + $0x98] sm:$0xff]
    %v6299 = vld [vmem:[#allocation11 + $0xa0] sm:$0xff]
    %v6300 = vld [vmem:[#allocation11 + $0xa8] sm:$0xff]
    %v6301 = vld [vmem:[#allocation11 + $0xb0] sm:$0xff]
    %v6302 = vld [vmem:[#allocation11 + $0xb8] sm:$0xff]
    %v6303 = vld [vmem:[#allocation11 + $0xc0] sm:$0xff]
    %v6304 = vld [vmem:[#allocation11 + $0xc8] sm:$0xff]
    %v6305 = vld [vmem:[#allocation11 + $0xd0] sm:$0xff]
    %v6306 = vld [vmem:[#allocation11 + $0xd8] sm:$0xff]
    %v6307 = vld [vmem:[#allocation11 + $0xe0] sm:$0xff]
    %v6308 = vld [vmem:[#allocation11 + $0xe8] sm:$0xff]
    %v6309 = vld [vmem:[#allocation11 + $0xf0] sm:$0xff]
    %v6310 = vld [vmem:[#allocation11 + $0xf8] sm:$0xff]
    %v6311 = vld [vmem:[#allocation11 + $0x100] sm:$0xff]
    %v6312 = vld [vmem:[#allocation11 + $0x108] sm:$0xff]
    %v6313 = vld [vmem:[#allocation11 + $0x110] sm:$0xff]
    %v6314 = vld [vmem:[#allocation11 + $0x118] sm:$0xff]
    %v6315 = vld [vmem:[#allocation11 + $0x120] sm:$0xff]
    %v6316 = vld [vmem:[#allocation11 + $0x128] sm:$0xff]
    %v6317 = vld [vmem:[#allocation11 + $0x130] sm:$0xff]
    %v6318 = vld [vmem:[#allocation11 + $0x138] sm:$0xff]
    %v6319 = vld [vmem:[#allocation11 + $0x140] sm:$0xff]
    %v6320 = vld [vmem:[#allocation11 + $0x148] sm:$0xff]
    %v6321 = vld [vmem:[#allocation11 + $0x150] sm:$0xff]
    %v6322 = vld [vmem:[#allocation11 + $0x158] sm:$0xff]
    %v6323 = vld [vmem:[#allocation11 + $0x160] sm:$0xff]
    %v6324 = vld [vmem:[#allocation11 + $0x168] sm:$0xff]
    %v6325 = vld [vmem:[#allocation11 + $0x170] sm:$0xff]
    %v6326 = vld [vmem:[#allocation11 + $0x178] sm:$0xff]
    %v6327 = vld [vmem:[#allocation11 + $0x180] sm:$0xff]
    %v6328 = vld [vmem:[#allocation11 + $0x188] sm:$0xff]
    %v6329 = vld [vmem:[#allocation11 + $0x190] sm:$0xff]
    %v6330 = vld [vmem:[#allocation11 + $0x198] sm:$0xff]
    %v6331 = vld [vmem:[#allocation11 + $0x1a0] sm:$0xff]
    %v6332 = vld [vmem:[#allocation11 + $0x1a8] sm:$0xff]
    %v6333 = vld [vmem:[#allocation11 + $0x1b0] sm:$0xff]
    %v6334 = vld [vmem:[#allocation11 + $0x1b8] sm:$0xff]
    %v6335 = vld [vmem:[#allocation11 + $0x1c0] sm:$0xff]
    %v6336 = vld [vmem:[#allocation11 + $0x1c8] sm:$0xff]
    %v6337 = vld [vmem:[#allocation11 + $0x1d0] sm:$0xff]
    %v6338 = vld [vmem:[#allocation11 + $0x1d8] sm:$0xff]
    %v6339 = vld [vmem:[#allocation11 + $0x1e0] sm:$0xff]
    %v6340 = vld [vmem:[#allocation11 + $0x1e8] sm:$0xff]
    %v6341 = vld [vmem:[#allocation11 + $0x1f0] sm:$0xff]
    %v6342 = vld [vmem:[#allocation11 + $0x1f8] sm:$0xff]
    %v6343 = vld [vmem:[#allocation11 + $0x200] sm:$0xff]
    %v6344 = vld [vmem:[#allocation11 + $0x208] sm:$0xff]
    %v6345 = vld [vmem:[#allocation11 + $0x210] sm:$0xff]
    %v6346 = vld [vmem:[#allocation11 + $0x218] sm:$0xff]
    %v6347 = vld [vmem:[#allocation11 + $0x220] sm:$0xff]
    %v6348 = vld [vmem:[#allocation11 + $0x228] sm:$0xff]
    %v6349 = vld [vmem:[#allocation11 + $0x230] sm:$0xff]
    %v6350 = vld [vmem:[#allocation11 + $0x238] sm:$0xff]
    %v6351 = vld [vmem:[#allocation11 + $0x240] sm:$0xff]
    %v6352 = vld [vmem:[#allocation11 + $0x248] sm:$0xff]
    %v6353 = vld [vmem:[#allocation11 + $0x250] sm:$0xff]
    %v6354 = vld [vmem:[#allocation11 + $0x258] sm:$0xff]
    %v6355 = vld [vmem:[#allocation11 + $0x260] sm:$0xff]
    %v6356 = vld [vmem:[#allocation11 + $0x268] sm:$0xff]
    %v6357 = vld [vmem:[#allocation11 + $0x270] sm:$0xff]
    %v6358 = vld [vmem:[#allocation11 + $0x278] sm:$0xff]
    %v6359 = vld [vmem:[#allocation11 + $0x280] sm:$0xff]
    %v6360 = vld [vmem:[#allocation11 + $0x288] sm:$0xff]
    %v6361 = vld [vmem:[#allocation11 + $0x290] sm:$0xff]
    %v6362 = vld [vmem:[#allocation11 + $0x298] sm:$0xff]
    %v6363 = vld [vmem:[#allocation11 + $0x2a0] sm:$0xff]
    %v6364 = vld [vmem:[#allocation11 + $0x2a8] sm:$0xff]
    %v6365 = vld [vmem:[#allocation11 + $0x2b0] sm:$0xff]
    %v6366 = vld [vmem:[#allocation11 + $0x2b8] sm:$0xff]
    %v6367 = vld [vmem:[#allocation11 + $0x2c0] sm:$0xff]
    %v6368 = vld [vmem:[#allocation11 + $0x2c8] sm:$0xff]
    %v6369 = vld [vmem:[#allocation11 + $0x2d0] sm:$0xff]
    %v6370 = vld [vmem:[#allocation11 + $0x2d8] sm:$0xff]
    %v6371 = vld [vmem:[#allocation11 + $0x2e0] sm:$0xff]
    %v6372 = vld [vmem:[#allocation11 + $0x2e8] sm:$0xff]
    %v6373 = vld [vmem:[#allocation11 + $0x2f0] sm:$0xff]
    %v6374 = vld [vmem:[#allocation11 + $0x2f8] sm:$0xff]
    %v6375 = vld [vmem:[#allocation11 + $0x300] sm:$0xff]
    %v6376 = vld [vmem:[#allocation11 + $0x308] sm:$0xff]
    %v6377 = vld [vmem:[#allocation11 + $0x310] sm:$0xff]
    %v6378 = vld [vmem:[#allocation11 + $0x318] sm:$0xff]
    %v6379 = vld [vmem:[#allocation11 + $0x320] sm:$0xff]
    %v6380 = vld [vmem:[#allocation11 + $0x328] sm:$0xff]
    %v6381 = vld [vmem:[#allocation11 + $0x330] sm:$0xff]
    %v6382 = vld [vmem:[#allocation11 + $0x338] sm:$0xff]
    %v6383 = vld [vmem:[#allocation11 + $0x340] sm:$0xff]
    %v6384 = vld [vmem:[#allocation11 + $0x348] sm:$0xff]
    %v6385 = vld [vmem:[#allocation11 + $0x350] sm:$0xff]
    %v6386 = vld [vmem:[#allocation11 + $0x358] sm:$0xff]
    %v6387 = vld [vmem:[#allocation11 + $0x360] sm:$0xff]
    %v6388 = vld [vmem:[#allocation11 + $0x368] sm:$0xff]
    %v6389 = vld [vmem:[#allocation11 + $0x370] sm:$0xff]
    %v6390 = vld [vmem:[#allocation11 + $0x378] sm:$0xff]
    %v6391 = vld [vmem:[#allocation11 + $0x380] sm:$0xff]
    %v6392 = vld [vmem:[#allocation11 + $0x388] sm:$0xff]
    %v6393 = vld [vmem:[#allocation11 + $0x390] sm:$0xff]
    %v6394 = vld [vmem:[#allocation11 + $0x398] sm:$0xff]
    %v6395 = vld [vmem:[#allocation11 + $0x3a0] sm:$0xff]
    %v6396 = vld [vmem:[#allocation11 + $0x3a8] sm:$0xff]
    %v6397 = vld [vmem:[#allocation11 + $0x3b0] sm:$0xff]
    %v6398 = vld [vmem:[#allocation11 + $0x3b8] sm:$0xff]
    %v6399 = vld [vmem:[#allocation11 + $0x3c0] sm:$0xff]
    %v6400 = vld [vmem:[#allocation11 + $0x3c8] sm:$0xff]
    %v6401 = vld [vmem:[#allocation11 + $0x3d0] sm:$0xff]
    %v6402 = vld [vmem:[#allocation11 + $0x3d8] sm:$0xff]
    %v6403 = vld [vmem:[#allocation11 + $0x3e0] sm:$0xff]
    %v6404 = vld [vmem:[#allocation11 + $0x3e8] sm:$0xff]
    %v6405 = vld [vmem:[#allocation11 + $0x3f0] sm:$0xff]
    %v6406 = vld [vmem:[#allocation11 + $0x3f8] sm:$0xff]
    %v6407 = vld [vmem:[#allocation11 + $0x400] sm:$0xff]
    %v6408 = vld [vmem:[#allocation11 + $0x408] sm:$0xff]
    %v6409 = vld [vmem:[#allocation11 + $0x410] sm:$0xff]
    %v6410 = vld [vmem:[#allocation11 + $0x418] sm:$0xff]
    %v6411 = vld [vmem:[#allocation11 + $0x420] sm:$0xff]
    %v6412 = vld [vmem:[#allocation11 + $0x428] sm:$0xff]
    %v6413 = vld [vmem:[#allocation11 + $0x430] sm:$0xff]
    %v6414 = vld [vmem:[#allocation11 + $0x438] sm:$0xff]
    %v6415 = vld [vmem:[#allocation11 + $0x440] sm:$0xff]
    %v6416 = vld [vmem:[#allocation11 + $0x448] sm:$0xff]
    %v6417 = vld [vmem:[#allocation11 + $0x450] sm:$0xff]
    %v6418 = vld [vmem:[#allocation11 + $0x458] sm:$0xff]
    %v6419 = vld [vmem:[#allocation11 + $0x460] sm:$0xff]
    %v6420 = vld [vmem:[#allocation11 + $0x468] sm:$0xff]
    %v6421 = vld [vmem:[#allocation11 + $0x470] sm:$0xff]
    %v6422 = vld [vmem:[#allocation11 + $0x478] sm:$0xff]
    %v6423 = vld [vmem:[#allocation11 + $0x480] sm:$0xff]
    %v6424 = vld [vmem:[#allocation11 + $0x488] sm:$0xff]
    %v6425 = vld [vmem:[#allocation11 + $0x490] sm:$0xff]
    %v6426 = vld [vmem:[#allocation11 + $0x498] sm:$0xff]
    %v6427 = vld [vmem:[#allocation11 + $0x4a0] sm:$0xff]
    %v6428 = vld [vmem:[#allocation11 + $0x4a8] sm:$0xff]
    %v6429 = vld [vmem:[#allocation11 + $0x4b0] sm:$0xff]
    %v6430 = vld [vmem:[#allocation11 + $0x4b8] sm:$0xff]
    %v6431 = vld [vmem:[#allocation11 + $0x4c0] sm:$0xff]
    %v6432 = vld [vmem:[#allocation11 + $0x4c8] sm:$0xff]
    %v6433 = vld [vmem:[#allocation11 + $0x4d0] sm:$0xff]
    %v6434 = vld [vmem:[#allocation11 + $0x4d8] sm:$0xff]
    %v6435 = vld [vmem:[#allocation11 + $0x4e0] sm:$0xff]
    %v6436 = vld [vmem:[#allocation11 + $0x4e8] sm:$0xff]
    %v6437 = vld [vmem:[#allocation11 + $0x4f0] sm:$0xff]
    %v6438 = vld [vmem:[#allocation11 + $0x4f8] sm:$0xff]
    %v6439 = vld [vmem:[#allocation11 + $0x500] sm:$0xff]
    %v6440 = vld [vmem:[#allocation11 + $0x508] sm:$0xff]
    %v6441 = vld [vmem:[#allocation11 + $0x510] sm:$0xff]
    %v6442 = vld [vmem:[#allocation11 + $0x518] sm:$0xff]
    %v6443 = vld [vmem:[#allocation11 + $0x520] sm:$0xff]
    %v6444 = vld [vmem:[#allocation11 + $0x528] sm:$0xff]
    %v6445 = vld [vmem:[#allocation11 + $0x530] sm:$0xff]
    %v6446 = vld [vmem:[#allocation11 + $0x538] sm:$0xff]
    %v6447 = vld [vmem:[#allocation11 + $0x540] sm:$0xff]
    %v6448 = vld [vmem:[#allocation11 + $0x548] sm:$0xff]
    %v6449 = vld [vmem:[#allocation11 + $0x550] sm:$0xff]
    %v6450 = vld [vmem:[#allocation11 + $0x558] sm:$0xff]
    %v6451 = vld [vmem:[#allocation11 + $0x560] sm:$0xff]
    %v6452 = vld [vmem:[#allocation11 + $0x568] sm:$0xff]
    %v6453 = vld [vmem:[#allocation11 + $0x570] sm:$0xff]
    %v6454 = vld [vmem:[#allocation11 + $0x578] sm:$0xff]
    %v6455 = vld [vmem:[#allocation11 + $0x580] sm:$0xff]
    %v6456 = vld [vmem:[#allocation11 + $0x588] sm:$0xff]
    %v6457 = vld [vmem:[#allocation11 + $0x590] sm:$0xff]
    %v6458 = vld [vmem:[#allocation11 + $0x598] sm:$0xff]
    %v6459 = vld [vmem:[#allocation11 + $0x5a0] sm:$0xff]
    %v6460 = vld [vmem:[#allocation11 + $0x5a8] sm:$0xff]
    %v6461 = vld [vmem:[#allocation11 + $0x5b0] sm:$0xff]
    %v6462 = vld [vmem:[#allocation11 + $0x5b8] sm:$0xff]
    %v6463 = vld [vmem:[#allocation11 + $0x5c0] sm:$0xff]
    %v6464 = vld [vmem:[#allocation11 + $0x5c8] sm:$0xff]
    %v6465 = vld [vmem:[#allocation11 + $0x5d0] sm:$0xff]
    %v6466 = vld [vmem:[#allocation11 + $0x5d8] sm:$0xff]
    %v6467 = vld [vmem:[#allocation11 + $0x5e0] sm:$0xff]
    %v6468 = vld [vmem:[#allocation11 + $0x5e8] sm:$0xff]
    %v6469 = vld [vmem:[#allocation11 + $0x5f0] sm:$0xff]
    %v6470 = vld [vmem:[#allocation11 + $0x5f8] sm:$0xff]
    %v6471 = vld [vmem:[#allocation11 + $0x600] sm:$0xff]
    %v6472 = vld [vmem:[#allocation11 + $0x608] sm:$0xff]
    %v6473 = vld [vmem:[#allocation11 + $0x610] sm:$0xff]
    %v6474 = vld [vmem:[#allocation11 + $0x618] sm:$0xff]
    %v6475 = vld [vmem:[#allocation11 + $0x620] sm:$0xff]
    %v6476 = vld [vmem:[#allocation11 + $0x628] sm:$0xff]
    %v6477 = vld [vmem:[#allocation11 + $0x630] sm:$0xff]
    %v6478 = vld [vmem:[#allocation11 + $0x638] sm:$0xff]
    %v6479 = vld [vmem:[#allocation11 + $0x640] sm:$0xff]
    %v6480 = vld [vmem:[#allocation11 + $0x648] sm:$0xff]
    %v6481 = vld [vmem:[#allocation11 + $0x650] sm:$0xff]
    %v6482 = vld [vmem:[#allocation11 + $0x658] sm:$0xff]
    %v6483 = vld [vmem:[#allocation11 + $0x660] sm:$0xff]
    %v6484 = vld [vmem:[#allocation11 + $0x668] sm:$0xff]
    %v6485 = vld [vmem:[#allocation11 + $0x670] sm:$0xff]
    %v6486 = vld [vmem:[#allocation11 + $0x678] sm:$0xff]
    %v6487 = vld [vmem:[#allocation11 + $0x680] sm:$0xff]
    %v6488 = vld [vmem:[#allocation11 + $0x688] sm:$0xff]
    %v6489 = vld [vmem:[#allocation11 + $0x690] sm:$0xff]
    %v6490 = vld [vmem:[#allocation11 + $0x698] sm:$0xff]
    %v6491 = vld [vmem:[#allocation11 + $0x6a0] sm:$0xff]
    %v6492 = vld [vmem:[#allocation11 + $0x6a8] sm:$0xff]
    %v6493 = vld [vmem:[#allocation11 + $0x6b0] sm:$0xff]
    %v6494 = vld [vmem:[#allocation11 + $0x6b8] sm:$0xff]
    %v6495 = vld [vmem:[#allocation11 + $0x6c0] sm:$0xff]
    %v6496 = vld [vmem:[#allocation11 + $0x6c8] sm:$0xff]
    %v6497 = vld [vmem:[#allocation11 + $0x6d0] sm:$0xff]
    %v6498 = vld [vmem:[#allocation11 + $0x6d8] sm:$0xff]
    %v6499 = vld [vmem:[#allocation11 + $0x6e0] sm:$0xff]
    %v6500 = vld [vmem:[#allocation11 + $0x6e8] sm:$0xff]
    %v6501 = vld [vmem:[#allocation11 + $0x6f0] sm:$0xff]
    %v6502 = vld [vmem:[#allocation11 + $0x6f8] sm:$0xff]
    %v6503 = vld [vmem:[#allocation11 + $0x700] sm:$0xff]
    %v6504 = vld [vmem:[#allocation11 + $0x708] sm:$0xff]
    %v6505 = vld [vmem:[#allocation11 + $0x710] sm:$0xff]
    %v6506 = vld [vmem:[#allocation11 + $0x718] sm:$0xff]
    %v6507 = vld [vmem:[#allocation11 + $0x720] sm:$0xff]
    %v6508 = vld [vmem:[#allocation11 + $0x728] sm:$0xff]
    %v6509 = vld [vmem:[#allocation11 + $0x730] sm:$0xff]
    %v6510 = vld [vmem:[#allocation11 + $0x738] sm:$0xff]
    %v6511 = vld [vmem:[#allocation11 + $0x740] sm:$0xff]
    %v6512 = vld [vmem:[#allocation11 + $0x748] sm:$0xff]
    %v6513 = vld [vmem:[#allocation11 + $0x750] sm:$0xff]
    %v6514 = vld [vmem:[#allocation11 + $0x758] sm:$0xff]
    %v6515 = vld [vmem:[#allocation11 + $0x760] sm:$0xff]
    %v6516 = vld [vmem:[#allocation11 + $0x768] sm:$0xff]
    %v6517 = vld [vmem:[#allocation11 + $0x770] sm:$0xff]
    %v6518 = vld [vmem:[#allocation11 + $0x778] sm:$0xff]
    %v6519 = vld [vmem:[#allocation11 + $0x780] sm:$0xff]
    %v6520 = vld [vmem:[#allocation11 + $0x788] sm:$0xff]
    %v6521 = vld [vmem:[#allocation11 + $0x790] sm:$0xff]
    %v6522 = vld [vmem:[#allocation11 + $0x798] sm:$0xff]
    %v6523 = vld [vmem:[#allocation11 + $0x7a0] sm:$0xff]
    %v6524 = vld [vmem:[#allocation11 + $0x7a8] sm:$0xff]
    %v6525 = vld [vmem:[#allocation11 + $0x7b0] sm:$0xff]
    %v6526 = vld [vmem:[#allocation11 + $0x7b8] sm:$0xff]
    %v6527 = vld [vmem:[#allocation11 + $0x7c0] sm:$0xff]
    %v6528 = vld [vmem:[#allocation11 + $0x7c8] sm:$0xff]
    %v6529 = vld [vmem:[#allocation11 + $0x7d0] sm:$0xff]
    %v6530 = vld [vmem:[#allocation11 + $0x7d8] sm:$0xff]
    %v6531 = vld [vmem:[#allocation11 + $0x7e0] sm:$0xff]
    %v6532 = vld [vmem:[#allocation11 + $0x7e8] sm:$0xff]
    %v6533 = vld [vmem:[#allocation11 + $0x7f0] sm:$0xff]
    %v6534 = vld [vmem:[#allocation11 + $0x7f8] sm:$0xff]
    %v6535 = vld [vmem:[#allocation11 + $0x800] sm:$0xff]
    %v6536 = vld [vmem:[#allocation11 + $0x808] sm:$0xff]
    %v6537 = vld [vmem:[#allocation11 + $0x810] sm:$0xff]
    %v6538 = vld [vmem:[#allocation11 + $0x818] sm:$0xff]
    %v6539 = vld [vmem:[#allocation11 + $0x820] sm:$0xff]
    %v6540 = vld [vmem:[#allocation11 + $0x828] sm:$0xff]
    %v6541 = vld [vmem:[#allocation11 + $0x830] sm:$0xff]
    %v6542 = vld [vmem:[#allocation11 + $0x838] sm:$0xff]
    %v6543 = vld [vmem:[#allocation11 + $0x840] sm:$0xff]
    %v6544 = vld [vmem:[#allocation11 + $0x848] sm:$0xff]
    %v6545 = vld [vmem:[#allocation11 + $0x850] sm:$0xff]
    %v6546 = vld [vmem:[#allocation11 + $0x858] sm:$0xff]
    %v6547 = vld [vmem:[#allocation11 + $0x860] sm:$0xff]
    %v6548 = vld [vmem:[#allocation11 + $0x868] sm:$0xff]
    %v6549 = vld [vmem:[#allocation11 + $0x870] sm:$0xff]
    %v6550 = vld [vmem:[#allocation11 + $0x878] sm:$0xff]
    %v6551 = vld [vmem:[#allocation11 + $0x880] sm:$0xff]
    %v6552 = vld [vmem:[#allocation11 + $0x888] sm:$0xff]
    %v6553 = vld [vmem:[#allocation11 + $0x890] sm:$0xff]
    %v6554 = vld [vmem:[#allocation11 + $0x898] sm:$0xff]
    %v6555 = vld [vmem:[#allocation11 + $0x8a0] sm:$0xff]
    %v6556 = vld [vmem:[#allocation11 + $0x8a8] sm:$0xff]
    %v6557 = vld [vmem:[#allocation11 + $0x8b0] sm:$0xff]
    %v6558 = vld [vmem:[#allocation11 + $0x8b8] sm:$0xff]
    %v6559 = vld [vmem:[#allocation11 + $0x8c0] sm:$0xff]
    %v6560 = vld [vmem:[#allocation11 + $0x8c8] sm:$0xff]
    %v6561 = vld [vmem:[#allocation11 + $0x8d0] sm:$0xff]
    %v6562 = vld [vmem:[#allocation11 + $0x8d8] sm:$0xff]
    %v6563 = vld [vmem:[#allocation11 + $0x8e0] sm:$0xff]
    %v6564 = vld [vmem:[#allocation11 + $0x8e8] sm:$0xff]
    %v6565 = vld [vmem:[#allocation11 + $0x8f0] sm:$0xff]
    %v6566 = vld [vmem:[#allocation11 + $0x8f8] sm:$0xff]
    %v6567 = vld [vmem:[#allocation11 + $0x900] sm:$0xff]
    %v6568 = vld [vmem:[#allocation11 + $0x908] sm:$0xff]
    %v6569 = vld [vmem:[#allocation11 + $0x910] sm:$0xff]
    %v6570 = vld [vmem:[#allocation11 + $0x918] sm:$0xff]
    %v6571 = vld [vmem:[#allocation11 + $0x920] sm:$0xff]
    %v6572 = vld [vmem:[#allocation11 + $0x928] sm:$0xff]
    %v6573 = vld [vmem:[#allocation11 + $0x930] sm:$0xff]
    %v6574 = vld [vmem:[#allocation11 + $0x938] sm:$0xff]
    %v6575 = vld [vmem:[#allocation11 + $0x940] sm:$0xff]
    %v6576 = vld [vmem:[#allocation11 + $0x948] sm:$0xff]
    %v6577 = vld [vmem:[#allocation11 + $0x950] sm:$0xff]
    %v6578 = vld [vmem:[#allocation11 + $0x958] sm:$0xff]
    %v6579 = vld [vmem:[#allocation11 + $0x960] sm:$0xff]
    %v6580 = vld [vmem:[#allocation11 + $0x968] sm:$0xff]
    %v6581 = vld [vmem:[#allocation11 + $0x970] sm:$0xff]
    %v6582 = vld [vmem:[#allocation11 + $0x978] sm:$0xff]
    %v6583 = vld [vmem:[#allocation11 + $0x980] sm:$0xff]
    %v6584 = vld [vmem:[#allocation11 + $0x988] sm:$0xff]
    %v6585 = vld [vmem:[#allocation11 + $0x990] sm:$0xff]
    %v6586 = vld [vmem:[#allocation11 + $0x998] sm:$0xff]
    %v6587 = vld [vmem:[#allocation11 + $0x9a0] sm:$0xff]
    %v6588 = vld [vmem:[#allocation11 + $0x9a8] sm:$0xff]
    %v6589 = vld [vmem:[#allocation11 + $0x9b0] sm:$0xff]
    %v6590 = vld [vmem:[#allocation11 + $0x9b8] sm:$0xff]
    %v6591 = vld [vmem:[#allocation11 + $0x9c0] sm:$0xff]
    %v6592 = vld [vmem:[#allocation11 + $0x9c8] sm:$0xff]
    %v6593 = vld [vmem:[#allocation11 + $0x9d0] sm:$0xff]
    %v6594 = vld [vmem:[#allocation11 + $0x9d8] sm:$0xff]
    %v6595 = vld [vmem:[#allocation11 + $0x9e0] sm:$0xff]
    %v6596 = vld [vmem:[#allocation11 + $0x9e8] sm:$0xff]
    %v6597 = vld [vmem:[#allocation11 + $0x9f0] sm:$0xff]
    %v6598 = vld [vmem:[#allocation11 + $0x9f8] sm:$0xff]
    %v6599 = vld [vmem:[#allocation11 + $0xa00] sm:$0xff]
    %v6600 = vld [vmem:[#allocation11 + $0xa08] sm:$0xff]
    %v6601 = vld [vmem:[#allocation11 + $0xa10] sm:$0xff]
    %v6602 = vld [vmem:[#allocation11 + $0xa18] sm:$0xff]
    %v6603 = vld [vmem:[#allocation11 + $0xa20] sm:$0xff]
    %v6604 = vld [vmem:[#allocation11 + $0xa28] sm:$0xff]
    %v6605 = vld [vmem:[#allocation11 + $0xa30] sm:$0xff]
    %v6606 = vld [vmem:[#allocation11 + $0xa38] sm:$0xff]
    %v6607 = vld [vmem:[#allocation11 + $0xa40] sm:$0xff]
    %v6608 = vld [vmem:[#allocation11 + $0xa48] sm:$0xff]
    %v6609 = vld [vmem:[#allocation11 + $0xa50] sm:$0xff]
    %v6610 = vld [vmem:[#allocation11 + $0xa58] sm:$0xff]
    %v6611 = vld [vmem:[#allocation11 + $0xa60] sm:$0xff]
    %v6612 = vld [vmem:[#allocation11 + $0xa68] sm:$0xff]
    %v6613 = vld [vmem:[#allocation11 + $0xa70] sm:$0xff]
    %v6614 = vld [vmem:[#allocation11 + $0xa78] sm:$0xff]
    %v6615 = vld [vmem:[#allocation11 + $0xa80] sm:$0xff]
    %v6616 = vld [vmem:[#allocation11 + $0xa88] sm:$0xff]
    %v6617 = vld [vmem:[#allocation11 + $0xa90] sm:$0xff]
    %v6618 = vld [vmem:[#allocation11 + $0xa98] sm:$0xff]
    %v6619 = vld [vmem:[#allocation11 + $0xaa0] sm:$0xff]
    %v6620 = vld [vmem:[#allocation11 + $0xaa8] sm:$0xff]
    %v6621 = vld [vmem:[#allocation11 + $0xab0] sm:$0xff]
    %v6622 = vld [vmem:[#allocation11 + $0xab8] sm:$0xff]
    %v6623 = vld [vmem:[#allocation11 + $0xac0] sm:$0xff]
    %v6624 = vld [vmem:[#allocation11 + $0xac8] sm:$0xff]
    %v6625 = vld [vmem:[#allocation11 + $0xad0] sm:$0xff]
    %v6626 = vld [vmem:[#allocation11 + $0xad8] sm:$0xff]
    %v6627 = vld [vmem:[#allocation11 + $0xae0] sm:$0xff]
    %v6628 = vld [vmem:[#allocation11 + $0xae8] sm:$0xff]
    %v6629 = vld [vmem:[#allocation11 + $0xaf0] sm:$0xff]
    %v6630 = vld [vmem:[#allocation11 + $0xaf8] sm:$0xff]
    %v6631 = vld [vmem:[#allocation11 + $0xb00] sm:$0xff]
    %v6632 = vld [vmem:[#allocation11 + $0xb08] sm:$0xff]
    %v6633 = vld [vmem:[#allocation11 + $0xb10] sm:$0xff]
    %v6634 = vld [vmem:[#allocation11 + $0xb18] sm:$0xff]
    %v6635 = vld [vmem:[#allocation11 + $0xb20] sm:$0xff]
    %v6636 = vld [vmem:[#allocation11 + $0xb28] sm:$0xff]
    %v6637 = vld [vmem:[#allocation11 + $0xb30] sm:$0xff]
    %v6638 = vld [vmem:[#allocation11 + $0xb38] sm:$0xff]
    %v6639 = vld [vmem:[#allocation11 + $0xb40] sm:$0xff]
    %v6640 = vld [vmem:[#allocation11 + $0xb48] sm:$0xff]
    %v6641 = vld [vmem:[#allocation11 + $0xb50] sm:$0xff]
    %v6642 = vld [vmem:[#allocation11 + $0xb58] sm:$0xff]
    %v6643 = vld [vmem:[#allocation11 + $0xb60] sm:$0xff]
    %v6644 = vld [vmem:[#allocation11 + $0xb68] sm:$0xff]
    %v6645 = vld [vmem:[#allocation11 + $0xb70] sm:$0xff]
    %v6646 = vld [vmem:[#allocation11 + $0xb78] sm:$0xff]
    %v6647 = vld [vmem:[#allocation11 + $0xb80] sm:$0xff]
    %v6648 = vld [vmem:[#allocation11 + $0xb88] sm:$0xff]
    %v6649 = vld [vmem:[#allocation11 + $0xb90] sm:$0xff]
    %v6650 = vld [vmem:[#allocation11 + $0xb98] sm:$0xff]
    %v6651 = vld [vmem:[#allocation11 + $0xba0] sm:$0xff]
    %v6652 = vld [vmem:[#allocation11 + $0xba8] sm:$0xff]
    %v6653 = vld [vmem:[#allocation11 + $0xbb0] sm:$0xff]
    %v6654 = vld [vmem:[#allocation11 + $0xbb8] sm:$0xff]
    %v6655 = vld [vmem:[#allocation11 + $0xbc0] sm:$0xff]
    %v6656 = vld [vmem:[#allocation11 + $0xbc8] sm:$0xff]
    %v6657 = vld [vmem:[#allocation11 + $0xbd0] sm:$0xff]
    %v6658 = vld [vmem:[#allocation11 + $0xbd8] sm:$0xff]
    %v6659 = vld [vmem:[#allocation11 + $0xbe0] sm:$0xff]
    %v6660 = vld [vmem:[#allocation11 + $0xbe8] sm:$0xff]
    %v6661 = vld [vmem:[#allocation11 + $0xbf0] sm:$0xff]
    %v6662 = vld [vmem:[#allocation11 + $0xbf8] sm:$0xff]
    %v6663 = vld [vmem:[#allocation12] sm:$0x1]
    %v6665 = vperm.slane %v6663, 0
    %6667 = vmatpush.msra.mxu0 %v6294
    %6668 = vmatpush.msra.mxu0 %v6293
    %6669 = vmatpush.msra.mxu0 %v6292
    %6670 = vmatpush.msra.mxu0 %v6291
    %6671 = vmatpush.msra.mxu0 %v6290
    %6672 = vmatpush.msra.mxu0 %v6289
    %6673 = vmatpush.msra.mxu0 %v6288
    %6674 = vmatpush.msra.mxu0 %v6287
    %6675 = vmatpush.msra.mxu0 %v6286
    %6676 = vmatpush.msra.mxu0 %v6285
    %6677 = vmatpush.msra.mxu0 %v6284
    %6678 = vmatpush.msra.mxu0 %v6283
    %6679 = vmatpush.msra.mxu0 %v6282
    %6680 = vmatpush.msra.mxu0 %v6281
    %6681 = vmatpush.msra.mxu0 %v6280
    %6682 = vmatpush.msra.mxu0 %v6279
    %6683 = vmatmul.f32.gmra.mxu0 %v6255
    %v6684 = vpop.f32.mrf.mxu0
    %v6685 = vadd.f32 %v6665, %v6684
    %6686 = vdwg.mxu0
    %6687 = vmatpush.msra.mxu0 %v6310
    %6688 = vmatpush.msra.mxu0 %v6309
    %6689 = vmatpush.msra.mxu0 %v6308
    %6690 = vmatpush.msra.mxu0 %v6307
    %6691 = vmatpush.msra.mxu0 %v6306
    %6692 = vmatpush.msra.mxu0 %v6305
    %6693 = vmatpush.msra.mxu0 %v6304
    %6694 = vmatpush.msra.mxu0 %v6303
    %6695 = vmatpush.msra.mxu0 %v6302
    %6696 = vmatpush.msra.mxu0 %v6301
    %6697 = vmatpush.msra.mxu0 %v6300
    %6698 = vmatpush.msra.mxu0 %v6299
    %6699 = vmatpush.msra.mxu0 %v6298
    %6700 = vmatpush.msra.mxu0 %v6297
    %6701 = vmatpush.msra.mxu0 %v6296
    %6702 = vmatpush.msra.mxu0 %v6295
    %6703 = vmatmul.f32.gmra.mxu0 %v6256
    %v6704 = vpop.f32.mrf.mxu0
    %v6705 = vadd.f32 %v6685, %v6704
    %6706 = vdwg.mxu0
    %6707 = vmatpush.msra.mxu0 %v6326
    %6708 = vmatpush.msra.mxu0 %v6325
    %6709 = vmatpush.msra.mxu0 %v6324
    %6710 = vmatpush.msra.mxu0 %v6323
    %6711 = vmatpush.msra.mxu0 %v6322
    %6712 = vmatpush.msra.mxu0 %v6321
    %6713 = vmatpush.msra.mxu0 %v6320
    %6714 = vmatpush.msra.mxu0 %v6319
    %6715 = vmatpush.msra.mxu0 %v6318
    %6716 = vmatpush.msra.mxu0 %v6317
    %6717 = vmatpush.msra.mxu0 %v6316
    %6718 = vmatpush.msra.mxu0 %v6315
    %6719 = vmatpush.msra.mxu0 %v6314
    %6720 = vmatpush.msra.mxu0 %v6313
    %6721 = vmatpush.msra.mxu0 %v6312
    %6722 = vmatpush.msra.mxu0 %v6311
    %6723 = vmatmul.f32.gmra.mxu0 %v6257
    %v6724 = vpop.f32.mrf.mxu0
    %v6725 = vadd.f32 %v6705, %v6724
    %6726 = vdwg.mxu0
    %6727 = vmatpush.msra.mxu0 %v6342
    %6728 = vmatpush.msra.mxu0 %v6341
    %6729 = vmatpush.msra.mxu0 %v6340
    %6730 = vmatpush.msra.mxu0 %v6339
    %6731 = vmatpush.msra.mxu0 %v6338
    %6732 = vmatpush.msra.mxu0 %v6337
    %6733 = vmatpush.msra.mxu0 %v6336
    %6734 = vmatpush.msra.mxu0 %v6335
    %6735 = vmatpush.msra.mxu0 %v6334
    %6736 = vmatpush.msra.mxu0 %v6333
    %6737 = vmatpush.msra.mxu0 %v6332
    %6738 = vmatpush.msra.mxu0 %v6331
    %6739 = vmatpush.msra.mxu0 %v6330
    %6740 = vmatpush.msra.mxu0 %v6329
    %6741 = vmatpush.msra.mxu0 %v6328
    %6742 = vmatpush.msra.mxu0 %v6327
    %6743 = vmatmul.f32.gmra.mxu0 %v6258
    %v6744 = vpop.f32.mrf.mxu0
    %v6745 = vadd.f32 %v6725, %v6744
    %6746 = vdwg.mxu0
    %6747 = vmatpush.msra.mxu0 %v6358
    %6748 = vmatpush.msra.mxu0 %v6357
    %6749 = vmatpush.msra.mxu0 %v6356
    %6750 = vmatpush.msra.mxu0 %v6355
    %6751 = vmatpush.msra.mxu0 %v6354
    %6752 = vmatpush.msra.mxu0 %v6353
    %6753 = vmatpush.msra.mxu0 %v6352
    %6754 = vmatpush.msra.mxu0 %v6351
    %6755 = vmatpush.msra.mxu0 %v6350
    %6756 = vmatpush.msra.mxu0 %v6349
    %6757 = vmatpush.msra.mxu0 %v6348
    %6758 = vmatpush.msra.mxu0 %v6347
    %6759 = vmatpush.msra.mxu0 %v6346
    %6760 = vmatpush.msra.mxu0 %v6345
    %6761 = vmatpush.msra.mxu0 %v6344
    %6762 = vmatpush.msra.mxu0 %v6343
    %6763 = vmatmul.f32.gmra.mxu0 %v6259
    %v6764 = vpop.f32.mrf.mxu0
    %v6765 = vadd.f32 %v6745, %v6764
    %6766 = vdwg.mxu0
    %6767 = vmatpush.msra.mxu0 %v6374
    %6768 = vmatpush.msra.mxu0 %v6373
    %6769 = vmatpush.msra.mxu0 %v6372
    %6770 = vmatpush.msra.mxu0 %v6371
    %6771 = vmatpush.msra.mxu0 %v6370
    %6772 = vmatpush.msra.mxu0 %v6369
    %6773 = vmatpush.msra.mxu0 %v6368
    %6774 = vmatpush.msra.mxu0 %v6367
    %6775 = vmatpush.msra.mxu0 %v6366
    %6776 = vmatpush.msra.mxu0 %v6365
    %6777 = vmatpush.msra.mxu0 %v6364
    %6778 = vmatpush.msra.mxu0 %v6363
    %6779 = vmatpush.msra.mxu0 %v6362
    %6780 = vmatpush.msra.mxu0 %v6361
    %6781 = vmatpush.msra.mxu0 %v6360
    %6782 = vmatpush.msra.mxu0 %v6359
    %6783 = vmatmul.f32.gmra.mxu0 %v6260
    %v6784 = vpop.f32.mrf.mxu0
    %v6785 = vadd.f32 %v6765, %v6784
    %6786 = vdwg.mxu0
    %6787 = vmatpush.msra.mxu0 %v6390
    %6788 = vmatpush.msra.mxu0 %v6389
    %6789 = vmatpush.msra.mxu0 %v6388
    %6790 = vmatpush.msra.mxu0 %v6387
    %6791 = vmatpush.msra.mxu0 %v6386
    %6792 = vmatpush.msra.mxu0 %v6385
    %6793 = vmatpush.msra.mxu0 %v6384
    %6794 = vmatpush.msra.mxu0 %v6383
    %6795 = vmatpush.msra.mxu0 %v6382
    %6796 = vmatpush.msra.mxu0 %v6381
    %6797 = vmatpush.msra.mxu0 %v6380
    %6798 = vmatpush.msra.mxu0 %v6379
    %6799 = vmatpush.msra.mxu0 %v6378
    %6800 = vmatpush.msra.mxu0 %v6377
    %6801 = vmatpush.msra.mxu0 %v6376
    %6802 = vmatpush.msra.mxu0 %v6375
    %6803 = vmatmul.f32.gmra.mxu0 %v6261
    %v6804 = vpop.f32.mrf.mxu0
    %v6805 = vadd.f32 %v6785, %v6804
    %6806 = vdwg.mxu0
    %6807 = vmatpush.msra.mxu0 %v6406
    %6808 = vmatpush.msra.mxu0 %v6405
    %6809 = vmatpush.msra.mxu0 %v6404
    %6810 = vmatpush.msra.mxu0 %v6403
    %6811 = vmatpush.msra.mxu0 %v6402
    %6812 = vmatpush.msra.mxu0 %v6401
    %6813 = vmatpush.msra.mxu0 %v6400
    %6814 = vmatpush.msra.mxu0 %v6399
    %6815 = vmatpush.msra.mxu0 %v6398
    %6816 = vmatpush.msra.mxu0 %v6397
    %6817 = vmatpush.msra.mxu0 %v6396
    %6818 = vmatpush.msra.mxu0 %v6395
    %6819 = vmatpush.msra.mxu0 %v6394
    %6820 = vmatpush.msra.mxu0 %v6393
    %6821 = vmatpush.msra.mxu0 %v6392
    %6822 = vmatpush.msra.mxu0 %v6391
    %6823 = vmatmul.f32.gmra.mxu0 %v6262
    %v6824 = vpop.f32.mrf.mxu0
    %v6825 = vadd.f32 %v6805, %v6824
    %6826 = vdwg.mxu0
    %6827 = vmatpush.msra.mxu0 %v6422
    %6828 = vmatpush.msra.mxu0 %v6421
    %6829 = vmatpush.msra.mxu0 %v6420
    %6830 = vmatpush.msra.mxu0 %v6419
    %6831 = vmatpush.msra.mxu0 %v6418
    %6832 = vmatpush.msra.mxu0 %v6417
    %6833 = vmatpush.msra.mxu0 %v6416
    %6834 = vmatpush.msra.mxu0 %v6415
    %6835 = vmatpush.msra.mxu0 %v6414
    %6836 = vmatpush.msra.mxu0 %v6413
    %6837 = vmatpush.msra.mxu0 %v6412
    %6838 = vmatpush.msra.mxu0 %v6411
    %6839 = vmatpush.msra.mxu0 %v6410
    %6840 = vmatpush.msra.mxu0 %v6409
    %6841 = vmatpush.msra.mxu0 %v6408
    %6842 = vmatpush.msra.mxu0 %v6407
    %6843 = vmatmul.f32.gmra.mxu0 %v6263
    %v6844 = vpop.f32.mrf.mxu0
    %v6845 = vadd.f32 %v6825, %v6844
    %6846 = vdwg.mxu0
    %6847 = vmatpush.msra.mxu0 %v6438
    %6848 = vmatpush.msra.mxu0 %v6437
    %6849 = vmatpush.msra.mxu0 %v6436
    %6850 = vmatpush.msra.mxu0 %v6435
    %6851 = vmatpush.msra.mxu0 %v6434
    %6852 = vmatpush.msra.mxu0 %v6433
    %6853 = vmatpush.msra.mxu0 %v6432
    %6854 = vmatpush.msra.mxu0 %v6431
    %6855 = vmatpush.msra.mxu0 %v6430
    %6856 = vmatpush.msra.mxu0 %v6429
    %6857 = vmatpush.msra.mxu0 %v6428
    %6858 = vmatpush.msra.mxu0 %v6427
    %6859 = vmatpush.msra.mxu0 %v6426
    %6860 = vmatpush.msra.mxu0 %v6425
    %6861 = vmatpush.msra.mxu0 %v6424
    %6862 = vmatpush.msra.mxu0 %v6423
    %6863 = vmatmul.f32.gmra.mxu0 %v6264
    %v6864 = vpop.f32.mrf.mxu0
    %v6865 = vadd.f32 %v6845, %v6864
    %6866 = vdwg.mxu0
    %6867 = vmatpush.msra.mxu0 %v6454
    %6868 = vmatpush.msra.mxu0 %v6453
    %6869 = vmatpush.msra.mxu0 %v6452
    %6870 = vmatpush.msra.mxu0 %v6451
    %6871 = vmatpush.msra.mxu0 %v6450
    %6872 = vmatpush.msra.mxu0 %v6449
    %6873 = vmatpush.msra.mxu0 %v6448
    %6874 = vmatpush.msra.mxu0 %v6447
    %6875 = vmatpush.msra.mxu0 %v6446
    %6876 = vmatpush.msra.mxu0 %v6445
    %6877 = vmatpush.msra.mxu0 %v6444
    %6878 = vmatpush.msra.mxu0 %v6443
    %6879 = vmatpush.msra.mxu0 %v6442
    %6880 = vmatpush.msra.mxu0 %v6441
    %6881 = vmatpush.msra.mxu0 %v6440
    %6882 = vmatpush.msra.mxu0 %v6439
    %6883 = vmatmul.f32.gmra.mxu0 %v6265
    %v6884 = vpop.f32.mrf.mxu0
    %v6885 = vadd.f32 %v6865, %v6884
    %6886 = vdwg.mxu0
    %6887 = vmatpush.msra.mxu0 %v6470
    %6888 = vmatpush.msra.mxu0 %v6469
    %6889 = vmatpush.msra.mxu0 %v6468
    %6890 = vmatpush.msra.mxu0 %v6467
    %6891 = vmatpush.msra.mxu0 %v6466
    %6892 = vmatpush.msra.mxu0 %v6465
    %6893 = vmatpush.msra.mxu0 %v6464
    %6894 = vmatpush.msra.mxu0 %v6463
    %6895 = vmatpush.msra.mxu0 %v6462
    %6896 = vmatpush.msra.mxu0 %v6461
    %6897 = vmatpush.msra.mxu0 %v6460
    %6898 = vmatpush.msra.mxu0 %v6459
    %6899 = vmatpush.msra.mxu0 %v6458
    %6900 = vmatpush.msra.mxu0 %v6457
    %6901 = vmatpush.msra.mxu0 %v6456
    %6902 = vmatpush.msra.mxu0 %v6455
    %6903 = vmatmul.f32.gmra.mxu0 %v6266
    %v6904 = vpop.f32.mrf.mxu0
    %v6905 = vadd.f32 %v6885, %v6904
    %6906 = vdwg.mxu0
    %6907 = vmatpush.msra.mxu0 %v6486
    %6908 = vmatpush.msra.mxu0 %v6485
    %6909 = vmatpush.msra.mxu0 %v6484
    %6910 = vmatpush.msra.mxu0 %v6483
    %6911 = vmatpush.msra.mxu0 %v6482
    %6912 = vmatpush.msra.mxu0 %v6481
    %6913 = vmatpush.msra.mxu0 %v6480
    %6914 = vmatpush.msra.mxu0 %v6479
    %6915 = vmatpush.msra.mxu0 %v6478
    %6916 = vmatpush.msra.mxu0 %v6477
    %6917 = vmatpush.msra.mxu0 %v6476
    %6918 = vmatpush.msra.mxu0 %v6475
    %6919 = vmatpush.msra.mxu0 %v6474
    %6920 = vmatpush.msra.mxu0 %v6473
    %6921 = vmatpush.msra.mxu0 %v6472
    %6922 = vmatpush.msra.mxu0 %v6471
    %6923 = vmatmul.f32.gmra.mxu0 %v6267
    %v6924 = vpop.f32.mrf.mxu0
    %v6925 = vadd.f32 %v6905, %v6924
    %6926 = vdwg.mxu0
    %6927 = vmatpush.msra.mxu0 %v6502
    %6928 = vmatpush.msra.mxu0 %v6501
    %6929 = vmatpush.msra.mxu0 %v6500
    %6930 = vmatpush.msra.mxu0 %v6499
    %6931 = vmatpush.msra.mxu0 %v6498
    %6932 = vmatpush.msra.mxu0 %v6497
    %6933 = vmatpush.msra.mxu0 %v6496
    %6934 = vmatpush.msra.mxu0 %v6495
    %6935 = vmatpush.msra.mxu0 %v6494
    %6936 = vmatpush.msra.mxu0 %v6493
    %6937 = vmatpush.msra.mxu0 %v6492
    %6938 = vmatpush.msra.mxu0 %v6491
    %6939 = vmatpush.msra.mxu0 %v6490
    %6940 = vmatpush.msra.mxu0 %v6489
    %6941 = vmatpush.msra.mxu0 %v6488
    %6942 = vmatpush.msra.mxu0 %v6487
    %6943 = vmatmul.f32.gmra.mxu0 %v6268
    %v6944 = vpop.f32.mrf.mxu0
    %v6945 = vadd.f32 %v6925, %v6944
    %6946 = vdwg.mxu0
    %6947 = vmatpush.msra.mxu0 %v6518
    %6948 = vmatpush.msra.mxu0 %v6517
    %6949 = vmatpush.msra.mxu0 %v6516
    %6950 = vmatpush.msra.mxu0 %v6515
    %6951 = vmatpush.msra.mxu0 %v6514
    %6952 = vmatpush.msra.mxu0 %v6513
    %6953 = vmatpush.msra.mxu0 %v6512
    %6954 = vmatpush.msra.mxu0 %v6511
    %6955 = vmatpush.msra.mxu0 %v6510
    %6956 = vmatpush.msra.mxu0 %v6509
    %6957 = vmatpush.msra.mxu0 %v6508
    %6958 = vmatpush.msra.mxu0 %v6507
    %6959 = vmatpush.msra.mxu0 %v6506
    %6960 = vmatpush.msra.mxu0 %v6505
    %6961 = vmatpush.msra.mxu0 %v6504
    %6962 = vmatpush.msra.mxu0 %v6503
    %6963 = vmatmul.f32.gmra.mxu0 %v6269
    %v6964 = vpop.f32.mrf.mxu0
    %v6965 = vadd.f32 %v6945, %v6964
    %6966 = vdwg.mxu0
    %6967 = vmatpush.msra.mxu0 %v6534
    %6968 = vmatpush.msra.mxu0 %v6533
    %6969 = vmatpush.msra.mxu0 %v6532
    %6970 = vmatpush.msra.mxu0 %v6531
    %6971 = vmatpush.msra.mxu0 %v6530
    %6972 = vmatpush.msra.mxu0 %v6529
    %6973 = vmatpush.msra.mxu0 %v6528
    %6974 = vmatpush.msra.mxu0 %v6527
    %6975 = vmatpush.msra.mxu0 %v6526
    %6976 = vmatpush.msra.mxu0 %v6525
    %6977 = vmatpush.msra.mxu0 %v6524
    %6978 = vmatpush.msra.mxu0 %v6523
    %6979 = vmatpush.msra.mxu0 %v6522
    %6980 = vmatpush.msra.mxu0 %v6521
    %6981 = vmatpush.msra.mxu0 %v6520
    %6982 = vmatpush.msra.mxu0 %v6519
    %6983 = vmatmul.f32.gmra.mxu0 %v6270
    %v6984 = vpop.f32.mrf.mxu0
    %v6985 = vadd.f32 %v6965, %v6984
    %6986 = vdwg.mxu0
    %6987 = vmatpush.msra.mxu0 %v6550
    %6988 = vmatpush.msra.mxu0 %v6549
    %6989 = vmatpush.msra.mxu0 %v6548
    %6990 = vmatpush.msra.mxu0 %v6547
    %6991 = vmatpush.msra.mxu0 %v6546
    %6992 = vmatpush.msra.mxu0 %v6545
    %6993 = vmatpush.msra.mxu0 %v6544
    %6994 = vmatpush.msra.mxu0 %v6543
    %6995 = vmatpush.msra.mxu0 %v6542
    %6996 = vmatpush.msra.mxu0 %v6541
    %6997 = vmatpush.msra.mxu0 %v6540
    %6998 = vmatpush.msra.mxu0 %v6539
    %6999 = vmatpush.msra.mxu0 %v6538
    %7000 = vmatpush.msra.mxu0 %v6537
    %7001 = vmatpush.msra.mxu0 %v6536
    %7002 = vmatpush.msra.mxu0 %v6535
    %7003 = vmatmul.f32.gmra.mxu0 %v6271
    %v7004 = vpop.f32.mrf.mxu0
    %v7005 = vadd.f32 %v6985, %v7004
    %7006 = vdwg.mxu0
    %7007 = vmatpush.msra.mxu0 %v6566
    %7008 = vmatpush.msra.mxu0 %v6565
    %7009 = vmatpush.msra.mxu0 %v6564
    %7010 = vmatpush.msra.mxu0 %v6563
    %7011 = vmatpush.msra.mxu0 %v6562
    %7012 = vmatpush.msra.mxu0 %v6561
    %7013 = vmatpush.msra.mxu0 %v6560
    %7014 = vmatpush.msra.mxu0 %v6559
    %7015 = vmatpush.msra.mxu0 %v6558
    %7016 = vmatpush.msra.mxu0 %v6557
    %7017 = vmatpush.msra.mxu0 %v6556
    %7018 = vmatpush.msra.mxu0 %v6555
    %7019 = vmatpush.msra.mxu0 %v6554
    %7020 = vmatpush.msra.mxu0 %v6553
    %7021 = vmatpush.msra.mxu0 %v6552
    %7022 = vmatpush.msra.mxu0 %v6551
    %7023 = vmatmul.f32.gmra.mxu0 %v6272
    %v7024 = vpop.f32.mrf.mxu0
    %v7025 = vadd.f32 %v7005, %v7024
    %7026 = vdwg.mxu0
    %7027 = vmatpush.msra.mxu0 %v6582
    %7028 = vmatpush.msra.mxu0 %v6581
    %7029 = vmatpush.msra.mxu0 %v6580
    %7030 = vmatpush.msra.mxu0 %v6579
    %7031 = vmatpush.msra.mxu0 %v6578
    %7032 = vmatpush.msra.mxu0 %v6577
    %7033 = vmatpush.msra.mxu0 %v6576
    %7034 = vmatpush.msra.mxu0 %v6575
    %7035 = vmatpush.msra.mxu0 %v6574
    %7036 = vmatpush.msra.mxu0 %v6573
    %7037 = vmatpush.msra.mxu0 %v6572
    %7038 = vmatpush.msra.mxu0 %v6571
    %7039 = vmatpush.msra.mxu0 %v6570
    %7040 = vmatpush.msra.mxu0 %v6569
    %7041 = vmatpush.msra.mxu0 %v6568
    %7042 = vmatpush.msra.mxu0 %v6567
    %7043 = vmatmul.f32.gmra.mxu0 %v6273
    %v7044 = vpop.f32.mrf.mxu0
    %v7045 = vadd.f32 %v7025, %v7044
    %7046 = vdwg.mxu0
    %7047 = vmatpush.msra.mxu0 %v6598
    %7048 = vmatpush.msra.mxu0 %v6597
    %7049 = vmatpush.msra.mxu0 %v6596
    %7050 = vmatpush.msra.mxu0 %v6595
    %7051 = vmatpush.msra.mxu0 %v6594
    %7052 = vmatpush.msra.mxu0 %v6593
    %7053 = vmatpush.msra.mxu0 %v6592
    %7054 = vmatpush.msra.mxu0 %v6591
    %7055 = vmatpush.msra.mxu0 %v6590
    %7056 = vmatpush.msra.mxu0 %v6589
    %7057 = vmatpush.msra.mxu0 %v6588
    %7058 = vmatpush.msra.mxu0 %v6587
    %7059 = vmatpush.msra.mxu0 %v6586
    %7060 = vmatpush.msra.mxu0 %v6585
    %7061 = vmatpush.msra.mxu0 %v6584
    %7062 = vmatpush.msra.mxu0 %v6583
    %7063 = vmatmul.f32.gmra.mxu0 %v6274
    %v7064 = vpop.f32.mrf.mxu0
    %v7065 = vadd.f32 %v7045, %v7064
    %7066 = vdwg.mxu0
    %7067 = vmatpush.msra.mxu0 %v6614
    %7068 = vmatpush.msra.mxu0 %v6613
    %7069 = vmatpush.msra.mxu0 %v6612
    %7070 = vmatpush.msra.mxu0 %v6611
    %7071 = vmatpush.msra.mxu0 %v6610
    %7072 = vmatpush.msra.mxu0 %v6609
    %7073 = vmatpush.msra.mxu0 %v6608
    %7074 = vmatpush.msra.mxu0 %v6607
    %7075 = vmatpush.msra.mxu0 %v6606
    %7076 = vmatpush.msra.mxu0 %v6605
    %7077 = vmatpush.msra.mxu0 %v6604
    %7078 = vmatpush.msra.mxu0 %v6603
    %7079 = vmatpush.msra.mxu0 %v6602
    %7080 = vmatpush.msra.mxu0 %v6601
    %7081 = vmatpush.msra.mxu0 %v6600
    %7082 = vmatpush.msra.mxu0 %v6599
    %7083 = vmatmul.f32.gmra.mxu0 %v6275
    %v7084 = vpop.f32.mrf.mxu0
    %v7085 = vadd.f32 %v7065, %v7084
    %7086 = vdwg.mxu0
    %7087 = vmatpush.msra.mxu0 %v6630
    %7088 = vmatpush.msra.mxu0 %v6629
    %7089 = vmatpush.msra.mxu0 %v6628
    %7090 = vmatpush.msra.mxu0 %v6627
    %7091 = vmatpush.msra.mxu0 %v6626
    %7092 = vmatpush.msra.mxu0 %v6625
    %7093 = vmatpush.msra.mxu0 %v6624
    %7094 = vmatpush.msra.mxu0 %v6623
    %7095 = vmatpush.msra.mxu0 %v6622
    %7096 = vmatpush.msra.mxu0 %v6621
    %7097 = vmatpush.msra.mxu0 %v6620
    %7098 = vmatpush.msra.mxu0 %v6619
    %7099 = vmatpush.msra.mxu0 %v6618
    %7100 = vmatpush.msra.mxu0 %v6617
    %7101 = vmatpush.msra.mxu0 %v6616
    %7102 = vmatpush.msra.mxu0 %v6615
    %7103 = vmatmul.f32.gmra.mxu0 %v6276
    %v7104 = vpop.f32.mrf.mxu0
    %v7105 = vadd.f32 %v7085, %v7104
    %7106 = vdwg.mxu0
    %7107 = vmatpush.msra.mxu0 %v6646
    %7108 = vmatpush.msra.mxu0 %v6645
    %7109 = vmatpush.msra.mxu0 %v6644
    %7110 = vmatpush.msra.mxu0 %v6643
    %7111 = vmatpush.msra.mxu0 %v6642
    %7112 = vmatpush.msra.mxu0 %v6641
    %7113 = vmatpush.msra.mxu0 %v6640
    %7114 = vmatpush.msra.mxu0 %v6639
    %7115 = vmatpush.msra.mxu0 %v6638
    %7116 = vmatpush.msra.mxu0 %v6637
    %7117 = vmatpush.msra.mxu0 %v6636
    %7118 = vmatpush.msra.mxu0 %v6635
    %7119 = vmatpush.msra.mxu0 %v6634
    %7120 = vmatpush.msra.mxu0 %v6633
    %7121 = vmatpush.msra.mxu0 %v6632
    %7122 = vmatpush.msra.mxu0 %v6631
    %7123 = vmatmul.f32.gmra.mxu0 %v6277
    %v7124 = vpop.f32.mrf.mxu0
    %v7125 = vadd.f32 %v7105, %v7124
    %7126 = vdwg.mxu0
    %7127 = vmatpush.msra.mxu0 %v6662
    %7128 = vmatpush.msra.mxu0 %v6661
    %7129 = vmatpush.msra.mxu0 %v6660
    %7130 = vmatpush.msra.mxu0 %v6659
    %7131 = vmatpush.msra.mxu0 %v6658
    %7132 = vmatpush.msra.mxu0 %v6657
    %7133 = vmatpush.msra.mxu0 %v6656
    %7134 = vmatpush.msra.mxu0 %v6655
    %7135 = vmatpush.msra.mxu0 %v6654
    %7136 = vmatpush.msra.mxu0 %v6653
    %7137 = vmatpush.msra.mxu0 %v6652
    %7138 = vmatpush.msra.mxu0 %v6651
    %7139 = vmatpush.msra.mxu0 %v6650
    %7140 = vmatpush.msra.mxu0 %v6649
    %7141 = vmatpush.msra.mxu0 %v6648
    %7142 = vmatpush.msra.mxu0 %v6647
    %7143 = vmatmul.f32.gmra.mxu0 %v6278
    %v7144 = vpop.f32.mrf.mxu0
    %v7145 = vadd.f32 %v7125, %v7144
    %7146 = vdwg.mxu0
    %v7147 = vmul.f32 %v7145, %v7145
    %vm7148 = vcmask 1043456
    %v7149 = vsel %vm7148, %v7147, 0.0
    %7150 = vadd.xlane.f32.xlu0 %v7149
    %v7151 = vpop.xlane.xlu0 %7150
    %v7152 = vadd.f32 %v7151, 1e-08
    %v7153 = vrsqrt.pop %v7152
    %v7154 = vmul.f32 %v7153, %v7152
    %v7155 = vmul.f32 %v7154, %v7153
    %v7156 = vmul.f32 0.5, %v7155
    %v7157 = vsub.f32 1.5, %v7156
    %v7158 = vmul.f32 %v7153, %v7157
    %vm7159 = vweird.f32 %v7152
    %vm7160 = vweird.f32 %v7153
    %vm7161 = vmor %vm7159, %vm7160
    %v7162 = vsel %vm7161, %v7153, %v7158
    %v7163 = vmul.f32 %v7145, %v7162
    %v7165 = vrot.slane %v7163, 2
    %v7167 = vsub.f32 %v7163, %v7165
    %v7168 = vmul.f32 %v7167, %v7167
    %vm7169 = vcmask 1041408
    %v7170 = vsel %vm7169, %v7168, 0.0
    %7171 = vadd.xlane.f32.xlu0 %v7170
    %v7172 = vpop.xlane.xlu0 %7171
    %v7173 = vmul.f32 %v7172, 1e+08
    %vm7174 = vcmask 1024
    %7175 = vst.msk [vmem:[%s8] sm:$0x3] %vm7174, %v7173
    // Predicated region
    $region62: #{ppl_sampler_forward.11} parent=1 // pred_check
      _
    $region63: #{ppl_sampler_forward.11} parent=1 // pred_check_branch
      %7177 = sbr.rel (0) target = $region65
    $region64: #{ppl_sampler_forward.11} parent=1 // pred_region
      _
    $region65: #{ppl_sampler_forward.11} parent=1 // pred_fallthru
      _
    // Predicated region
    $region66: #{ppl_sampler_forward.11} parent=1 // pred_check
      _
    $region67: #{ppl_sampler_forward.11} parent=1 // pred_check_branch
      %7179 = sbr.rel (0) target = $region69
    $region68: #{ppl_sampler_forward.11} parent=1 // pred_region
      _
    $region69: #{ppl_sampler_forward.11} parent=1 // pred_fallthru
      _
    %7180 = vsyncpa [#allocation3], 1
    %7181 = vsyncpa [#allocation7], 1
    %7182 = vsyncpa [#allocation10], 1
    %7183 = vsyncpa [#allocation13], 1
    %7184 = vsyncpa [#allocation4], 1

</llo_original>
